<compile_context>
chip_gen: v7x
topology: tpu7x:2x2x1
jax: 0.10.0
libtpu: 0.0.40
codegen_flags: <defaults>
</compile_context>

<pallas_src>
import functools
import math

import jax
import jax.numpy as jnp
from jax.experimental import pallas as pl
from jax.experimental.pallas import tpu as pltpu

_VMEM = pl.BlockSpec(memory_space=pltpu.MemorySpace.VMEM)
_EPS = 1e-5


# ---------------------------------------------------------------------------
# GNN_Node core (adjacency -> normalize_digraph -> aggregate -> BN -> relu),
# given f_v and the already-computed U(f_v) / V(f_v) node features.
# ---------------------------------------------------------------------------
def _gnn_core(f_v, ux, vx, gamma, beta, *, neighbor_num, eps):
    """f_v/ux/vx: (B, N, C) f32.  gamma/beta: (1, N, 1).  Returns (B, N, C)."""
    bsz, n, c = f_v.shape

    # --- metric='dots': si = x @ x^T  (K = C = 512 -> fine on the MXU) ------
    si = jnp.einsum("bnc,bmc->bnm", f_v, f_v,
                    preferred_element_type=jnp.float32)            # (B, N, N)

    # k-th largest per row via order-statistic counting:
    #   thr = max{ v in row : |{m : row[m] >= v}| >= k }  ==  topk(row, k)[-1]
    # NOTE: fine at N=8; if num_node grows past ~32, switch to a k-iteration
    # running max instead of the (B,N,N,N) compare tensor.
    ge = (si[:, :, None, :] >= si[:, :, :, None]).astype(jnp.float32)   # (B,N,N,N)
    cnt = jnp.sum(ge, axis=-1)                                          # (B,N,N)
    thr = jnp.max(jnp.where(cnt >= float(neighbor_num), si, -jnp.inf),
                  axis=-1, keepdims=True)                               # (B,N,1)
    adj = (si >= thr).astype(jnp.float32)

    # normalize_digraph: A_norm = D^{-1/2} A D^{-1/2}
    dinv = jax.lax.rsqrt(jnp.sum(adj, axis=-1))                         # (B, N)
    a_norm = dinv[:, :, None] * adj * dinv[:, None, :]                  # (B, N, N)

    # Aggregation: K = N = 8 is far too small for the MXU -> VPU broadcast-FMA
    # over lane-dense (.., C) vregs (perf review).
    agg = jnp.sum(a_norm[..., None] * vx[:, None, :, :], axis=2)        # (B, N, C)
    s = agg + ux

    # BatchNorm1d(num_node) on (B, N, C): channel axis = node axis,
    # training-mode batch statistics (biased variance), as in the reference
    # module right after __init__ (weight=1, bias=0, running stats unused).
    mean = jnp.mean(s, axis=(0, 2), keepdims=True)                      # (1, N, 1)
    var = jnp.mean((s - mean) ** 2, axis=(0, 2), keepdims=True)
    bn = (s - mean) * jax.lax.rsqrt(var + eps) * gamma + beta

    return jnp.maximum(f_v + bn, 0.0)                                   # relu(x + bn)


# ---------------------------------------------------------------------------
# Kernel A: standalone GNN_Node (the spec module), x: (B, N, C) -> (B, N, C).
# U and V are fused into one (C, 2C) bf16 weight -> a single wide MXU matmul.
# ---------------------------------------------------------------------------
def gnn_node_kernel(x_ref, uvw_ref, uvb_ref, g_ref, b_ref, o_ref,
                    *, neighbor_num, eps):
    x = x_ref[...]                                                      # (B, N, C)
    bsz, n, c = x.shape

    uv = (jnp.dot(x.reshape(bsz * n, c).astype(jnp.bfloat16), uvw_ref[...],
                  preferred_element_type=jnp.float32) + uvb_ref[...])   # (B*N, 2C)
    ux = uv[:, :c].reshape(bsz, n, c)
    vx = uv[:, c:].reshape(bsz, n, c)

    o_ref[...] = _gnn_core(x, ux, vx, g_ref[...], b_ref[...],
                           neighbor_num=neighbor_num, eps=eps)


def gnn_node_pallas(x, params, *, neighbor_num):
    b, n, c = x.shape
    return pl.pallas_call(
        functools.partial(gnn_node_kernel, neighbor_num=neighbor_num, eps=_EPS),
        out_shape=jax.ShapeDtypeStruct((b, n, c), jnp.float32),
        in_specs=[_VMEM] * 5,
        out_specs=_VMEM,
    )(x, params["uv_w_t"], params["uv_b"], params["bn_gamma"], params["bn_beta"])


# ---------------------------------------------------------------------------
# Kernel B: fused MEFARG head
#   HW mean (in-kernel) -> one wide matmul [linear3 | linear3*U | linear3*V]
#   -> GNN core -> lane-dense fc.
# ---------------------------------------------------------------------------
def fused_head_kernel(box_ref, wbig_ref, bbig_ref, g_ref, b_ref,
                      fcw_ref, fcb_ref, o_ref,
                      *, batch, num_node, neighbor_num, eps, hw_scale):
    box = box_ref[...]                                  # (B*N, C_IN, H*W) f32
    rows = box.shape[0]

    # Spatial mean fused into the kernel (sum over the trailing H*W axis,
    # 1/(H*W) scale applied here).  mean/linear commute: mean(x)W+b == mean(xW+b).
    f_mean = jnp.sum(box, axis=-1) * hw_scale           # (B*N, C_IN)

    # Single wide matmul: columns [0:C) -> f_v, [C:2C) -> U(f_v), [2C:3C) -> V(f_v)
    big = (jnp.dot(f_mean.astype(jnp.bfloat16), wbig_ref[...],
                   preferred_element_type=jnp.float32) + bbig_ref[...])  # (B*N, 3C)
    c = big.shape[-1] // 3
    f_v = big[:, :c].reshape(batch, num_node, c)
    ux = big[:, c:2 * c].reshape(batch, num_node, c)
    vx = big[:, 2 * c:].reshape(batch, num_node, c)

    h = _gnn_core(f_v, ux, vx, g_ref[...], b_ref[...],
                  neighbor_num=neighbor_num, eps=eps)                    # (B, N, C)

    # Final fc.  fcw/fcb are pre-padded to a lane-dense width (multiple of 128)
    # so the output store is an unmasked, full-lane vst.
    o_ref[...] = (jnp.dot(h.reshape(rows, c).astype(jnp.bfloat16), fcw_ref[...],
                          preferred_element_type=jnp.float32) + fcb_ref[...])


def mefarg_forward(params, x, *, neighbor_num, num_classes):
    global_features, box_features = x
    global_features = global_features["3"]
    batch_size = global_features.shape[0]

    b_boxes, c_in, h, w = box_features.shape
    num_node = b_boxes // batch_size
    hw = h * w

    # Free view of contiguous NCHW -> (b_boxes, C_IN, H*W); no transpose pass.
    box_flat = box_features.reshape(b_boxes, c_in, hw)

    n_pad = params["fc_w_t"].shape[-1]                  # lane-dense padded classes
    out = pl.pallas_call(
        functools.partial(fused_head_kernel, batch=batch_size, num_node=num_node,
                          neighbor_num=neighbor_num, eps=_EPS, hw_scale=1.0 / hw),
        out_shape=jax.ShapeDtypeStruct((b_boxes, n_pad), jnp.float32),
        in_specs=[_VMEM] * 7,
        out_specs=_VMEM,
    )(box_flat,
      params["w_big"], params["b_big"],
      params["bn_gamma"], params["bn_beta"],
      params["fc_w_t"], params["fc_b"])

    return out[:, :num_classes]


# ---------------------------------------------------------------------------
# Deterministic synthetic parameters (shapes per the module __init__), with
# host-side weight fusion + bf16 cast.
# ---------------------------------------------------------------------------
def init_params(key, *, c_in, c_hid, num_node, num_classes, lane=128):
    ks = jax.random.split(key, 8)

    def linear(kw, kb, fan_in, fan_out, std=None):
        std = (1.0 / math.sqrt(fan_in)) if std is None else std
        w = jax.random.normal(kw, (fan_out, fan_in), jnp.float32) * std  # (out, in)
        b = jax.random.normal(kb, (fan_out,), jnp.float32) * 0.01
        return w, b

    l3_w, l3_b = linear(ks[0], ks[1], c_in, c_hid)
    u_w, u_b = linear(ks[2], ks[3], c_hid, c_hid, std=math.sqrt(2.0 / c_hid))
    v_w, v_b = linear(ks[4], ks[5], c_hid, c_hid, std=math.sqrt(2.0 / c_hid))
    fc_w, fc_b = linear(ks[6], ks[7], c_hid, num_classes)

    l3_w_t, u_w_t, v_w_t = l3_w.T, u_w.T, v_w.T          # (in, out) layouts

    # Standalone GNN_Node: U and V fused into one (C, 2C) weight.
    uv_w_t = jnp.concatenate([u_w_t, v_w_t], axis=1)                     # (512, 1024)
    uv_b = jnp.concatenate([u_b, v_b]).reshape(1, 2 * c_hid)

    # Fused head: linear3 folded into U and V (computed in f32, stored bf16).
    #   f_v = m @ l3_w_t + l3_b
    #   ux  = m @ (l3_w_t @ u_w_t) + (l3_b @ u_w_t + u_b)
    #   vx  = m @ (l3_w_t @ v_w_t) + (l3_b @ v_w_t + v_b)
    w_big = jnp.concatenate(
        [l3_w_t, l3_w_t @ u_w_t, l3_w_t @ v_w_t], axis=1)                # (256, 1536)
    b_big = jnp.concatenate(
        [l3_b, l3_b @ u_w_t + u_b, l3_b @ v_w_t + v_b]).reshape(1, 3 * c_hid)

    # Pad fc to a lane-dense output width; extra columns are zero and sliced
    # off after the kernel.
    n_pad = ((num_classes + lane - 1) // lane) * lane
    fc_w_t = jnp.zeros((c_hid, n_pad), jnp.float32).at[:, :num_classes].set(fc_w.T)
    fc_b_p = jnp.zeros((1, n_pad), jnp.float32).at[:, :num_classes].set(fc_b)

    return {
        # bf16 weights (f32 accumulation in-kernel), f32 biases / BN params.
        "uv_w_t": uv_w_t.astype(jnp.bfloat16),           # (512, 1024)
        "uv_b": uv_b,                                    # (1, 1024)
        "w_big": w_big.astype(jnp.bfloat16),             # (256, 1536)
        "b_big": b_big,                                  # (1, 1536)
        "bn_gamma": jnp.ones((1, num_node, 1), jnp.float32),   # bnv.weight = 1
        "bn_beta": jnp.zeros((1, num_node, 1), jnp.float32),   # bnv.bias = 0
        "fc_w_t": fc_w_t.astype(jnp.bfloat16),           # (512, 128)  lane-dense
        "fc_b": fc_b_p,                                  # (1, 128)
    }


if __name__ == "__main__":
    key = jax.random.PRNGKey(0)
    k_box, k_glob, k_par, k_x = jax.random.split(key, 4)

    # Small but forward-consistent shapes: linear3 is hard-coded 256 -> 512.
    B = 2                 # batch size (from global_features)
    num_node = 8          # boxes per image (GNN nodes / bnv channels)
    num_classes = 11
    neighbor_num = 5
    C_IN, C_HID = 256, 512
    H = W = 4
    b_boxes = B * num_node

    box_features = jax.random.normal(k_box, (b_boxes, C_IN, H, W), jnp.float32)
    global_features = {"3": jax.random.normal(k_glob, (B, C_IN, H, W), jnp.float32)}
    params = init_params(k_par, c_in=C_IN, c_hid=C_HID,
                         num_node=num_node, num_classes=num_classes)

    # 1) Standalone GNN_Node kernel (the spec module): x of shape (b, n, c).
    x_node = jax.random.normal(k_x, (B, num_node, C_HID), jnp.float32)
    y_node = jax.block_until_ready(
        gnn_node_pallas(x_node, params, neighbor_num=neighbor_num))
    assert y_node.shape == (B, num_node, C_HID), y_node.shape
    assert bool(jnp.all(jnp.isfinite(y_node)))
    assert bool(jnp.all(y_node >= 0.0))          # relu output

    # 2) Fused MEFARG forward (HW mean -> wide matmul -> GNN core -> fc),
    #    a single pallas_call.
    cl = mefarg_forward(params, (global_features, box_features),
                        neighbor_num=neighbor_num, num_classes=num_classes)
    cl = jax.block_until_ready(cl)
    assert cl.shape == (b_boxes, num_classes), cl.shape
    assert bool(jnp.all(jnp.isfinite(cl)))

    print("KERNEL_OK")
</pallas_src>

<mosaic_0001>
module attributes {stable_mosaic.version = 11 : i64} {
  func.func @gnn_node_kernel(%arg0: memref<2x8x512xf32, #tpu.memory_space<vmem>>, %arg1: memref<512x1024xbf16, #tpu.memory_space<vmem>>, %arg2: memref<1x1024xf32, #tpu.memory_space<vmem>>, %arg3: memref<1x8x1xf32, #tpu.memory_space<vmem>>, %arg4: memref<1x8x1xf32, #tpu.memory_space<vmem>>, %arg5: memref<2x8x512xf32, #tpu.memory_space<vmem>>) attributes {dimension_semantics = [], scalar_prefetch = 0 : i64, scratch_operands = 0 : i64, tpu.core_type = #tpu.core_type<tc>} {
    %c0 = arith.constant 0 : index
    %c0_0 = arith.constant 0 : index
    %c0_1 = arith.constant 0 : index
    %0 = vector.load %arg0[%c0, %c0_0, %c0_1] : memref<2x8x512xf32, #tpu.memory_space<vmem>>, vector<2x8x512xf32>
    %1 = vector.shape_cast %0 : vector<2x8x512xf32> to vector<16x512xf32>
    %2 = arith.truncf %1 : vector<16x512xf32> to vector<16x512xbf16>
    %c0_2 = arith.constant 0 : index
    %c0_3 = arith.constant 0 : index
    %3 = vector.load %arg1[%c0_2, %c0_3] : memref<512x1024xbf16, #tpu.memory_space<vmem>>, vector<512x1024xbf16>
    %cst = arith.constant dense<0.000000e+00> : vector<16x1024xf32>
    %4 = tpu.matmul %2, %3, %cst {dimension_numbers = #tpu.dot_dimension_numbers<[1], [0], [0], [1], [0, 0, 1, 1], [], []>} : vector<16x512xbf16>, vector<512x1024xbf16>, vector<16x1024xf32> -> vector<16x1024xf32>
    %c0_4 = arith.constant 0 : index
    %c0_5 = arith.constant 0 : index
    %5 = vector.load %arg2[%c0_4, %c0_5] : memref<1x1024xf32, #tpu.memory_space<vmem>>, vector<1x1024xf32>
    %6 = vector.broadcast %5 : vector<1x1024xf32> to vector<16x1024xf32>
    %7 = arith.addf %4, %6 : vector<16x1024xf32>
    %8 = vector.extract_strided_slice %7 {offsets = [0, 0], sizes = [16, 512], strides = [1, 1]} : vector<16x1024xf32> to vector<16x512xf32>
    %9 = vector.shape_cast %8 : vector<16x512xf32> to vector<2x8x512xf32>
    %10 = vector.extract_strided_slice %7 {offsets = [0, 512], sizes = [16, 512], strides = [1, 1]} : vector<16x1024xf32> to vector<16x512xf32>
    %11 = vector.shape_cast %10 : vector<16x512xf32> to vector<2x8x512xf32>
    %c0_6 = arith.constant 0 : index
    %c0_7 = arith.constant 0 : index
    %c0_8 = arith.constant 0 : index
    %12 = vector.load %arg3[%c0_6, %c0_7, %c0_8] : memref<1x8x1xf32, #tpu.memory_space<vmem>>, vector<1x8x1xf32>
    %c0_9 = arith.constant 0 : index
    %c0_10 = arith.constant 0 : index
    %c0_11 = arith.constant 0 : index
    %13 = vector.load %arg4[%c0_9, %c0_10, %c0_11] : memref<1x8x1xf32, #tpu.memory_space<vmem>>, vector<1x8x1xf32>
    "tpu.trace_start"() <{level = 10 : i32, message = "bnc,bmc->bnm"}> : () -> ()
    %cst_12 = arith.constant dense<0.000000e+00> : vector<2x8x8xf32>
    %14 = tpu.matmul %0, %0, %cst_12 {dimension_numbers = #tpu.dot_dimension_numbers<[2], [2], [1], [1], [0, 0, 0, 1, 1, 1], [0], [0]>} : vector<2x8x512xf32>, vector<2x8x512xf32>, vector<2x8x8xf32> -> vector<2x8x8xf32>
    "tpu.trace_stop"() : () -> ()
    %15 = vector.shape_cast %14 : vector<2x8x8xf32> to vector<2x8x1x8xf32>
    %16 = vector.shape_cast %14 : vector<2x8x8xf32> to vector<2x8x8x1xf32>
    %17 = vector.broadcast %15 : vector<2x8x1x8xf32> to vector<2x8x8x8xf32>
    %18 = vector.broadcast %16 : vector<2x8x8x1xf32> to vector<2x8x8x8xf32>
    %19 = arith.cmpf oge, %17, %18 : vector<2x8x8x8xf32>
    %20 = arith.extui %19 : vector<2x8x8x8xi1> to vector<2x8x8x8xi32>
    %21 = arith.sitofp %20 : vector<2x8x8x8xi32> to vector<2x8x8x8xf32>
    %cst_13 = arith.constant dense<0.000000e+00> : vector<2x8x8xf32>
    %22 = vector.multi_reduction <add>, %21, %cst_13 [3] : vector<2x8x8x8xf32> to vector<2x8x8xf32>
    %cst_14 = arith.constant 5.000000e+00 : f32
    %23 = vector.broadcast %cst_14 : f32 to vector<2x8x8xf32>
    %24 = arith.cmpf oge, %22, %23 : vector<2x8x8xf32>
    %cst_15 = arith.constant 0xFF800000 : f32
    %25 = vector.broadcast %cst_15 : f32 to vector<2x8x8xf32>
    %26 = arith.select %24, %14, %25 : vector<2x8x8xi1>, vector<2x8x8xf32>
    %cst_16 = arith.constant dense<0xFF800000> : vector<2x8xf32>
    %27 = vector.multi_reduction <maximumf>, %26, %cst_16 [2] : vector<2x8x8xf32> to vector<2x8xf32>
    %28 = vector.shape_cast %27 : vector<2x8xf32> to vector<2x8x1xf32>
    %29 = vector.broadcast %28 : vector<2x8x1xf32> to vector<2x8x8xf32>
    %30 = arith.cmpf oge, %14, %29 : vector<2x8x8xf32>
    %31 = arith.extui %30 : vector<2x8x8xi1> to vector<2x8x8xi32>
    %32 = arith.sitofp %31 : vector<2x8x8xi32> to vector<2x8x8xf32>
    %cst_17 = arith.constant dense<0.000000e+00> : vector<2x8xf32>
    %33 = vector.multi_reduction <add>, %32, %cst_17 [2] : vector<2x8x8xf32> to vector<2x8xf32>
    %34 = math.rsqrt %33 : vector<2x8xf32>
    %35 = vector.shape_cast %34 : vector<2x8xf32> to vector<2x8x1xf32>
    %36 = vector.broadcast %35 : vector<2x8x1xf32> to vector<2x8x8xf32>
    %37 = arith.mulf %36, %32 : vector<2x8x8xf32>
    %38 = vector.shape_cast %34 : vector<2x8xf32> to vector<2x1x8xf32>
    %39 = vector.broadcast %38 : vector<2x1x8xf32> to vector<2x8x8xf32>
    %40 = arith.mulf %37, %39 : vector<2x8x8xf32>
    %41 = vector.shape_cast %40 : vector<2x8x8xf32> to vector<2x8x8x1xf32>
    %42 = vector.shape_cast %11 : vector<2x8x512xf32> to vector<2x1x8x512xf32>
    %43 = vector.broadcast %41 : vector<2x8x8x1xf32> to vector<2x8x8x512xf32>
    %44 = vector.broadcast %42 : vector<2x1x8x512xf32> to vector<2x8x8x512xf32>
    %45 = arith.mulf %43, %44 : vector<2x8x8x512xf32>
    %cst_18 = arith.constant dense<0.000000e+00> : vector<2x8x512xf32>
    %46 = vector.multi_reduction <add>, %45, %cst_18 [2] : vector<2x8x8x512xf32> to vector<2x8x512xf32>
    %47 = arith.addf %46, %9 : vector<2x8x512xf32>
    %cst_19 = arith.constant dense<0.000000e+00> : vector<8xf32>
    %48 = vector.multi_reduction <add>, %47, %cst_19 [0, 2] : vector<2x8x512xf32> to vector<8xf32>
    %49 = vector.shape_cast %48 : vector<8xf32> to vector<1x8x1xf32>
    %cst_20 = arith.constant 1.024000e+03 : f32
    %50 = vector.broadcast %cst_20 : f32 to vector<1x8x1xf32>
    %51 = arith.divf %49, %50 : vector<1x8x1xf32>
    %52 = vector.broadcast %51 : vector<1x8x1xf32> to vector<2x8x512xf32>
    %53 = arith.subf %47, %52 : vector<2x8x512xf32>
    %54 = arith.mulf %53, %53 : vector<2x8x512xf32>
    %cst_21 = arith.constant dense<0.000000e+00> : vector<8xf32>
    %55 = vector.multi_reduction <add>, %54, %cst_21 [0, 2] : vector<2x8x512xf32> to vector<8xf32>
    %56 = vector.shape_cast %55 : vector<8xf32> to vector<1x8x1xf32>
    %cst_22 = arith.constant 1.024000e+03 : f32
    %57 = vector.broadcast %cst_22 : f32 to vector<1x8x1xf32>
    %58 = arith.divf %56, %57 : vector<1x8x1xf32>
    %59 = vector.broadcast %51 : vector<1x8x1xf32> to vector<2x8x512xf32>
    %60 = arith.subf %47, %59 : vector<2x8x512xf32>
    %cst_23 = arith.constant 9.99999974E-6 : f32
    %61 = vector.broadcast %cst_23 : f32 to vector<1x8x1xf32>
    %62 = arith.addf %58, %61 : vector<1x8x1xf32>
    %63 = math.rsqrt %62 : vector<1x8x1xf32>
    %64 = vector.broadcast %63 : vector<1x8x1xf32> to vector<2x8x512xf32>
    %65 = arith.mulf %60, %64 : vector<2x8x512xf32>
    %66 = vector.broadcast %12 : vector<1x8x1xf32> to vector<2x8x512xf32>
    %67 = arith.mulf %65, %66 : vector<2x8x512xf32>
    %68 = vector.broadcast %13 : vector<1x8x1xf32> to vector<2x8x512xf32>
    %69 = arith.addf %67, %68 : vector<2x8x512xf32>
    %70 = arith.addf %0, %69 : vector<2x8x512xf32>
    %cst_24 = arith.constant 0.000000e+00 : f32
    %71 = vector.broadcast %cst_24 : f32 to vector<2x8x512xf32>
    %72 = arith.maximumf %70, %71 : vector<2x8x512xf32>
    %c0_25 = arith.constant 0 : index
    %c0_26 = arith.constant 0 : index
    %c0_27 = arith.constant 0 : index
    %73 = vector.load %arg5[%c0_25, %c0_26, %c0_27] : memref<2x8x512xf32, #tpu.memory_space<vmem>>, vector<2x8x512xf32>
    tpu.vector_store %arg5[%c0_25, %c0_26, %c0_27], %72 {strides = array<i32>} : memref<2x8x512xf32, #tpu.memory_space<vmem>>, vector<2x8x512xf32>,
    return
  }
}

</mosaic_0001>

<llo_original>
// kernel: tpu_custom_call.1
$region0: #{tpu_custom_call.1}
  #allocation0 [shape = 'u32[]', space=smem, size = 0x4, offset = 0x4, fixed_abs, tag = 'smem constant byte address 0x4 - core index']
  #allocation1 [shape = 'u32[144,128]{1,0:T(1,128)}', space=vmem, size = 0x12000, scoped, tag = 'internal scratch']
  %s0 = inlined_call_operand.hbm [shape: f32[2,8,512], index: 0, kind: input, shape index: {}]
  %s1 = inlined_call_operand.hbm [shape: bf16[512,1024], index: 1, kind: input, shape index: {}]
  %s2 = inlined_call_operand.vmem [shape: f32[1,1024], index: 2, kind: input, shape index: {}]
  %s3 = inlined_call_operand.vmem [shape: f32[1,8,1], index: 3, kind: input, shape index: {}]
  %s4 = inlined_call_operand.vmem [shape: f32[1,8,1], index: 4, kind: input, shape index: {}]
  %s5 = inlined_call_operand.hbm [shape: f32[2,8,512], index: 5, kind: output, shape index: {}]
  %s6 = sld [smem:[#allocation0]]
  $region38: #{tpu_custom_call.1} parent=0
    _
  %s8 = ssub.s32 1, %s6
  %s9 = scalar_select 0, %s8, %s6
  $region1: #{tpu_custom_call.1} parent=0
    #allocation2 [shape = 'u8[32768]{0}', space=vmem, size = 0x8000, scoped, tag = 'input window, operand 0, single buffered']
    #allocation3 [shape = 's32[1]{0}', space=sflag, size = 0x4, scoped, tag = 'scoped memory for tpu_custom_call.1']
    #allocation4 [shape = 's32[1]{0}', space=sflag, size = 0x4, scoped, tag = 'scoped memory for tpu_custom_call.1']
    #allocation5 [shape = 'u8[1048576]{0}', space=vmem, size = 0x100000, scoped, tag = 'input window, operand 1, single buffered']
    #allocation6 [shape = 's32[1]{0}', space=sflag, size = 0x4, scoped, tag = 'scoped memory for tpu_custom_call.1']
    #allocation7 [shape = 'u8[32768]{0}', space=vmem, size = 0x8000, scoped, tag = 'output window, operand 0, single buffered']
    %10 = vsyncpa [#allocation3], 0
    %11 = vsyncpa [#allocation6], 0
    %12 = vsyncpa [#allocation4], 0
    // Predicated region
    $region2: #{tpu_custom_call.1} parent=1 // pred_check
      _
    $region3: #{tpu_custom_call.1} parent=1 // pred_check_branch
      %14 = sbr.rel (0) target = $region5
    $region4: #{tpu_custom_call.1} parent=1 // pred_region
      %s16 = ssub.s32 1024, 1024
      %17 = vsyncadd [#allocation3], %s16
      %s18 = sshll.u32 [#allocation2], 4
      %s19 = int_to_ptr.vmem [resolvable:$true] %s18
      %24 = dma.hbm_to_vmem [thread:$0]  %s0, 1024, %s19, [#allocation3], 512, 512, 32
    $region5: #{tpu_custom_call.1} parent=1 // pred_fallthru
      _
    // Predicated region
    $region6: #{tpu_custom_call.1} parent=1 // pred_check
      _
    $region7: #{tpu_custom_call.1} parent=1 // pred_check_branch
      %26 = sbr.rel (0) target = $region9
    $region8: #{tpu_custom_call.1} parent=1 // pred_region
      %s28 = ssub.s32 32768, 32768
      %29 = vsyncadd [#allocation6], %s28
      %s30 = sshll.u32 [#allocation5], 4
      %s31 = int_to_ptr.vmem [resolvable:$true] %s30
      %36 = dma.hbm_to_vmem [thread:$0]  %s1, 32768, %s31, [#allocation6], 512, 512, 32
    $region9: #{tpu_custom_call.1} parent=1 // pred_fallthru
      _
    // Predicated region
    $region10: #{tpu_custom_call.1} parent=1 // pred_check
      _
    $region11: #{tpu_custom_call.1} parent=1 // pred_check_branch
      %38 = sbr.rel (0) target = $region13
    $region12: #{tpu_custom_call.1} parent=1 // pred_region
      _
    $region13: #{tpu_custom_call.1} parent=1 // pred_fallthru
      _
    // Predicated region
    $region14: #{tpu_custom_call.1} parent=1 // pred_check
      _
    $region15: #{tpu_custom_call.1} parent=1 // pred_check_branch
      %40 = sbr.rel (0) target = $region17
    $region16: #{tpu_custom_call.1} parent=1 // pred_region
      _
    $region17: #{tpu_custom_call.1} parent=1 // pred_fallthru
      _
    // Predicated region
    $region18: #{tpu_custom_call.1} parent=1 // pred_check
      _
    $region19: #{tpu_custom_call.1} parent=1 // pred_check_branch
      %42 = sbr.rel (0) target = $region21
    $region20: #{tpu_custom_call.1} parent=1 // pred_region
      _
    $region21: #{tpu_custom_call.1} parent=1 // pred_fallthru
      _
    // Predicated region
    $region22: #{tpu_custom_call.1} parent=1 // pred_check
      _
    $region23: #{tpu_custom_call.1} parent=1 // pred_check_branch
      %44 = sbr.rel (0) target = $region25
    $region24: #{tpu_custom_call.1} parent=1 // pred_region
      %45 = dma.done [#allocation3], 1024
    $region25: #{tpu_custom_call.1} parent=1 // pred_fallthru
      _
    // Predicated region
    $region26: #{tpu_custom_call.1} parent=1 // pred_check
      _
    $region27: #{tpu_custom_call.1} parent=1 // pred_check_branch
      %47 = sbr.rel (0) target = $region29
    $region28: #{tpu_custom_call.1} parent=1 // pred_region
      %48 = dma.done [#allocation6], 32768
    $region29: #{tpu_custom_call.1} parent=1 // pred_fallthru
      _
    %v49 = vld [vmem:[#allocation2] sm:$0xff]
    %v50 = vld [vmem:[#allocation2 + $0x8] sm:$0xff]
    %v51 = vld [vmem:[#allocation2 + $0x10] sm:$0xff]
    %v52 = vld [vmem:[#allocation2 + $0x18] sm:$0xff]
    %v53 = vld [vmem:[#allocation2 + $0x20] sm:$0xff]
    %v54 = vld [vmem:[#allocation2 + $0x28] sm:$0xff]
    %v55 = vld [vmem:[#allocation2 + $0x30] sm:$0xff]
    %v56 = vld [vmem:[#allocation2 + $0x38] sm:$0xff]
    %v57 = vpack.c.bf16 %v53, %v49
    %v58 = vpack.c.bf16 %v54, %v50
    %v59 = vpack.c.bf16 %v55, %v51
    %v60 = vpack.c.bf16 %v56, %v52
    %v61 = vld [vmem:[#allocation5] sm:$0xff]
    %v62 = vld [vmem:[#allocation5 + $0x8] sm:$0xff]
    %v63 = vld [vmem:[#allocation5 + $0x10] sm:$0xff]
    %v64 = vld [vmem:[#allocation5 + $0x18] sm:$0xff]
    %v65 = vld [vmem:[#allocation5 + $0x20] sm:$0xff]
    %v66 = vld [vmem:[#allocation5 + $0x28] sm:$0xff]
    %v67 = vld [vmem:[#allocation5 + $0x30] sm:$0xff]
    %v68 = vld [vmem:[#allocation5 + $0x38] sm:$0xff]
    %v69 = vld [vmem:[#allocation5 + $0x40] sm:$0xff]
    %v70 = vld [vmem:[#allocation5 + $0x48] sm:$0xff]
    %v71 = vld [vmem:[#allocation5 + $0x50] sm:$0xff]
    %v72 = vld [vmem:[#allocation5 + $0x58] sm:$0xff]
    %v73 = vld [vmem:[#allocation5 + $0x60] sm:$0xff]
    %v74 = vld [vmem:[#allocation5 + $0x68] sm:$0xff]
    %v75 = vld [vmem:[#allocation5 + $0x70] sm:$0xff]
    %v76 = vld [vmem:[#allocation5 + $0x78] sm:$0xff]
    %v77 = vld [vmem:[#allocation5 + $0x80] sm:$0xff]
    %v78 = vld [vmem:[#allocation5 + $0x88] sm:$0xff]
    %v79 = vld [vmem:[#allocation5 + $0x90] sm:$0xff]
    %v80 = vld [vmem:[#allocation5 + $0x98] sm:$0xff]
    %v81 = vld [vmem:[#allocation5 + $0xa0] sm:$0xff]
    %v82 = vld [vmem:[#allocation5 + $0xa8] sm:$0xff]
    %v83 = vld [vmem:[#allocation5 + $0xb0] sm:$0xff]
    %v84 = vld [vmem:[#allocation5 + $0xb8] sm:$0xff]
    %v85 = vld [vmem:[#allocation5 + $0xc0] sm:$0xff]
    %v86 = vld [vmem:[#allocation5 + $0xc8] sm:$0xff]
    %v87 = vld [vmem:[#allocation5 + $0xd0] sm:$0xff]
    %v88 = vld [vmem:[#allocation5 + $0xd8] sm:$0xff]
    %v89 = vld [vmem:[#allocation5 + $0xe0] sm:$0xff]
    %v90 = vld [vmem:[#allocation5 + $0xe8] sm:$0xff]
    %v91 = vld [vmem:[#allocation5 + $0xf0] sm:$0xff]
    %v92 = vld [vmem:[#allocation5 + $0xf8] sm:$0xff]
    %v93 = vld [vmem:[#allocation5 + $0x100] sm:$0xff]
    %v94 = vld [vmem:[#allocation5 + $0x108] sm:$0xff]
    %v95 = vld [vmem:[#allocation5 + $0x110] sm:$0xff]
    %v96 = vld [vmem:[#allocation5 + $0x118] sm:$0xff]
    %v97 = vld [vmem:[#allocation5 + $0x120] sm:$0xff]
    %v98 = vld [vmem:[#allocation5 + $0x128] sm:$0xff]
    %v99 = vld [vmem:[#allocation5 + $0x130] sm:$0xff]
    %v100 = vld [vmem:[#allocation5 + $0x138] sm:$0xff]
    %v101 = vld [vmem:[#allocation5 + $0x140] sm:$0xff]
    %v102 = vld [vmem:[#allocation5 + $0x148] sm:$0xff]
    %v103 = vld [vmem:[#allocation5 + $0x150] sm:$0xff]
    %v104 = vld [vmem:[#allocation5 + $0x158] sm:$0xff]
    %v105 = vld [vmem:[#allocation5 + $0x160] sm:$0xff]
    %v106 = vld [vmem:[#allocation5 + $0x168] sm:$0xff]
    %v107 = vld [vmem:[#allocation5 + $0x170] sm:$0xff]
    %v108 = vld [vmem:[#allocation5 + $0x178] sm:$0xff]
    %v109 = vld [vmem:[#allocation5 + $0x180] sm:$0xff]
    %v110 = vld [vmem:[#allocation5 + $0x188] sm:$0xff]
    %v111 = vld [vmem:[#allocation5 + $0x190] sm:$0xff]
    %v112 = vld [vmem:[#allocation5 + $0x198] sm:$0xff]
    %v113 = vld [vmem:[#allocation5 + $0x1a0] sm:$0xff]
    %v114 = vld [vmem:[#allocation5 + $0x1a8] sm:$0xff]
    %v115 = vld [vmem:[#allocation5 + $0x1b0] sm:$0xff]
    %v116 = vld [vmem:[#allocation5 + $0x1b8] sm:$0xff]
    %v117 = vld [vmem:[#allocation5 + $0x1c0] sm:$0xff]
    %v118 = vld [vmem:[#allocation5 + $0x1c8] sm:$0xff]
    %v119 = vld [vmem:[#allocation5 + $0x1d0] sm:$0xff]
    %v120 = vld [vmem:[#allocation5 + $0x1d8] sm:$0xff]
    %v121 = vld [vmem:[#allocation5 + $0x1e0] sm:$0xff]
    %v122 = vld [vmem:[#allocation5 + $0x1e8] sm:$0xff]
    %v123 = vld [vmem:[#allocation5 + $0x1f0] sm:$0xff]
    %v124 = vld [vmem:[#allocation5 + $0x1f8] sm:$0xff]
    %v125 = vld [vmem:[#allocation5 + $0x200] sm:$0xff]
    %v126 = vld [vmem:[#allocation5 + $0x208] sm:$0xff]
    %v127 = vld [vmem:[#allocation5 + $0x210] sm:$0xff]
    %v128 = vld [vmem:[#allocation5 + $0x218] sm:$0xff]
    %v129 = vld [vmem:[#allocation5 + $0x220] sm:$0xff]
    %v130 = vld [vmem:[#allocation5 + $0x228] sm:$0xff]
    %v131 = vld [vmem:[#allocation5 + $0x230] sm:$0xff]
    %v132 = vld [vmem:[#allocation5 + $0x238] sm:$0xff]
    %v133 = vld [vmem:[#allocation5 + $0x240] sm:$0xff]
    %v134 = vld [vmem:[#allocation5 + $0x248] sm:$0xff]
    %v135 = vld [vmem:[#allocation5 + $0x250] sm:$0xff]
    %v136 = vld [vmem:[#allocation5 + $0x258] sm:$0xff]
    %v137 = vld [vmem:[#allocation5 + $0x260] sm:$0xff]
    %v138 = vld [vmem:[#allocation5 + $0x268] sm:$0xff]
    %v139 = vld [vmem:[#allocation5 + $0x270] sm:$0xff]
    %v140 = vld [vmem:[#allocation5 + $0x278] sm:$0xff]
    %v141 = vld [vmem:[#allocation5 + $0x280] sm:$0xff]
    %v142 = vld [vmem:[#allocation5 + $0x288] sm:$0xff]
    %v143 = vld [vmem:[#allocation5 + $0x290] sm:$0xff]
    %v144 = vld [vmem:[#allocation5 + $0x298] sm:$0xff]
    %v145 = vld [vmem:[#allocation5 + $0x2a0] sm:$0xff]
    %v146 = vld [vmem:[#allocation5 + $0x2a8] sm:$0xff]
    %v147 = vld [vmem:[#allocation5 + $0x2b0] sm:$0xff]
    %v148 = vld [vmem:[#allocation5 + $0x2b8] sm:$0xff]
    %v149 = vld [vmem:[#allocation5 + $0x2c0] sm:$0xff]
    %v150 = vld [vmem:[#allocation5 + $0x2c8] sm:$0xff]
    %v151 = vld [vmem:[#allocation5 + $0x2d0] sm:$0xff]
    %v152 = vld [vmem:[#allocation5 + $0x2d8] sm:$0xff]
    %v153 = vld [vmem:[#allocation5 + $0x2e0] sm:$0xff]
    %v154 = vld [vmem:[#allocation5 + $0x2e8] sm:$0xff]
    %v155 = vld [vmem:[#allocation5 + $0x2f0] sm:$0xff]
    %v156 = vld [vmem:[#allocation5 + $0x2f8] sm:$0xff]
    %v157 = vld [vmem:[#allocation5 + $0x300] sm:$0xff]
    %v158 = vld [vmem:[#allocation5 + $0x308] sm:$0xff]
    %v159 = vld [vmem:[#allocation5 + $0x310] sm:$0xff]
    %v160 = vld [vmem:[#allocation5 + $0x318] sm:$0xff]
    %v161 = vld [vmem:[#allocation5 + $0x320] sm:$0xff]
    %v162 = vld [vmem:[#allocation5 + $0x328] sm:$0xff]
    %v163 = vld [vmem:[#allocation5 + $0x330] sm:$0xff]
    %v164 = vld [vmem:[#allocation5 + $0x338] sm:$0xff]
    %v165 = vld [vmem:[#allocation5 + $0x340] sm:$0xff]
    %v166 = vld [vmem:[#allocation5 + $0x348] sm:$0xff]
    %v167 = vld [vmem:[#allocation5 + $0x350] sm:$0xff]
    %v168 = vld [vmem:[#allocation5 + $0x358] sm:$0xff]
    %v169 = vld [vmem:[#allocation5 + $0x360] sm:$0xff]
    %v170 = vld [vmem:[#allocation5 + $0x368] sm:$0xff]
    %v171 = vld [vmem:[#allocation5 + $0x370] sm:$0xff]
    %v172 = vld [vmem:[#allocation5 + $0x378] sm:$0xff]
    %v173 = vld [vmem:[#allocation5 + $0x380] sm:$0xff]
    %v174 = vld [vmem:[#allocation5 + $0x388] sm:$0xff]
    %v175 = vld [vmem:[#allocation5 + $0x390] sm:$0xff]
    %v176 = vld [vmem:[#allocation5 + $0x398] sm:$0xff]
    %v177 = vld [vmem:[#allocation5 + $0x3a0] sm:$0xff]
    %v178 = vld [vmem:[#allocation5 + $0x3a8] sm:$0xff]
    %v179 = vld [vmem:[#allocation5 + $0x3b0] sm:$0xff]
    %v180 = vld [vmem:[#allocation5 + $0x3b8] sm:$0xff]
    %v181 = vld [vmem:[#allocation5 + $0x3c0] sm:$0xff]
    %v182 = vld [vmem:[#allocation5 + $0x3c8] sm:$0xff]
    %v183 = vld [vmem:[#allocation5 + $0x3d0] sm:$0xff]
    %v184 = vld [vmem:[#allocation5 + $0x3d8] sm:$0xff]
    %v185 = vld [vmem:[#allocation5 + $0x3e0] sm:$0xff]
    %v186 = vld [vmem:[#allocation5 + $0x3e8] sm:$0xff]
    %v187 = vld [vmem:[#allocation5 + $0x3f0] sm:$0xff]
    %v188 = vld [vmem:[#allocation5 + $0x3f8] sm:$0xff]
    %v189 = vld [vmem:[#allocation5 + $0x400] sm:$0xff]
    %v190 = vld [vmem:[#allocation5 + $0x408] sm:$0xff]
    %v191 = vld [vmem:[#allocation5 + $0x410] sm:$0xff]
    %v192 = vld [vmem:[#allocation5 + $0x418] sm:$0xff]
    %v193 = vld [vmem:[#allocation5 + $0x420] sm:$0xff]
    %v194 = vld [vmem:[#allocation5 + $0x428] sm:$0xff]
    %v195 = vld [vmem:[#allocation5 + $0x430] sm:$0xff]
    %v196 = vld [vmem:[#allocation5 + $0x438] sm:$0xff]
    %v197 = vld [vmem:[#allocation5 + $0x440] sm:$0xff]
    %v198 = vld [vmem:[#allocation5 + $0x448] sm:$0xff]
    %v199 = vld [vmem:[#allocation5 + $0x450] sm:$0xff]
    %v200 = vld [vmem:[#allocation5 + $0x458] sm:$0xff]
    %v201 = vld [vmem:[#allocation5 + $0x460] sm:$0xff]
    %v202 = vld [vmem:[#allocation5 + $0x468] sm:$0xff]
    %v203 = vld [vmem:[#allocation5 + $0x470] sm:$0xff]
    %v204 = vld [vmem:[#allocation5 + $0x478] sm:$0xff]
    %v205 = vld [vmem:[#allocation5 + $0x480] sm:$0xff]
    %v206 = vld [vmem:[#allocation5 + $0x488] sm:$0xff]
    %v207 = vld [vmem:[#allocation5 + $0x490] sm:$0xff]
    %v208 = vld [vmem:[#allocation5 + $0x498] sm:$0xff]
    %v209 = vld [vmem:[#allocation5 + $0x4a0] sm:$0xff]
    %v210 = vld [vmem:[#allocation5 + $0x4a8] sm:$0xff]
    %v211 = vld [vmem:[#allocation5 + $0x4b0] sm:$0xff]
    %v212 = vld [vmem:[#allocation5 + $0x4b8] sm:$0xff]
    %v213 = vld [vmem:[#allocation5 + $0x4c0] sm:$0xff]
    %v214 = vld [vmem:[#allocation5 + $0x4c8] sm:$0xff]
    %v215 = vld [vmem:[#allocation5 + $0x4d0] sm:$0xff]
    %v216 = vld [vmem:[#allocation5 + $0x4d8] sm:$0xff]
    %v217 = vld [vmem:[#allocation5 + $0x4e0] sm:$0xff]
    %v218 = vld [vmem:[#allocation5 + $0x4e8] sm:$0xff]
    %v219 = vld [vmem:[#allocation5 + $0x4f0] sm:$0xff]
    %v220 = vld [vmem:[#allocation5 + $0x4f8] sm:$0xff]
    %v221 = vld [vmem:[#allocation5 + $0x500] sm:$0xff]
    %v222 = vld [vmem:[#allocation5 + $0x508] sm:$0xff]
    %v223 = vld [vmem:[#allocation5 + $0x510] sm:$0xff]
    %v224 = vld [vmem:[#allocation5 + $0x518] sm:$0xff]
    %v225 = vld [vmem:[#allocation5 + $0x520] sm:$0xff]
    %v226 = vld [vmem:[#allocation5 + $0x528] sm:$0xff]
    %v227 = vld [vmem:[#allocation5 + $0x530] sm:$0xff]
    %v228 = vld [vmem:[#allocation5 + $0x538] sm:$0xff]
    %v229 = vld [vmem:[#allocation5 + $0x540] sm:$0xff]
    %v230 = vld [vmem:[#allocation5 + $0x548] sm:$0xff]
    %v231 = vld [vmem:[#allocation5 + $0x550] sm:$0xff]
    %v232 = vld [vmem:[#allocation5 + $0x558] sm:$0xff]
    %v233 = vld [vmem:[#allocation5 + $0x560] sm:$0xff]
    %v234 = vld [vmem:[#allocation5 + $0x568] sm:$0xff]
    %v235 = vld [vmem:[#allocation5 + $0x570] sm:$0xff]
    %v236 = vld [vmem:[#allocation5 + $0x578] sm:$0xff]
    %v237 = vld [vmem:[#allocation5 + $0x580] sm:$0xff]
    %v238 = vld [vmem:[#allocation5 + $0x588] sm:$0xff]
    %v239 = vld [vmem:[#allocation5 + $0x590] sm:$0xff]
    %v240 = vld [vmem:[#allocation5 + $0x598] sm:$0xff]
    %v241 = vld [vmem:[#allocation5 + $0x5a0] sm:$0xff]
    %v242 = vld [vmem:[#allocation5 + $0x5a8] sm:$0xff]
    %v243 = vld [vmem:[#allocation5 + $0x5b0] sm:$0xff]
    %v244 = vld [vmem:[#allocation5 + $0x5b8] sm:$0xff]
    %v245 = vld [vmem:[#allocation5 + $0x5c0] sm:$0xff]
    %v246 = vld [vmem:[#allocation5 + $0x5c8] sm:$0xff]
    %v247 = vld [vmem:[#allocation5 + $0x5d0] sm:$0xff]
    %v248 = vld [vmem:[#allocation5 + $0x5d8] sm:$0xff]
    %v249 = vld [vmem:[#allocation5 + $0x5e0] sm:$0xff]
    %v250 = vld [vmem:[#allocation5 + $0x5e8] sm:$0xff]
    %v251 = vld [vmem:[#allocation5 + $0x5f0] sm:$0xff]
    %v252 = vld [vmem:[#allocation5 + $0x5f8] sm:$0xff]
    %v253 = vld [vmem:[#allocation5 + $0x600] sm:$0xff]
    %v254 = vld [vmem:[#allocation5 + $0x608] sm:$0xff]
    %v255 = vld [vmem:[#allocation5 + $0x610] sm:$0xff]
    %v256 = vld [vmem:[#allocation5 + $0x618] sm:$0xff]
    %v257 = vld [vmem:[#allocation5 + $0x620] sm:$0xff]
    %v258 = vld [vmem:[#allocation5 + $0x628] sm:$0xff]
    %v259 = vld [vmem:[#allocation5 + $0x630] sm:$0xff]
    %v260 = vld [vmem:[#allocation5 + $0x638] sm:$0xff]
    %v261 = vld [vmem:[#allocation5 + $0x640] sm:$0xff]
    %v262 = vld [vmem:[#allocation5 + $0x648] sm:$0xff]
    %v263 = vld [vmem:[#allocation5 + $0x650] sm:$0xff]
    %v264 = vld [vmem:[#allocation5 + $0x658] sm:$0xff]
    %v265 = vld [vmem:[#allocation5 + $0x660] sm:$0xff]
    %v266 = vld [vmem:[#allocation5 + $0x668] sm:$0xff]
    %v267 = vld [vmem:[#allocation5 + $0x670] sm:$0xff]
    %v268 = vld [vmem:[#allocation5 + $0x678] sm:$0xff]
    %v269 = vld [vmem:[#allocation5 + $0x680] sm:$0xff]
    %v270 = vld [vmem:[#allocation5 + $0x688] sm:$0xff]
    %v271 = vld [vmem:[#allocation5 + $0x690] sm:$0xff]
    %v272 = vld [vmem:[#allocation5 + $0x698] sm:$0xff]
    %v273 = vld [vmem:[#allocation5 + $0x6a0] sm:$0xff]
    %v274 = vld [vmem:[#allocation5 + $0x6a8] sm:$0xff]
    %v275 = vld [vmem:[#allocation5 + $0x6b0] sm:$0xff]
    %v276 = vld [vmem:[#allocation5 + $0x6b8] sm:$0xff]
    %v277 = vld [vmem:[#allocation5 + $0x6c0] sm:$0xff]
    %v278 = vld [vmem:[#allocation5 + $0x6c8] sm:$0xff]
    %v279 = vld [vmem:[#allocation5 + $0x6d0] sm:$0xff]
    %v280 = vld [vmem:[#allocation5 + $0x6d8] sm:$0xff]
    %v281 = vld [vmem:[#allocation5 + $0x6e0] sm:$0xff]
    %v282 = vld [vmem:[#allocation5 + $0x6e8] sm:$0xff]
    %v283 = vld [vmem:[#allocation5 + $0x6f0] sm:$0xff]
    %v284 = vld [vmem:[#allocation5 + $0x6f8] sm:$0xff]
    %v285 = vld [vmem:[#allocation5 + $0x700] sm:$0xff]
    %v286 = vld [vmem:[#allocation5 + $0x708] sm:$0xff]
    %v287 = vld [vmem:[#allocation5 + $0x710] sm:$0xff]
    %v288 = vld [vmem:[#allocation5 + $0x718] sm:$0xff]
    %v289 = vld [vmem:[#allocation5 + $0x720] sm:$0xff]
    %v290 = vld [vmem:[#allocation5 + $0x728] sm:$0xff]
    %v291 = vld [vmem:[#allocation5 + $0x730] sm:$0xff]
    %v292 = vld [vmem:[#allocation5 + $0x738] sm:$0xff]
    %v293 = vld [vmem:[#allocation5 + $0x740] sm:$0xff]
    %v294 = vld [vmem:[#allocation5 + $0x748] sm:$0xff]
    %v295 = vld [vmem:[#allocation5 + $0x750] sm:$0xff]
    %v296 = vld [vmem:[#allocation5 + $0x758] sm:$0xff]
    %v297 = vld [vmem:[#allocation5 + $0x760] sm:$0xff]
    %v298 = vld [vmem:[#allocation5 + $0x768] sm:$0xff]
    %v299 = vld [vmem:[#allocation5 + $0x770] sm:$0xff]
    %v300 = vld [vmem:[#allocation5 + $0x778] sm:$0xff]
    %v301 = vld [vmem:[#allocation5 + $0x780] sm:$0xff]
    %v302 = vld [vmem:[#allocation5 + $0x788] sm:$0xff]
    %v303 = vld [vmem:[#allocation5 + $0x790] sm:$0xff]
    %v304 = vld [vmem:[#allocation5 + $0x798] sm:$0xff]
    %v305 = vld [vmem:[#allocation5 + $0x7a0] sm:$0xff]
    %v306 = vld [vmem:[#allocation5 + $0x7a8] sm:$0xff]
    %v307 = vld [vmem:[#allocation5 + $0x7b0] sm:$0xff]
    %v308 = vld [vmem:[#allocation5 + $0x7b8] sm:$0xff]
    %v309 = vld [vmem:[#allocation5 + $0x7c0] sm:$0xff]
    %v310 = vld [vmem:[#allocation5 + $0x7c8] sm:$0xff]
    %v311 = vld [vmem:[#allocation5 + $0x7d0] sm:$0xff]
    %v312 = vld [vmem:[#allocation5 + $0x7d8] sm:$0xff]
    %v313 = vld [vmem:[#allocation5 + $0x7e0] sm:$0xff]
    %v314 = vld [vmem:[#allocation5 + $0x7e8] sm:$0xff]
    %v315 = vld [vmem:[#allocation5 + $0x7f0] sm:$0xff]
    %v316 = vld [vmem:[#allocation5 + $0x7f8] sm:$0xff]
    %v317 = vld [vmem:[%s2] sm:$0xff]
    %v319 = vlaneseq
    %v320 = vshrl.u32 %v319, 7
    %v321 = vsub.s32 0, %v320
    %v322 = vrot.slane %v317, %v321
    %v323 = vlaneseq
    %v324 = vshrl.u32 %v323, 7
    %v325 = vsub.s32 1, %v324
    %v326 = vrot.slane %v317, %v325
    %v327 = vlaneseq
    %v328 = vshrl.u32 %v327, 7
    %v329 = vsub.s32 2, %v328
    %v330 = vrot.slane %v317, %v329
    %v331 = vlaneseq
    %v332 = vshrl.u32 %v331, 7
    %v333 = vsub.s32 3, %v332
    %v334 = vrot.slane %v317, %v333
    %v335 = vlaneseq
    %v336 = vshrl.u32 %v335, 7
    %v337 = vsub.s32 4, %v336
    %v338 = vrot.slane %v317, %v337
    %v339 = vlaneseq
    %v340 = vshrl.u32 %v339, 7
    %v341 = vsub.s32 5, %v340
    %v342 = vrot.slane %v317, %v341
    %v343 = vlaneseq
    %v344 = vshrl.u32 %v343, 7
    %v345 = vsub.s32 6, %v344
    %v346 = vrot.slane %v317, %v345
    %v347 = vlaneseq
    %v348 = vshrl.u32 %v347, 7
    %v349 = vsub.s32 7, %v348
    %v350 = vrot.slane %v317, %v349
    %v615 = vunpack.c.l.b16 %v61
    %v616 = vunpack.c.h.b16 %v61
    %v617 = vunpack.c.l.b16 %v62
    %v618 = vunpack.c.h.b16 %v62
    %v619 = vunpack.c.l.b16 %v63
    %v620 = vunpack.c.h.b16 %v63
    %v621 = vunpack.c.l.b16 %v64
    %v622 = vunpack.c.h.b16 %v64
    %v623 = vunpack.c.l.b16 %v65
    %v624 = vunpack.c.h.b16 %v65
    %v625 = vunpack.c.l.b16 %v66
    %v626 = vunpack.c.h.b16 %v66
    %v627 = vunpack.c.l.b16 %v67
    %v628 = vunpack.c.h.b16 %v67
    %v629 = vunpack.c.l.b16 %v68
    %v630 = vunpack.c.h.b16 %v68
    %v631 = vunpack.c.l.b16 %v69
    %v632 = vunpack.c.h.b16 %v69
    %v633 = vunpack.c.l.b16 %v70
    %v634 = vunpack.c.h.b16 %v70
    %v635 = vunpack.c.l.b16 %v71
    %v636 = vunpack.c.h.b16 %v71
    %v637 = vunpack.c.l.b16 %v72
    %v638 = vunpack.c.h.b16 %v72
    %v639 = vunpack.c.l.b16 %v73
    %v640 = vunpack.c.h.b16 %v73
    %v641 = vunpack.c.l.b16 %v74
    %v642 = vunpack.c.h.b16 %v74
    %v643 = vunpack.c.l.b16 %v75
    %v644 = vunpack.c.h.b16 %v75
    %v645 = vunpack.c.l.b16 %v76
    %v646 = vunpack.c.h.b16 %v76
    %v647 = vunpack.c.l.b16 %v77
    %v648 = vunpack.c.h.b16 %v77
    %v649 = vunpack.c.l.b16 %v78
    %v650 = vunpack.c.h.b16 %v78
    %v651 = vunpack.c.l.b16 %v79
    %v652 = vunpack.c.h.b16 %v79
    %v653 = vunpack.c.l.b16 %v80
    %v654 = vunpack.c.h.b16 %v80
    %v655 = vunpack.c.l.b16 %v81
    %v656 = vunpack.c.h.b16 %v81
    %v657 = vunpack.c.l.b16 %v82
    %v658 = vunpack.c.h.b16 %v82
    %v659 = vunpack.c.l.b16 %v83
    %v660 = vunpack.c.h.b16 %v83
    %v661 = vunpack.c.l.b16 %v84
    %v662 = vunpack.c.h.b16 %v84
    %v663 = vunpack.c.l.b16 %v85
    %v664 = vunpack.c.h.b16 %v85
    %v665 = vunpack.c.l.b16 %v86
    %v666 = vunpack.c.h.b16 %v86
    %v667 = vunpack.c.l.b16 %v87
    %v668 = vunpack.c.h.b16 %v87
    %v669 = vunpack.c.l.b16 %v88
    %v670 = vunpack.c.h.b16 %v88
    %v671 = vunpack.c.l.b16 %v89
    %v672 = vunpack.c.h.b16 %v89
    %v673 = vunpack.c.l.b16 %v90
    %v674 = vunpack.c.h.b16 %v90
    %v675 = vunpack.c.l.b16 %v91
    %v676 = vunpack.c.h.b16 %v91
    %v677 = vunpack.c.l.b16 %v92
    %v678 = vunpack.c.h.b16 %v92
    %v679 = vunpack.c.l.b16 %v93
    %v680 = vunpack.c.h.b16 %v93
    %v681 = vunpack.c.l.b16 %v94
    %v682 = vunpack.c.h.b16 %v94
    %v683 = vunpack.c.l.b16 %v95
    %v684 = vunpack.c.h.b16 %v95
    %v685 = vunpack.c.l.b16 %v96
    %v686 = vunpack.c.h.b16 %v96
    %v687 = vunpack.c.l.b16 %v97
    %v688 = vunpack.c.h.b16 %v97
    %v689 = vunpack.c.l.b16 %v98
    %v690 = vunpack.c.h.b16 %v98
    %v691 = vunpack.c.l.b16 %v99
    %v692 = vunpack.c.h.b16 %v99
    %v693 = vunpack.c.l.b16 %v100
    %v694 = vunpack.c.h.b16 %v100
    %v695 = vunpack.c.l.b16 %v101
    %v696 = vunpack.c.h.b16 %v101
    %v697 = vunpack.c.l.b16 %v102
    %v698 = vunpack.c.h.b16 %v102
    %v699 = vunpack.c.l.b16 %v103
    %v700 = vunpack.c.h.b16 %v103
    %v701 = vunpack.c.l.b16 %v104
    %v702 = vunpack.c.h.b16 %v104
    %v703 = vunpack.c.l.b16 %v105
    %v704 = vunpack.c.h.b16 %v105
    %v705 = vunpack.c.l.b16 %v106
    %v706 = vunpack.c.h.b16 %v106
    %v707 = vunpack.c.l.b16 %v107
    %v708 = vunpack.c.h.b16 %v107
    %v709 = vunpack.c.l.b16 %v108
    %v710 = vunpack.c.h.b16 %v108
    %v711 = vunpack.c.l.b16 %v109
    %v712 = vunpack.c.h.b16 %v109
    %v713 = vunpack.c.l.b16 %v110
    %v714 = vunpack.c.h.b16 %v110
    %v715 = vunpack.c.l.b16 %v111
    %v716 = vunpack.c.h.b16 %v111
    %v717 = vunpack.c.l.b16 %v112
    %v718 = vunpack.c.h.b16 %v112
    %v719 = vunpack.c.l.b16 %v113
    %v720 = vunpack.c.h.b16 %v113
    %v721 = vunpack.c.l.b16 %v114
    %v722 = vunpack.c.h.b16 %v114
    %v723 = vunpack.c.l.b16 %v115
    %v724 = vunpack.c.h.b16 %v115
    %v725 = vunpack.c.l.b16 %v116
    %v726 = vunpack.c.h.b16 %v116
    %v727 = vunpack.c.l.b16 %v117
    %v728 = vunpack.c.h.b16 %v117
    %v729 = vunpack.c.l.b16 %v118
    %v730 = vunpack.c.h.b16 %v118
    %v731 = vunpack.c.l.b16 %v119
    %v732 = vunpack.c.h.b16 %v119
    %v733 = vunpack.c.l.b16 %v120
    %v734 = vunpack.c.h.b16 %v120
    %v735 = vunpack.c.l.b16 %v121
    %v736 = vunpack.c.h.b16 %v121
    %v737 = vunpack.c.l.b16 %v122
    %v738 = vunpack.c.h.b16 %v122
    %v739 = vunpack.c.l.b16 %v123
    %v740 = vunpack.c.h.b16 %v123
    %v741 = vunpack.c.l.b16 %v124
    %v742 = vunpack.c.h.b16 %v124
    %v743 = vunpack.c.l.b16 %v125
    %v744 = vunpack.c.h.b16 %v125
    %v745 = vunpack.c.l.b16 %v126
    %v746 = vunpack.c.h.b16 %v126
    %v747 = vunpack.c.l.b16 %v127
    %v748 = vunpack.c.h.b16 %v127
    %v749 = vunpack.c.l.b16 %v128
    %v750 = vunpack.c.h.b16 %v128
    %v751 = vunpack.c.l.b16 %v129
    %v752 = vunpack.c.h.b16 %v129
    %v753 = vunpack.c.l.b16 %v130
    %v754 = vunpack.c.h.b16 %v130
    %v755 = vunpack.c.l.b16 %v131
    %v756 = vunpack.c.h.b16 %v131
    %v757 = vunpack.c.l.b16 %v132
    %v758 = vunpack.c.h.b16 %v132
    %v759 = vunpack.c.l.b16 %v133
    %v760 = vunpack.c.h.b16 %v133
    %v761 = vunpack.c.l.b16 %v134
    %v762 = vunpack.c.h.b16 %v134
    %v763 = vunpack.c.l.b16 %v135
    %v764 = vunpack.c.h.b16 %v135
    %v765 = vunpack.c.l.b16 %v136
    %v766 = vunpack.c.h.b16 %v136
    %v767 = vunpack.c.l.b16 %v137
    %v768 = vunpack.c.h.b16 %v137
    %v769 = vunpack.c.l.b16 %v138
    %v770 = vunpack.c.h.b16 %v138
    %v771 = vunpack.c.l.b16 %v139
    %v772 = vunpack.c.h.b16 %v139
    %v773 = vunpack.c.l.b16 %v140
    %v774 = vunpack.c.h.b16 %v140
    %v775 = vunpack.c.l.b16 %v141
    %v776 = vunpack.c.h.b16 %v141
    %v777 = vunpack.c.l.b16 %v142
    %v778 = vunpack.c.h.b16 %v142
    %v779 = vunpack.c.l.b16 %v143
    %v780 = vunpack.c.h.b16 %v143
    %v781 = vunpack.c.l.b16 %v144
    %v782 = vunpack.c.h.b16 %v144
    %v783 = vunpack.c.l.b16 %v145
    %v784 = vunpack.c.h.b16 %v145
    %v785 = vunpack.c.l.b16 %v146
    %v786 = vunpack.c.h.b16 %v146
    %v787 = vunpack.c.l.b16 %v147
    %v788 = vunpack.c.h.b16 %v147
    %v789 = vunpack.c.l.b16 %v148
    %v790 = vunpack.c.h.b16 %v148
    %v791 = vunpack.c.l.b16 %v149
    %v792 = vunpack.c.h.b16 %v149
    %v793 = vunpack.c.l.b16 %v150
    %v794 = vunpack.c.h.b16 %v150
    %v795 = vunpack.c.l.b16 %v151
    %v796 = vunpack.c.h.b16 %v151
    %v797 = vunpack.c.l.b16 %v152
    %v798 = vunpack.c.h.b16 %v152
    %v799 = vunpack.c.l.b16 %v153
    %v800 = vunpack.c.h.b16 %v153
    %v801 = vunpack.c.l.b16 %v154
    %v802 = vunpack.c.h.b16 %v154
    %v803 = vunpack.c.l.b16 %v155
    %v804 = vunpack.c.h.b16 %v155
    %v805 = vunpack.c.l.b16 %v156
    %v806 = vunpack.c.h.b16 %v156
    %v807 = vunpack.c.l.b16 %v157
    %v808 = vunpack.c.h.b16 %v157
    %v809 = vunpack.c.l.b16 %v158
    %v810 = vunpack.c.h.b16 %v158
    %v811 = vunpack.c.l.b16 %v159
    %v812 = vunpack.c.h.b16 %v159
    %v813 = vunpack.c.l.b16 %v160
    %v814 = vunpack.c.h.b16 %v160
    %v815 = vunpack.c.l.b16 %v161
    %v816 = vunpack.c.h.b16 %v161
    %v817 = vunpack.c.l.b16 %v162
    %v818 = vunpack.c.h.b16 %v162
    %v819 = vunpack.c.l.b16 %v163
    %v820 = vunpack.c.h.b16 %v163
    %v821 = vunpack.c.l.b16 %v164
    %v822 = vunpack.c.h.b16 %v164
    %v823 = vunpack.c.l.b16 %v165
    %v824 = vunpack.c.h.b16 %v165
    %v825 = vunpack.c.l.b16 %v166
    %v826 = vunpack.c.h.b16 %v166
    %v827 = vunpack.c.l.b16 %v167
    %v828 = vunpack.c.h.b16 %v167
    %v829 = vunpack.c.l.b16 %v168
    %v830 = vunpack.c.h.b16 %v168
    %v831 = vunpack.c.l.b16 %v169
    %v832 = vunpack.c.h.b16 %v169
    %v833 = vunpack.c.l.b16 %v170
    %v834 = vunpack.c.h.b16 %v170
    %v835 = vunpack.c.l.b16 %v171
    %v836 = vunpack.c.h.b16 %v171
    %v837 = vunpack.c.l.b16 %v172
    %v838 = vunpack.c.h.b16 %v172
    %v839 = vunpack.c.l.b16 %v173
    %v840 = vunpack.c.h.b16 %v173
    %v841 = vunpack.c.l.b16 %v174
    %v842 = vunpack.c.h.b16 %v174
    %v843 = vunpack.c.l.b16 %v175
    %v844 = vunpack.c.h.b16 %v175
    %v845 = vunpack.c.l.b16 %v176
    %v846 = vunpack.c.h.b16 %v176
    %v847 = vunpack.c.l.b16 %v177
    %v848 = vunpack.c.h.b16 %v177
    %v849 = vunpack.c.l.b16 %v178
    %v850 = vunpack.c.h.b16 %v178
    %v851 = vunpack.c.l.b16 %v179
    %v852 = vunpack.c.h.b16 %v179
    %v853 = vunpack.c.l.b16 %v180
    %v854 = vunpack.c.h.b16 %v180
    %v855 = vunpack.c.l.b16 %v181
    %v856 = vunpack.c.h.b16 %v181
    %v857 = vunpack.c.l.b16 %v182
    %v858 = vunpack.c.h.b16 %v182
    %v859 = vunpack.c.l.b16 %v183
    %v860 = vunpack.c.h.b16 %v183
    %v861 = vunpack.c.l.b16 %v184
    %v862 = vunpack.c.h.b16 %v184
    %v863 = vunpack.c.l.b16 %v185
    %v864 = vunpack.c.h.b16 %v185
    %v865 = vunpack.c.l.b16 %v186
    %v866 = vunpack.c.h.b16 %v186
    %v867 = vunpack.c.l.b16 %v187
    %v868 = vunpack.c.h.b16 %v187
    %v869 = vunpack.c.l.b16 %v188
    %v870 = vunpack.c.h.b16 %v188
    %v871 = vunpack.c.l.b16 %v189
    %v872 = vunpack.c.h.b16 %v189
    %v873 = vunpack.c.l.b16 %v190
    %v874 = vunpack.c.h.b16 %v190
    %v875 = vunpack.c.l.b16 %v191
    %v876 = vunpack.c.h.b16 %v191
    %v877 = vunpack.c.l.b16 %v192
    %v878 = vunpack.c.h.b16 %v192
    %v879 = vunpack.c.l.b16 %v193
    %v880 = vunpack.c.h.b16 %v193
    %v881 = vunpack.c.l.b16 %v194
    %v882 = vunpack.c.h.b16 %v194
    %v883 = vunpack.c.l.b16 %v195
    %v884 = vunpack.c.h.b16 %v195
    %v885 = vunpack.c.l.b16 %v196
    %v886 = vunpack.c.h.b16 %v196
    %v887 = vunpack.c.l.b16 %v197
    %v888 = vunpack.c.h.b16 %v197
    %v889 = vunpack.c.l.b16 %v198
    %v890 = vunpack.c.h.b16 %v198
    %v891 = vunpack.c.l.b16 %v199
    %v892 = vunpack.c.h.b16 %v199
    %v893 = vunpack.c.l.b16 %v200
    %v894 = vunpack.c.h.b16 %v200
    %v895 = vunpack.c.l.b16 %v201
    %v896 = vunpack.c.h.b16 %v201
    %v897 = vunpack.c.l.b16 %v202
    %v898 = vunpack.c.h.b16 %v202
    %v899 = vunpack.c.l.b16 %v203
    %v900 = vunpack.c.h.b16 %v203
    %v901 = vunpack.c.l.b16 %v204
    %v902 = vunpack.c.h.b16 %v204
    %v903 = vunpack.c.l.b16 %v205
    %v904 = vunpack.c.h.b16 %v205
    %v905 = vunpack.c.l.b16 %v206
    %v906 = vunpack.c.h.b16 %v206
    %v907 = vunpack.c.l.b16 %v207
    %v908 = vunpack.c.h.b16 %v207
    %v909 = vunpack.c.l.b16 %v208
    %v910 = vunpack.c.h.b16 %v208
    %v911 = vunpack.c.l.b16 %v209
    %v912 = vunpack.c.h.b16 %v209
    %v913 = vunpack.c.l.b16 %v210
    %v914 = vunpack.c.h.b16 %v210
    %v915 = vunpack.c.l.b16 %v211
    %v916 = vunpack.c.h.b16 %v211
    %v917 = vunpack.c.l.b16 %v212
    %v918 = vunpack.c.h.b16 %v212
    %v919 = vunpack.c.l.b16 %v213
    %v920 = vunpack.c.h.b16 %v213
    %v921 = vunpack.c.l.b16 %v214
    %v922 = vunpack.c.h.b16 %v214
    %v923 = vunpack.c.l.b16 %v215
    %v924 = vunpack.c.h.b16 %v215
    %v925 = vunpack.c.l.b16 %v216
    %v926 = vunpack.c.h.b16 %v216
    %v927 = vunpack.c.l.b16 %v217
    %v928 = vunpack.c.h.b16 %v217
    %v929 = vunpack.c.l.b16 %v218
    %v930 = vunpack.c.h.b16 %v218
    %v931 = vunpack.c.l.b16 %v219
    %v932 = vunpack.c.h.b16 %v219
    %v933 = vunpack.c.l.b16 %v220
    %v934 = vunpack.c.h.b16 %v220
    %v935 = vunpack.c.l.b16 %v221
    %v936 = vunpack.c.h.b16 %v221
    %v937 = vunpack.c.l.b16 %v222
    %v938 = vunpack.c.h.b16 %v222
    %v939 = vunpack.c.l.b16 %v223
    %v940 = vunpack.c.h.b16 %v223
    %v941 = vunpack.c.l.b16 %v224
    %v942 = vunpack.c.h.b16 %v224
    %v943 = vunpack.c.l.b16 %v225
    %v944 = vunpack.c.h.b16 %v225
    %v945 = vunpack.c.l.b16 %v226
    %v946 = vunpack.c.h.b16 %v226
    %v947 = vunpack.c.l.b16 %v227
    %v948 = vunpack.c.h.b16 %v227
    %v949 = vunpack.c.l.b16 %v228
    %v950 = vunpack.c.h.b16 %v228
    %v951 = vunpack.c.l.b16 %v229
    %v952 = vunpack.c.h.b16 %v229
    %v953 = vunpack.c.l.b16 %v230
    %v954 = vunpack.c.h.b16 %v230
    %v955 = vunpack.c.l.b16 %v231
    %v956 = vunpack.c.h.b16 %v231
    %v957 = vunpack.c.l.b16 %v232
    %v958 = vunpack.c.h.b16 %v232
    %v959 = vunpack.c.l.b16 %v233
    %v960 = vunpack.c.h.b16 %v233
    %v961 = vunpack.c.l.b16 %v234
    %v962 = vunpack.c.h.b16 %v234
    %v963 = vunpack.c.l.b16 %v235
    %v964 = vunpack.c.h.b16 %v235
    %v965 = vunpack.c.l.b16 %v236
    %v966 = vunpack.c.h.b16 %v236
    %v967 = vunpack.c.l.b16 %v237
    %v968 = vunpack.c.h.b16 %v237
    %v969 = vunpack.c.l.b16 %v238
    %v970 = vunpack.c.h.b16 %v238
    %v971 = vunpack.c.l.b16 %v239
    %v972 = vunpack.c.h.b16 %v239
    %v973 = vunpack.c.l.b16 %v240
    %v974 = vunpack.c.h.b16 %v240
    %v975 = vunpack.c.l.b16 %v241
    %v976 = vunpack.c.h.b16 %v241
    %v977 = vunpack.c.l.b16 %v242
    %v978 = vunpack.c.h.b16 %v242
    %v979 = vunpack.c.l.b16 %v243
    %v980 = vunpack.c.h.b16 %v243
    %v981 = vunpack.c.l.b16 %v244
    %v982 = vunpack.c.h.b16 %v244
    %v983 = vunpack.c.l.b16 %v245
    %v984 = vunpack.c.h.b16 %v245
    %v985 = vunpack.c.l.b16 %v246
    %v986 = vunpack.c.h.b16 %v246
    %v987 = vunpack.c.l.b16 %v247
    %v988 = vunpack.c.h.b16 %v247
    %v989 = vunpack.c.l.b16 %v248
    %v990 = vunpack.c.h.b16 %v248
    %v991 = vunpack.c.l.b16 %v249
    %v992 = vunpack.c.h.b16 %v249
    %v993 = vunpack.c.l.b16 %v250
    %v994 = vunpack.c.h.b16 %v250
    %v995 = vunpack.c.l.b16 %v251
    %v996 = vunpack.c.h.b16 %v251
    %v997 = vunpack.c.l.b16 %v252
    %v998 = vunpack.c.h.b16 %v252
    %v999 = vunpack.c.l.b16 %v253
    %v1000 = vunpack.c.h.b16 %v253
    %v1001 = vunpack.c.l.b16 %v254
    %v1002 = vunpack.c.h.b16 %v254
    %v1003 = vunpack.c.l.b16 %v255
    %v1004 = vunpack.c.h.b16 %v255
    %v1005 = vunpack.c.l.b16 %v256
    %v1006 = vunpack.c.h.b16 %v256
    %v1007 = vunpack.c.l.b16 %v257
    %v1008 = vunpack.c.h.b16 %v257
    %v1009 = vunpack.c.l.b16 %v258
    %v1010 = vunpack.c.h.b16 %v258
    %v1011 = vunpack.c.l.b16 %v259
    %v1012 = vunpack.c.h.b16 %v259
    %v1013 = vunpack.c.l.b16 %v260
    %v1014 = vunpack.c.h.b16 %v260
    %v1015 = vunpack.c.l.b16 %v261
    %v1016 = vunpack.c.h.b16 %v261
    %v1017 = vunpack.c.l.b16 %v262
    %v1018 = vunpack.c.h.b16 %v262
    %v1019 = vunpack.c.l.b16 %v263
    %v1020 = vunpack.c.h.b16 %v263
    %v1021 = vunpack.c.l.b16 %v264
    %v1022 = vunpack.c.h.b16 %v264
    %v1023 = vunpack.c.l.b16 %v265
    %v1024 = vunpack.c.h.b16 %v265
    %v1025 = vunpack.c.l.b16 %v266
    %v1026 = vunpack.c.h.b16 %v266
    %v1027 = vunpack.c.l.b16 %v267
    %v1028 = vunpack.c.h.b16 %v267
    %v1029 = vunpack.c.l.b16 %v268
    %v1030 = vunpack.c.h.b16 %v268
    %v1031 = vunpack.c.l.b16 %v269
    %v1032 = vunpack.c.h.b16 %v269
    %v1033 = vunpack.c.l.b16 %v270
    %v1034 = vunpack.c.h.b16 %v270
    %v1035 = vunpack.c.l.b16 %v271
    %v1036 = vunpack.c.h.b16 %v271
    %v1037 = vunpack.c.l.b16 %v272
    %v1038 = vunpack.c.h.b16 %v272
    %v1039 = vunpack.c.l.b16 %v273
    %v1040 = vunpack.c.h.b16 %v273
    %v1041 = vunpack.c.l.b16 %v274
    %v1042 = vunpack.c.h.b16 %v274
    %v1043 = vunpack.c.l.b16 %v275
    %v1044 = vunpack.c.h.b16 %v275
    %v1045 = vunpack.c.l.b16 %v276
    %v1046 = vunpack.c.h.b16 %v276
    %v1047 = vunpack.c.l.b16 %v277
    %v1048 = vunpack.c.h.b16 %v277
    %v1049 = vunpack.c.l.b16 %v278
    %v1050 = vunpack.c.h.b16 %v278
    %v1051 = vunpack.c.l.b16 %v279
    %v1052 = vunpack.c.h.b16 %v279
    %v1053 = vunpack.c.l.b16 %v280
    %v1054 = vunpack.c.h.b16 %v280
    %v1055 = vunpack.c.l.b16 %v281
    %v1056 = vunpack.c.h.b16 %v281
    %v1057 = vunpack.c.l.b16 %v282
    %v1058 = vunpack.c.h.b16 %v282
    %v1059 = vunpack.c.l.b16 %v283
    %v1060 = vunpack.c.h.b16 %v283
    %v1061 = vunpack.c.l.b16 %v284
    %v1062 = vunpack.c.h.b16 %v284
    %v1063 = vunpack.c.l.b16 %v285
    %v1064 = vunpack.c.h.b16 %v285
    %v1065 = vunpack.c.l.b16 %v286
    %v1066 = vunpack.c.h.b16 %v286
    %v1067 = vunpack.c.l.b16 %v287
    %v1068 = vunpack.c.h.b16 %v287
    %v1069 = vunpack.c.l.b16 %v288
    %v1070 = vunpack.c.h.b16 %v288
    %v1071 = vunpack.c.l.b16 %v289
    %v1072 = vunpack.c.h.b16 %v289
    %v1073 = vunpack.c.l.b16 %v290
    %v1074 = vunpack.c.h.b16 %v290
    %v1075 = vunpack.c.l.b16 %v291
    %v1076 = vunpack.c.h.b16 %v291
    %v1077 = vunpack.c.l.b16 %v292
    %v1078 = vunpack.c.h.b16 %v292
    %v1079 = vunpack.c.l.b16 %v293
    %v1080 = vunpack.c.h.b16 %v293
    %v1081 = vunpack.c.l.b16 %v294
    %v1082 = vunpack.c.h.b16 %v294
    %v1083 = vunpack.c.l.b16 %v295
    %v1084 = vunpack.c.h.b16 %v295
    %v1085 = vunpack.c.l.b16 %v296
    %v1086 = vunpack.c.h.b16 %v296
    %v1087 = vunpack.c.l.b16 %v297
    %v1088 = vunpack.c.h.b16 %v297
    %v1089 = vunpack.c.l.b16 %v298
    %v1090 = vunpack.c.h.b16 %v298
    %v1091 = vunpack.c.l.b16 %v299
    %v1092 = vunpack.c.h.b16 %v299
    %v1093 = vunpack.c.l.b16 %v300
    %v1094 = vunpack.c.h.b16 %v300
    %v1095 = vunpack.c.l.b16 %v301
    %v1096 = vunpack.c.h.b16 %v301
    %v1097 = vunpack.c.l.b16 %v302
    %v1098 = vunpack.c.h.b16 %v302
    %v1099 = vunpack.c.l.b16 %v303
    %v1100 = vunpack.c.h.b16 %v303
    %v1101 = vunpack.c.l.b16 %v304
    %v1102 = vunpack.c.h.b16 %v304
    %v1103 = vunpack.c.l.b16 %v305
    %v1104 = vunpack.c.h.b16 %v305
    %v1105 = vunpack.c.l.b16 %v306
    %v1106 = vunpack.c.h.b16 %v306
    %v1107 = vunpack.c.l.b16 %v307
    %v1108 = vunpack.c.h.b16 %v307
    %v1109 = vunpack.c.l.b16 %v308
    %v1110 = vunpack.c.h.b16 %v308
    %v1111 = vunpack.c.l.b16 %v309
    %v1112 = vunpack.c.h.b16 %v309
    %v1113 = vunpack.c.l.b16 %v310
    %v1114 = vunpack.c.h.b16 %v310
    %v1115 = vunpack.c.l.b16 %v311
    %v1116 = vunpack.c.h.b16 %v311
    %v1117 = vunpack.c.l.b16 %v312
    %v1118 = vunpack.c.h.b16 %v312
    %v1119 = vunpack.c.l.b16 %v313
    %v1120 = vunpack.c.h.b16 %v313
    %v1121 = vunpack.c.l.b16 %v314
    %v1122 = vunpack.c.h.b16 %v314
    %v1123 = vunpack.c.l.b16 %v315
    %v1124 = vunpack.c.h.b16 %v315
    %v1125 = vunpack.c.l.b16 %v316
    %v1126 = vunpack.c.h.b16 %v316
    %v1127 = vpack.c.b16 %v623, %v615
    %v1128 = vpack.c.b16 %v624, %v616
    %v1129 = vpack.c.b16 %v625, %v617
    %v1130 = vpack.c.b16 %v626, %v618
    %v1131 = vpack.c.b16 %v627, %v619
    %v1132 = vpack.c.b16 %v628, %v620
    %v1133 = vpack.c.b16 %v629, %v621
    %v1134 = vpack.c.b16 %v630, %v622
    %v1135 = vpack.c.b16 %v639, %v631
    %v1136 = vpack.c.b16 %v640, %v632
    %v1137 = vpack.c.b16 %v641, %v633
    %v1138 = vpack.c.b16 %v642, %v634
    %v1139 = vpack.c.b16 %v643, %v635
    %v1140 = vpack.c.b16 %v644, %v636
    %v1141 = vpack.c.b16 %v645, %v637
    %v1142 = vpack.c.b16 %v646, %v638
    %v1143 = vpack.c.b16 %v655, %v647
    %v1144 = vpack.c.b16 %v656, %v648
    %v1145 = vpack.c.b16 %v657, %v649
    %v1146 = vpack.c.b16 %v658, %v650
    %v1147 = vpack.c.b16 %v659, %v651
    %v1148 = vpack.c.b16 %v660, %v652
    %v1149 = vpack.c.b16 %v661, %v653
    %v1150 = vpack.c.b16 %v662, %v654
    %v1151 = vpack.c.b16 %v671, %v663
    %v1152 = vpack.c.b16 %v672, %v664
    %v1153 = vpack.c.b16 %v673, %v665
    %v1154 = vpack.c.b16 %v674, %v666
    %v1155 = vpack.c.b16 %v675, %v667
    %v1156 = vpack.c.b16 %v676, %v668
    %v1157 = vpack.c.b16 %v677, %v669
    %v1158 = vpack.c.b16 %v678, %v670
    %v1159 = vpack.c.b16 %v687, %v679
    %v1160 = vpack.c.b16 %v688, %v680
    %v1161 = vpack.c.b16 %v689, %v681
    %v1162 = vpack.c.b16 %v690, %v682
    %v1163 = vpack.c.b16 %v691, %v683
    %v1164 = vpack.c.b16 %v692, %v684
    %v1165 = vpack.c.b16 %v693, %v685
    %v1166 = vpack.c.b16 %v694, %v686
    %v1167 = vpack.c.b16 %v703, %v695
    %v1168 = vpack.c.b16 %v704, %v696
    %v1169 = vpack.c.b16 %v705, %v697
    %v1170 = vpack.c.b16 %v706, %v698
    %v1171 = vpack.c.b16 %v707, %v699
    %v1172 = vpack.c.b16 %v708, %v700
    %v1173 = vpack.c.b16 %v709, %v701
    %v1174 = vpack.c.b16 %v710, %v702
    %v1175 = vpack.c.b16 %v719, %v711
    %v1176 = vpack.c.b16 %v720, %v712
    %v1177 = vpack.c.b16 %v721, %v713
    %v1178 = vpack.c.b16 %v722, %v714
    %v1179 = vpack.c.b16 %v723, %v715
    %v1180 = vpack.c.b16 %v724, %v716
    %v1181 = vpack.c.b16 %v725, %v717
    %v1182 = vpack.c.b16 %v726, %v718
    %v1183 = vpack.c.b16 %v735, %v727
    %v1184 = vpack.c.b16 %v736, %v728
    %v1185 = vpack.c.b16 %v737, %v729
    %v1186 = vpack.c.b16 %v738, %v730
    %v1187 = vpack.c.b16 %v739, %v731
    %v1188 = vpack.c.b16 %v740, %v732
    %v1189 = vpack.c.b16 %v741, %v733
    %v1190 = vpack.c.b16 %v742, %v734
    %v1191 = vpack.c.b16 %v751, %v743
    %v1192 = vpack.c.b16 %v752, %v744
    %v1193 = vpack.c.b16 %v753, %v745
    %v1194 = vpack.c.b16 %v754, %v746
    %v1195 = vpack.c.b16 %v755, %v747
    %v1196 = vpack.c.b16 %v756, %v748
    %v1197 = vpack.c.b16 %v757, %v749
    %v1198 = vpack.c.b16 %v758, %v750
    %v1199 = vpack.c.b16 %v767, %v759
    %v1200 = vpack.c.b16 %v768, %v760
    %v1201 = vpack.c.b16 %v769, %v761
    %v1202 = vpack.c.b16 %v770, %v762
    %v1203 = vpack.c.b16 %v771, %v763
    %v1204 = vpack.c.b16 %v772, %v764
    %v1205 = vpack.c.b16 %v773, %v765
    %v1206 = vpack.c.b16 %v774, %v766
    %v1207 = vpack.c.b16 %v783, %v775
    %v1208 = vpack.c.b16 %v784, %v776
    %v1209 = vpack.c.b16 %v785, %v777
    %v1210 = vpack.c.b16 %v786, %v778
    %v1211 = vpack.c.b16 %v787, %v779
    %v1212 = vpack.c.b16 %v788, %v780
    %v1213 = vpack.c.b16 %v789, %v781
    %v1214 = vpack.c.b16 %v790, %v782
    %v1215 = vpack.c.b16 %v799, %v791
    %v1216 = vpack.c.b16 %v800, %v792
    %v1217 = vpack.c.b16 %v801, %v793
    %v1218 = vpack.c.b16 %v802, %v794
    %v1219 = vpack.c.b16 %v803, %v795
    %v1220 = vpack.c.b16 %v804, %v796
    %v1221 = vpack.c.b16 %v805, %v797
    %v1222 = vpack.c.b16 %v806, %v798
    %v1223 = vpack.c.b16 %v815, %v807
    %v1224 = vpack.c.b16 %v816, %v808
    %v1225 = vpack.c.b16 %v817, %v809
    %v1226 = vpack.c.b16 %v818, %v810
    %v1227 = vpack.c.b16 %v819, %v811
    %v1228 = vpack.c.b16 %v820, %v812
    %v1229 = vpack.c.b16 %v821, %v813
    %v1230 = vpack.c.b16 %v822, %v814
    %v1231 = vpack.c.b16 %v831, %v823
    %v1232 = vpack.c.b16 %v832, %v824
    %v1233 = vpack.c.b16 %v833, %v825
    %v1234 = vpack.c.b16 %v834, %v826
    %v1235 = vpack.c.b16 %v835, %v827
    %v1236 = vpack.c.b16 %v836, %v828
    %v1237 = vpack.c.b16 %v837, %v829
    %v1238 = vpack.c.b16 %v838, %v830
    %v1239 = vpack.c.b16 %v847, %v839
    %v1240 = vpack.c.b16 %v848, %v840
    %v1241 = vpack.c.b16 %v849, %v841
    %v1242 = vpack.c.b16 %v850, %v842
    %v1243 = vpack.c.b16 %v851, %v843
    %v1244 = vpack.c.b16 %v852, %v844
    %v1245 = vpack.c.b16 %v853, %v845
    %v1246 = vpack.c.b16 %v854, %v846
    %v1247 = vpack.c.b16 %v863, %v855
    %v1248 = vpack.c.b16 %v864, %v856
    %v1249 = vpack.c.b16 %v865, %v857
    %v1250 = vpack.c.b16 %v866, %v858
    %v1251 = vpack.c.b16 %v867, %v859
    %v1252 = vpack.c.b16 %v868, %v860
    %v1253 = vpack.c.b16 %v869, %v861
    %v1254 = vpack.c.b16 %v870, %v862
    %v1255 = vpack.c.b16 %v879, %v871
    %v1256 = vpack.c.b16 %v880, %v872
    %v1257 = vpack.c.b16 %v881, %v873
    %v1258 = vpack.c.b16 %v882, %v874
    %v1259 = vpack.c.b16 %v883, %v875
    %v1260 = vpack.c.b16 %v884, %v876
    %v1261 = vpack.c.b16 %v885, %v877
    %v1262 = vpack.c.b16 %v886, %v878
    %v1263 = vpack.c.b16 %v895, %v887
    %v1264 = vpack.c.b16 %v896, %v888
    %v1265 = vpack.c.b16 %v897, %v889
    %v1266 = vpack.c.b16 %v898, %v890
    %v1267 = vpack.c.b16 %v899, %v891
    %v1268 = vpack.c.b16 %v900, %v892
    %v1269 = vpack.c.b16 %v901, %v893
    %v1270 = vpack.c.b16 %v902, %v894
    %v1271 = vpack.c.b16 %v911, %v903
    %v1272 = vpack.c.b16 %v912, %v904
    %v1273 = vpack.c.b16 %v913, %v905
    %v1274 = vpack.c.b16 %v914, %v906
    %v1275 = vpack.c.b16 %v915, %v907
    %v1276 = vpack.c.b16 %v916, %v908
    %v1277 = vpack.c.b16 %v917, %v909
    %v1278 = vpack.c.b16 %v918, %v910
    %v1279 = vpack.c.b16 %v927, %v919
    %v1280 = vpack.c.b16 %v928, %v920
    %v1281 = vpack.c.b16 %v929, %v921
    %v1282 = vpack.c.b16 %v930, %v922
    %v1283 = vpack.c.b16 %v931, %v923
    %v1284 = vpack.c.b16 %v932, %v924
    %v1285 = vpack.c.b16 %v933, %v925
    %v1286 = vpack.c.b16 %v934, %v926
    %v1287 = vpack.c.b16 %v943, %v935
    %v1288 = vpack.c.b16 %v944, %v936
    %v1289 = vpack.c.b16 %v945, %v937
    %v1290 = vpack.c.b16 %v946, %v938
    %v1291 = vpack.c.b16 %v947, %v939
    %v1292 = vpack.c.b16 %v948, %v940
    %v1293 = vpack.c.b16 %v949, %v941
    %v1294 = vpack.c.b16 %v950, %v942
    %v1295 = vpack.c.b16 %v959, %v951
    %v1296 = vpack.c.b16 %v960, %v952
    %v1297 = vpack.c.b16 %v961, %v953
    %v1298 = vpack.c.b16 %v962, %v954
    %v1299 = vpack.c.b16 %v963, %v955
    %v1300 = vpack.c.b16 %v964, %v956
    %v1301 = vpack.c.b16 %v965, %v957
    %v1302 = vpack.c.b16 %v966, %v958
    %v1303 = vpack.c.b16 %v975, %v967
    %v1304 = vpack.c.b16 %v976, %v968
    %v1305 = vpack.c.b16 %v977, %v969
    %v1306 = vpack.c.b16 %v978, %v970
    %v1307 = vpack.c.b16 %v979, %v971
    %v1308 = vpack.c.b16 %v980, %v972
    %v1309 = vpack.c.b16 %v981, %v973
    %v1310 = vpack.c.b16 %v982, %v974
    %v1311 = vpack.c.b16 %v991, %v983
    %v1312 = vpack.c.b16 %v992, %v984
    %v1313 = vpack.c.b16 %v993, %v985
    %v1314 = vpack.c.b16 %v994, %v986
    %v1315 = vpack.c.b16 %v995, %v987
    %v1316 = vpack.c.b16 %v996, %v988
    %v1317 = vpack.c.b16 %v997, %v989
    %v1318 = vpack.c.b16 %v998, %v990
    %v1319 = vpack.c.b16 %v1007, %v999
    %v1320 = vpack.c.b16 %v1008, %v1000
    %v1321 = vpack.c.b16 %v1009, %v1001
    %v1322 = vpack.c.b16 %v1010, %v1002
    %v1323 = vpack.c.b16 %v1011, %v1003
    %v1324 = vpack.c.b16 %v1012, %v1004
    %v1325 = vpack.c.b16 %v1013, %v1005
    %v1326 = vpack.c.b16 %v1014, %v1006
    %v1327 = vpack.c.b16 %v1023, %v1015
    %v1328 = vpack.c.b16 %v1024, %v1016
    %v1329 = vpack.c.b16 %v1025, %v1017
    %v1330 = vpack.c.b16 %v1026, %v1018
    %v1331 = vpack.c.b16 %v1027, %v1019
    %v1332 = vpack.c.b16 %v1028, %v1020
    %v1333 = vpack.c.b16 %v1029, %v1021
    %v1334 = vpack.c.b16 %v1030, %v1022
    %v1335 = vpack.c.b16 %v1039, %v1031
    %v1336 = vpack.c.b16 %v1040, %v1032
    %v1337 = vpack.c.b16 %v1041, %v1033
    %v1338 = vpack.c.b16 %v1042, %v1034
    %v1339 = vpack.c.b16 %v1043, %v1035
    %v1340 = vpack.c.b16 %v1044, %v1036
    %v1341 = vpack.c.b16 %v1045, %v1037
    %v1342 = vpack.c.b16 %v1046, %v1038
    %v1343 = vpack.c.b16 %v1055, %v1047
    %v1344 = vpack.c.b16 %v1056, %v1048
    %v1345 = vpack.c.b16 %v1057, %v1049
    %v1346 = vpack.c.b16 %v1058, %v1050
    %v1347 = vpack.c.b16 %v1059, %v1051
    %v1348 = vpack.c.b16 %v1060, %v1052
    %v1349 = vpack.c.b16 %v1061, %v1053
    %v1350 = vpack.c.b16 %v1062, %v1054
    %v1351 = vpack.c.b16 %v1071, %v1063
    %v1352 = vpack.c.b16 %v1072, %v1064
    %v1353 = vpack.c.b16 %v1073, %v1065
    %v1354 = vpack.c.b16 %v1074, %v1066
    %v1355 = vpack.c.b16 %v1075, %v1067
    %v1356 = vpack.c.b16 %v1076, %v1068
    %v1357 = vpack.c.b16 %v1077, %v1069
    %v1358 = vpack.c.b16 %v1078, %v1070
    %v1359 = vpack.c.b16 %v1087, %v1079
    %v1360 = vpack.c.b16 %v1088, %v1080
    %v1361 = vpack.c.b16 %v1089, %v1081
    %v1362 = vpack.c.b16 %v1090, %v1082
    %v1363 = vpack.c.b16 %v1091, %v1083
    %v1364 = vpack.c.b16 %v1092, %v1084
    %v1365 = vpack.c.b16 %v1093, %v1085
    %v1366 = vpack.c.b16 %v1094, %v1086
    %v1367 = vpack.c.b16 %v1103, %v1095
    %v1368 = vpack.c.b16 %v1104, %v1096
    %v1369 = vpack.c.b16 %v1105, %v1097
    %v1370 = vpack.c.b16 %v1106, %v1098
    %v1371 = vpack.c.b16 %v1107, %v1099
    %v1372 = vpack.c.b16 %v1108, %v1100
    %v1373 = vpack.c.b16 %v1109, %v1101
    %v1374 = vpack.c.b16 %v1110, %v1102
    %v1375 = vpack.c.b16 %v1119, %v1111
    %v1376 = vpack.c.b16 %v1120, %v1112
    %v1377 = vpack.c.b16 %v1121, %v1113
    %v1378 = vpack.c.b16 %v1122, %v1114
    %v1379 = vpack.c.b16 %v1123, %v1115
    %v1380 = vpack.c.b16 %v1124, %v1116
    %v1381 = vpack.c.b16 %v1125, %v1117
    %v1382 = vpack.c.b16 %v1126, %v1118
    %1639 = vmatprep.subr.bf16.mxu0 %v1128
    %1640 = vmatpush1.bf16.msra.mxu0 %v1127
    %1641 = vmatprep.subr.bf16.mxu0 %v1136
    %1642 = vmatpush1.bf16.msra.mxu0 %v1135
    %1643 = vmatprep.subr.bf16.mxu0 %v1144
    %1644 = vmatpush1.bf16.msra.mxu0 %v1143
    %1645 = vmatprep.subr.bf16.mxu0 %v1152
    %1646 = vmatpush1.bf16.msra.mxu0 %v1151
    %1647 = vmatprep.subr.bf16.mxu0 %v1160
    %1648 = vmatpush1.bf16.msra.mxu0 %v1159
    %1649 = vmatprep.subr.bf16.mxu0 %v1168
    %1650 = vmatpush1.bf16.msra.mxu0 %v1167
    %1651 = vmatprep.subr.bf16.mxu0 %v1176
    %1652 = vmatpush1.bf16.msra.mxu0 %v1175
    %1653 = vmatprep.subr.bf16.mxu0 %v1184
    %1654 = vmatpush1.bf16.msra.mxu0 %v1183
    %1655 = vmatprep.subr.bf16.mxu0 %v1192
    %1656 = vmatpush1.bf16.msra.mxu0 %v1191
    %1657 = vmatprep.subr.bf16.mxu0 %v1200
    %1658 = vmatpush1.bf16.msra.mxu0 %v1199
    %1659 = vmatprep.subr.bf16.mxu0 %v1208
    %1660 = vmatpush1.bf16.msra.mxu0 %v1207
    %1661 = vmatprep.subr.bf16.mxu0 %v1216
    %1662 = vmatpush1.bf16.msra.mxu0 %v1215
    %1663 = vmatprep.subr.bf16.mxu0 %v1224
    %1664 = vmatpush1.bf16.msra.mxu0 %v1223
    %1665 = vmatprep.subr.bf16.mxu0 %v1232
    %1666 = vmatpush1.bf16.msra.mxu0 %v1231
    %1667 = vmatprep.subr.bf16.mxu0 %v1240
    %1668 = vmatpush1.bf16.msra.mxu0 %v1239
    %1669 = vmatprep.subr.bf16.mxu0 %v1248
    %1670 = vmatpush1.bf16.msra.mxu0 %v1247
    %1671 = vmatprep.mubr.bf16.mxu0 %v58
    %1672 = vmatmul.mubr.bf16.gmra.mrb[0].mxu0 %v57
    %v1673 = vpop.f32.mrb[0].mxu0
    %v1674 = vadd.f32 %v322, %v1673
    %v1675 = vpop.f32.mrb[0].mxu0
    %v1676 = vadd.f32 %v326, %v1675
    %v1677 = vpop.f32.mrb[0].mxu0
    %v1678 = vadd.f32 %v322, %v1677
    %v1679 = vpop.f32.mrb[0].mxu0
    %v1680 = vadd.f32 %v326, %v1679
    %1681 = vdwg.mxu0
    %1682 = vmatprep.subr.bf16.mxu0 %v1256
    %1683 = vmatpush1.bf16.msra.mxu0 %v1255
    %1684 = vmatprep.subr.bf16.mxu0 %v1264
    %1685 = vmatpush1.bf16.msra.mxu0 %v1263
    %1686 = vmatprep.subr.bf16.mxu0 %v1272
    %1687 = vmatpush1.bf16.msra.mxu0 %v1271
    %1688 = vmatprep.subr.bf16.mxu0 %v1280
    %1689 = vmatpush1.bf16.msra.mxu0 %v1279
    %1690 = vmatprep.subr.bf16.mxu0 %v1288
    %1691 = vmatpush1.bf16.msra.mxu0 %v1287
    %1692 = vmatprep.subr.bf16.mxu0 %v1296
    %1693 = vmatpush1.bf16.msra.mxu0 %v1295
    %1694 = vmatprep.subr.bf16.mxu0 %v1304
    %1695 = vmatpush1.bf16.msra.mxu0 %v1303
    %1696 = vmatprep.subr.bf16.mxu0 %v1312
    %1697 = vmatpush1.bf16.msra.mxu0 %v1311
    %1698 = vmatprep.subr.bf16.mxu0 %v1320
    %1699 = vmatpush1.bf16.msra.mxu0 %v1319
    %1700 = vmatprep.subr.bf16.mxu0 %v1328
    %1701 = vmatpush1.bf16.msra.mxu0 %v1327
    %1702 = vmatprep.subr.bf16.mxu0 %v1336
    %1703 = vmatpush1.bf16.msra.mxu0 %v1335
    %1704 = vmatprep.subr.bf16.mxu0 %v1344
    %1705 = vmatpush1.bf16.msra.mxu0 %v1343
    %1706 = vmatprep.subr.bf16.mxu0 %v1352
    %1707 = vmatpush1.bf16.msra.mxu0 %v1351
    %1708 = vmatprep.subr.bf16.mxu0 %v1360
    %1709 = vmatpush1.bf16.msra.mxu0 %v1359
    %1710 = vmatprep.subr.bf16.mxu0 %v1368
    %1711 = vmatpush1.bf16.msra.mxu0 %v1367
    %1712 = vmatprep.subr.bf16.mxu0 %v1376
    %1713 = vmatpush1.bf16.msra.mxu0 %v1375
    %1714 = vmatprep.mubr.bf16.mxu0 %v60
    %1715 = vmatmul.mubr.bf16.gmra.mrb[0].mxu0 %v59
    %v1716 = vpop.f32.mrb[0].mxu0
    %v1717 = vadd.f32 %v1674, %v1716
    %v1718 = vpop.f32.mrb[0].mxu0
    %v1719 = vadd.f32 %v1676, %v1718
    %v1720 = vpop.f32.mrb[0].mxu0
    %v1721 = vadd.f32 %v1678, %v1720
    %v1722 = vpop.f32.mrb[0].mxu0
    %v1723 = vadd.f32 %v1680, %v1722
    %1724 = vdwg.mxu0
    %1725 = vmatprep.subr.bf16.mxu0 %v1130
    %1726 = vmatpush1.bf16.msra.mxu0 %v1129
    %1727 = vmatprep.subr.bf16.mxu0 %v1138
    %1728 = vmatpush1.bf16.msra.mxu0 %v1137
    %1729 = vmatprep.subr.bf16.mxu0 %v1146
    %1730 = vmatpush1.bf16.msra.mxu0 %v1145
    %1731 = vmatprep.subr.bf16.mxu0 %v1154
    %1732 = vmatpush1.bf16.msra.mxu0 %v1153
    %1733 = vmatprep.subr.bf16.mxu0 %v1162
    %1734 = vmatpush1.bf16.msra.mxu0 %v1161
    %1735 = vmatprep.subr.bf16.mxu0 %v1170
    %1736 = vmatpush1.bf16.msra.mxu0 %v1169
    %1737 = vmatprep.subr.bf16.mxu0 %v1178
    %1738 = vmatpush1.bf16.msra.mxu0 %v1177
    %1739 = vmatprep.subr.bf16.mxu0 %v1186
    %1740 = vmatpush1.bf16.msra.mxu0 %v1185
    %1741 = vmatprep.subr.bf16.mxu0 %v1194
    %1742 = vmatpush1.bf16.msra.mxu0 %v1193
    %1743 = vmatprep.subr.bf16.mxu0 %v1202
    %1744 = vmatpush1.bf16.msra.mxu0 %v1201
    %1745 = vmatprep.subr.bf16.mxu0 %v1210
    %1746 = vmatpush1.bf16.msra.mxu0 %v1209
    %1747 = vmatprep.subr.bf16.mxu0 %v1218
    %1748 = vmatpush1.bf16.msra.mxu0 %v1217
    %1749 = vmatprep.subr.bf16.mxu0 %v1226
    %1750 = vmatpush1.bf16.msra.mxu0 %v1225
    %1751 = vmatprep.subr.bf16.mxu0 %v1234
    %1752 = vmatpush1.bf16.msra.mxu0 %v1233
    %1753 = vmatprep.subr.bf16.mxu0 %v1242
    %1754 = vmatpush1.bf16.msra.mxu0 %v1241
    %1755 = vmatprep.subr.bf16.mxu0 %v1250
    %1756 = vmatpush1.bf16.msra.mxu0 %v1249
    %1757 = vmatprep.mubr.bf16.mxu0 %v58
    %1758 = vmatmul.mubr.bf16.gmra.mrb[0].mxu0 %v57
    %v1759 = vpop.f32.mrb[0].mxu0
    %v1760 = vadd.f32 %v330, %v1759
    %v1761 = vpop.f32.mrb[0].mxu0
    %v1762 = vadd.f32 %v334, %v1761
    %v1763 = vpop.f32.mrb[0].mxu0
    %v1764 = vadd.f32 %v330, %v1763
    %v1765 = vpop.f32.mrb[0].mxu0
    %v1766 = vadd.f32 %v334, %v1765
    %1767 = vdwg.mxu0
    %1768 = vmatprep.subr.bf16.mxu0 %v1258
    %1769 = vmatpush1.bf16.msra.mxu0 %v1257
    %1770 = vmatprep.subr.bf16.mxu0 %v1266
    %1771 = vmatpush1.bf16.msra.mxu0 %v1265
    %1772 = vmatprep.subr.bf16.mxu0 %v1274
    %1773 = vmatpush1.bf16.msra.mxu0 %v1273
    %1774 = vmatprep.subr.bf16.mxu0 %v1282
    %1775 = vmatpush1.bf16.msra.mxu0 %v1281
    %1776 = vmatprep.subr.bf16.mxu0 %v1290
    %1777 = vmatpush1.bf16.msra.mxu0 %v1289
    %1778 = vmatprep.subr.bf16.mxu0 %v1298
    %1779 = vmatpush1.bf16.msra.mxu0 %v1297
    %1780 = vmatprep.subr.bf16.mxu0 %v1306
    %1781 = vmatpush1.bf16.msra.mxu0 %v1305
    %1782 = vmatprep.subr.bf16.mxu0 %v1314
    %1783 = vmatpush1.bf16.msra.mxu0 %v1313
    %1784 = vmatprep.subr.bf16.mxu0 %v1322
    %1785 = vmatpush1.bf16.msra.mxu0 %v1321
    %1786 = vmatprep.subr.bf16.mxu0 %v1330
    %1787 = vmatpush1.bf16.msra.mxu0 %v1329
    %1788 = vmatprep.subr.bf16.mxu0 %v1338
    %1789 = vmatpush1.bf16.msra.mxu0 %v1337
    %1790 = vmatprep.subr.bf16.mxu0 %v1346
    %1791 = vmatpush1.bf16.msra.mxu0 %v1345
    %1792 = vmatprep.subr.bf16.mxu0 %v1354
    %1793 = vmatpush1.bf16.msra.mxu0 %v1353
    %1794 = vmatprep.subr.bf16.mxu0 %v1362
    %1795 = vmatpush1.bf16.msra.mxu0 %v1361
    %1796 = vmatprep.subr.bf16.mxu0 %v1370
    %1797 = vmatpush1.bf16.msra.mxu0 %v1369
    %1798 = vmatprep.subr.bf16.mxu0 %v1378
    %1799 = vmatpush1.bf16.msra.mxu0 %v1377
    %1800 = vmatprep.mubr.bf16.mxu0 %v60
    %1801 = vmatmul.mubr.bf16.gmra.mrb[0].mxu0 %v59
    %v1802 = vpop.f32.mrb[0].mxu0
    %v1803 = vadd.f32 %v1760, %v1802
    %v1804 = vpop.f32.mrb[0].mxu0
    %v1805 = vadd.f32 %v1762, %v1804
    %v1806 = vpop.f32.mrb[0].mxu0
    %v1807 = vadd.f32 %v1764, %v1806
    %v1808 = vpop.f32.mrb[0].mxu0
    %v1809 = vadd.f32 %v1766, %v1808
    %1810 = vdwg.mxu0
    %1811 = vmatprep.subr.bf16.mxu0 %v1132
    %1812 = vmatpush1.bf16.msra.mxu0 %v1131
    %1813 = vmatprep.subr.bf16.mxu0 %v1140
    %1814 = vmatpush1.bf16.msra.mxu0 %v1139
    %1815 = vmatprep.subr.bf16.mxu0 %v1148
    %1816 = vmatpush1.bf16.msra.mxu0 %v1147
    %1817 = vmatprep.subr.bf16.mxu0 %v1156
    %1818 = vmatpush1.bf16.msra.mxu0 %v1155
    %1819 = vmatprep.subr.bf16.mxu0 %v1164
    %1820 = vmatpush1.bf16.msra.mxu0 %v1163
    %1821 = vmatprep.subr.bf16.mxu0 %v1172
    %1822 = vmatpush1.bf16.msra.mxu0 %v1171
    %1823 = vmatprep.subr.bf16.mxu0 %v1180
    %1824 = vmatpush1.bf16.msra.mxu0 %v1179
    %1825 = vmatprep.subr.bf16.mxu0 %v1188
    %1826 = vmatpush1.bf16.msra.mxu0 %v1187
    %1827 = vmatprep.subr.bf16.mxu0 %v1196
    %1828 = vmatpush1.bf16.msra.mxu0 %v1195
    %1829 = vmatprep.subr.bf16.mxu0 %v1204
    %1830 = vmatpush1.bf16.msra.mxu0 %v1203
    %1831 = vmatprep.subr.bf16.mxu0 %v1212
    %1832 = vmatpush1.bf16.msra.mxu0 %v1211
    %1833 = vmatprep.subr.bf16.mxu0 %v1220
    %1834 = vmatpush1.bf16.msra.mxu0 %v1219
    %1835 = vmatprep.subr.bf16.mxu0 %v1228
    %1836 = vmatpush1.bf16.msra.mxu0 %v1227
    %1837 = vmatprep.subr.bf16.mxu0 %v1236
    %1838 = vmatpush1.bf16.msra.mxu0 %v1235
    %1839 = vmatprep.subr.bf16.mxu0 %v1244
    %1840 = vmatpush1.bf16.msra.mxu0 %v1243
    %1841 = vmatprep.subr.bf16.mxu0 %v1252
    %1842 = vmatpush1.bf16.msra.mxu0 %v1251
    %1843 = vmatprep.mubr.bf16.mxu0 %v58
    %1844 = vmatmul.mubr.bf16.gmra.mrb[0].mxu0 %v57
    %v1845 = vpop.f32.mrb[0].mxu0
    %v1846 = vadd.f32 %v338, %v1845
    %v1847 = vpop.f32.mrb[0].mxu0
    %v1848 = vadd.f32 %v342, %v1847
    %v1849 = vpop.f32.mrb[0].mxu0
    %v1850 = vadd.f32 %v338, %v1849
    %v1851 = vpop.f32.mrb[0].mxu0
    %v1852 = vadd.f32 %v342, %v1851
    %1853 = vdwg.mxu0
    %1854 = vmatprep.subr.bf16.mxu0 %v1260
    %1855 = vmatpush1.bf16.msra.mxu0 %v1259
    %1856 = vmatprep.subr.bf16.mxu0 %v1268
    %1857 = vmatpush1.bf16.msra.mxu0 %v1267
    %1858 = vmatprep.subr.bf16.mxu0 %v1276
    %1859 = vmatpush1.bf16.msra.mxu0 %v1275
    %1860 = vmatprep.subr.bf16.mxu0 %v1284
    %1861 = vmatpush1.bf16.msra.mxu0 %v1283
    %1862 = vmatprep.subr.bf16.mxu0 %v1292
    %1863 = vmatpush1.bf16.msra.mxu0 %v1291
    %1864 = vmatprep.subr.bf16.mxu0 %v1300
    %1865 = vmatpush1.bf16.msra.mxu0 %v1299
    %1866 = vmatprep.subr.bf16.mxu0 %v1308
    %1867 = vmatpush1.bf16.msra.mxu0 %v1307
    %1868 = vmatprep.subr.bf16.mxu0 %v1316
    %1869 = vmatpush1.bf16.msra.mxu0 %v1315
    %1870 = vmatprep.subr.bf16.mxu0 %v1324
    %1871 = vmatpush1.bf16.msra.mxu0 %v1323
    %1872 = vmatprep.subr.bf16.mxu0 %v1332
    %1873 = vmatpush1.bf16.msra.mxu0 %v1331
    %1874 = vmatprep.subr.bf16.mxu0 %v1340
    %1875 = vmatpush1.bf16.msra.mxu0 %v1339
    %1876 = vmatprep.subr.bf16.mxu0 %v1348
    %1877 = vmatpush1.bf16.msra.mxu0 %v1347
    %1878 = vmatprep.subr.bf16.mxu0 %v1356
    %1879 = vmatpush1.bf16.msra.mxu0 %v1355
    %1880 = vmatprep.subr.bf16.mxu0 %v1364
    %1881 = vmatpush1.bf16.msra.mxu0 %v1363
    %1882 = vmatprep.subr.bf16.mxu0 %v1372
    %1883 = vmatpush1.bf16.msra.mxu0 %v1371
    %1884 = vmatprep.subr.bf16.mxu0 %v1380
    %1885 = vmatpush1.bf16.msra.mxu0 %v1379
    %1886 = vmatprep.mubr.bf16.mxu0 %v60
    %1887 = vmatmul.mubr.bf16.gmra.mrb[0].mxu0 %v59
    %v1888 = vpop.f32.mrb[0].mxu0
    %v1889 = vadd.f32 %v1846, %v1888
    %v1890 = vpop.f32.mrb[0].mxu0
    %v1891 = vadd.f32 %v1848, %v1890
    %v1892 = vpop.f32.mrb[0].mxu0
    %v1893 = vadd.f32 %v1850, %v1892
    %v1894 = vpop.f32.mrb[0].mxu0
    %v1895 = vadd.f32 %v1852, %v1894
    %1896 = vdwg.mxu0
    %1897 = vmatprep.subr.bf16.mxu0 %v1134
    %1898 = vmatpush1.bf16.msra.mxu0 %v1133
    %1899 = vmatprep.subr.bf16.mxu0 %v1142
    %1900 = vmatpush1.bf16.msra.mxu0 %v1141
    %1901 = vmatprep.subr.bf16.mxu0 %v1150
    %1902 = vmatpush1.bf16.msra.mxu0 %v1149
    %1903 = vmatprep.subr.bf16.mxu0 %v1158
    %1904 = vmatpush1.bf16.msra.mxu0 %v1157
    %1905 = vmatprep.subr.bf16.mxu0 %v1166
    %1906 = vmatpush1.bf16.msra.mxu0 %v1165
    %1907 = vmatprep.subr.bf16.mxu0 %v1174
    %1908 = vmatpush1.bf16.msra.mxu0 %v1173
    %1909 = vmatprep.subr.bf16.mxu0 %v1182
    %1910 = vmatpush1.bf16.msra.mxu0 %v1181
    %1911 = vmatprep.subr.bf16.mxu0 %v1190
    %1912 = vmatpush1.bf16.msra.mxu0 %v1189
    %1913 = vmatprep.subr.bf16.mxu0 %v1198
    %1914 = vmatpush1.bf16.msra.mxu0 %v1197
    %1915 = vmatprep.subr.bf16.mxu0 %v1206
    %1916 = vmatpush1.bf16.msra.mxu0 %v1205
    %1917 = vmatprep.subr.bf16.mxu0 %v1214
    %1918 = vmatpush1.bf16.msra.mxu0 %v1213
    %1919 = vmatprep.subr.bf16.mxu0 %v1222
    %1920 = vmatpush1.bf16.msra.mxu0 %v1221
    %1921 = vmatprep.subr.bf16.mxu0 %v1230
    %1922 = vmatpush1.bf16.msra.mxu0 %v1229
    %1923 = vmatprep.subr.bf16.mxu0 %v1238
    %1924 = vmatpush1.bf16.msra.mxu0 %v1237
    %1925 = vmatprep.subr.bf16.mxu0 %v1246
    %1926 = vmatpush1.bf16.msra.mxu0 %v1245
    %1927 = vmatprep.subr.bf16.mxu0 %v1254
    %1928 = vmatpush1.bf16.msra.mxu0 %v1253
    %1929 = vmatprep.mubr.bf16.mxu0 %v58
    %1930 = vmatmul.mubr.bf16.gmra.mrb[0].mxu0 %v57
    %v1931 = vpop.f32.mrb[0].mxu0
    %v1932 = vadd.f32 %v346, %v1931
    %v1933 = vpop.f32.mrb[0].mxu0
    %v1934 = vadd.f32 %v350, %v1933
    %v1935 = vpop.f32.mrb[0].mxu0
    %v1936 = vadd.f32 %v346, %v1935
    %v1937 = vpop.f32.mrb[0].mxu0
    %v1938 = vadd.f32 %v350, %v1937
    %1939 = vdwg.mxu0
    %1940 = vmatprep.subr.bf16.mxu0 %v1262
    %1941 = vmatpush1.bf16.msra.mxu0 %v1261
    %1942 = vmatprep.subr.bf16.mxu0 %v1270
    %1943 = vmatpush1.bf16.msra.mxu0 %v1269
    %1944 = vmatprep.subr.bf16.mxu0 %v1278
    %1945 = vmatpush1.bf16.msra.mxu0 %v1277
    %1946 = vmatprep.subr.bf16.mxu0 %v1286
    %1947 = vmatpush1.bf16.msra.mxu0 %v1285
    %1948 = vmatprep.subr.bf16.mxu0 %v1294
    %1949 = vmatpush1.bf16.msra.mxu0 %v1293
    %1950 = vmatprep.subr.bf16.mxu0 %v1302
    %1951 = vmatpush1.bf16.msra.mxu0 %v1301
    %1952 = vmatprep.subr.bf16.mxu0 %v1310
    %1953 = vmatpush1.bf16.msra.mxu0 %v1309
    %1954 = vmatprep.subr.bf16.mxu0 %v1318
    %1955 = vmatpush1.bf16.msra.mxu0 %v1317
    %1956 = vmatprep.subr.bf16.mxu0 %v1326
    %1957 = vmatpush1.bf16.msra.mxu0 %v1325
    %1958 = vmatprep.subr.bf16.mxu0 %v1334
    %1959 = vmatpush1.bf16.msra.mxu0 %v1333
    %1960 = vmatprep.subr.bf16.mxu0 %v1342
    %1961 = vmatpush1.bf16.msra.mxu0 %v1341
    %1962 = vmatprep.subr.bf16.mxu0 %v1350
    %1963 = vmatpush1.bf16.msra.mxu0 %v1349
    %1964 = vmatprep.subr.bf16.mxu0 %v1358
    %1965 = vmatpush1.bf16.msra.mxu0 %v1357
    %1966 = vmatprep.subr.bf16.mxu0 %v1366
    %1967 = vmatpush1.bf16.msra.mxu0 %v1365
    %1968 = vmatprep.subr.bf16.mxu0 %v1374
    %1969 = vmatpush1.bf16.msra.mxu0 %v1373
    %1970 = vmatprep.subr.bf16.mxu0 %v1382
    %1971 = vmatpush1.bf16.msra.mxu0 %v1381
    %1972 = vmatprep.mubr.bf16.mxu0 %v60
    %1973 = vmatmul.mubr.bf16.gmra.mrb[0].mxu0 %v59
    %v1974 = vpop.f32.mrb[0].mxu0
    %v1975 = vadd.f32 %v1932, %v1974
    %v1976 = vpop.f32.mrb[0].mxu0
    %v1977 = vadd.f32 %v1934, %v1976
    %v1978 = vpop.f32.mrb[0].mxu0
    %v1979 = vadd.f32 %v1936, %v1978
    %v1980 = vpop.f32.mrb[0].mxu0
    %v1981 = vadd.f32 %v1938, %v1980
    %1982 = vdwg.mxu0
    %v1983 = vld [vmem:[%s3] sm:$0xff]
    %v1984 = vld [vmem:[%s4] sm:$0xff]
    %1985 = vmatprep.subr.mxu0 %v50
    %1986 = vmatpush1.xpose.msra.mxu0 %v49
    %1987 = vmatprep.subr.mxu0 0.0
    %1988 = vmatpush1.xpose.msra.mxu0 0.0
    %1989 = vmatprep.subr.mxu0 0.0
    %1990 = vmatpush1.xpose.msra.mxu0 0.0
    %1991 = vmatprep.subr.mxu0 0.0
    %1992 = vmatpush1.xpose.msra.mxu0 0.0
    %1993 = vmatprep.subr.mxu0 0.0
    %1994 = vmatpush1.xpose.msra.mxu0 0.0
    %1995 = vmatprep.subr.mxu0 0.0
    %1996 = vmatpush1.xpose.msra.mxu0 0.0
    %1997 = vmatprep.subr.mxu0 0.0
    %1998 = vmatpush1.xpose.msra.mxu0 0.0
    %1999 = vmatprep.subr.mxu0 0.0
    %2000 = vmatpush1.xpose.msra.mxu0 0.0
    %2001 = vmatprep.subr.mxu0 0.0
    %2002 = vmatpush1.xpose.msra.mxu0 0.0
    %2003 = vmatprep.subr.mxu0 0.0
    %2004 = vmatpush1.xpose.msra.mxu0 0.0
    %2005 = vmatprep.subr.mxu0 0.0
    %2006 = vmatpush1.xpose.msra.mxu0 0.0
    %2007 = vmatprep.subr.mxu0 0.0
    %2008 = vmatpush1.xpose.msra.mxu0 0.0
    %2009 = vmatprep.subr.mxu0 0.0
    %2010 = vmatpush1.xpose.msra.mxu0 0.0
    %2011 = vmatprep.subr.mxu0 0.0
    %2012 = vmatpush1.xpose.msra.mxu0 0.0
    %2013 = vmatprep.subr.mxu0 0.0
    %2014 = vmatpush1.xpose.msra.mxu0 0.0
    %2015 = vmatprep.subr.mxu0 0.0
    %2016 = vmatpush1.xpose.msra.mxu0 0.0
    %2017 = vmatprep.subr.mxu0 0.0
    %2018 = vmatpush1.xpose.msra.mxu0 0.0
    %2019 = vmatprep.subr.mxu0 0.0
    %2020 = vmatpush1.xpose.msra.mxu0 0.0
    %2021 = vmatprep.subr.mxu0 0.0
    %2022 = vmatpush1.xpose.msra.mxu0 0.0
    %2023 = vmatprep.subr.mxu0 0.0
    %2024 = vmatpush1.xpose.msra.mxu0 0.0
    %2025 = vmatprep.subr.mxu0 0.0
    %2026 = vmatpush1.xpose.msra.mxu0 0.0
    %2027 = vmatprep.subr.mxu0 0.0
    %2028 = vmatpush1.xpose.msra.mxu0 0.0
    %2029 = vmatprep.subr.mxu0 0.0
    %2030 = vmatpush1.xpose.msra.mxu0 0.0
    %2031 = vmatprep.subr.mxu0 0.0
    %2032 = vmatpush1.xpose.msra.mxu0 0.0
    %2033 = vmatprep.subr.mxu0 0.0
    %2034 = vmatpush1.xpose.msra.mxu0 0.0
    %2035 = vmatprep.subr.mxu0 0.0
    %2036 = vmatpush1.xpose.msra.mxu0 0.0
    %2037 = vmatprep.subr.mxu0 0.0
    %2038 = vmatpush1.xpose.msra.mxu0 0.0
    %2039 = vmatprep.subr.mxu0 0.0
    %2040 = vmatpush1.xpose.msra.mxu0 0.0
    %2041 = vmatprep.subr.mxu0 0.0
    %2042 = vmatpush1.xpose.msra.mxu0 0.0
    %2043 = vmatprep.subr.mxu0 0.0
    %2044 = vmatpush1.xpose.msra.mxu0 0.0
    %2045 = vmatprep.subr.mxu0 0.0
    %2046 = vmatpush1.xpose.msra.mxu0 0.0
    %2047 = vmatprep.subr.mxu0 0.0
    %2048 = vmatpush1.xpose.msra.mxu0 0.0
    %2049 = vmatprep.mubr.f32.mxu0 %v50
    %2050 = vmatmul.mubr.f32.gmra.mrb[0].mxu0 %v49
    %v2051 = vpop.f32.mrb[0].mxu0
    %v2052 = vadd.f32 0.0, %v2051
    %v2053 = vpop.f32.mrb[0].mxu0
    %2054 = vdwg.mxu0
    %2055 = vmatprep.subr.mxu0 %v52
    %2056 = vmatpush1.xpose.msra.mxu0 %v51
    %2057 = vmatprep.subr.mxu0 0.0
    %2058 = vmatpush1.xpose.msra.mxu0 0.0
    %2059 = vmatprep.subr.mxu0 0.0
    %2060 = vmatpush1.xpose.msra.mxu0 0.0
    %2061 = vmatprep.subr.mxu0 0.0
    %2062 = vmatpush1.xpose.msra.mxu0 0.0
    %2063 = vmatprep.subr.mxu0 0.0
    %2064 = vmatpush1.xpose.msra.mxu0 0.0
    %2065 = vmatprep.subr.mxu0 0.0
    %2066 = vmatpush1.xpose.msra.mxu0 0.0
    %2067 = vmatprep.subr.mxu0 0.0
    %2068 = vmatpush1.xpose.msra.mxu0 0.0
    %2069 = vmatprep.subr.mxu0 0.0
    %2070 = vmatpush1.xpose.msra.mxu0 0.0
    %2071 = vmatprep.subr.mxu0 0.0
    %2072 = vmatpush1.xpose.msra.mxu0 0.0
    %2073 = vmatprep.subr.mxu0 0.0
    %2074 = vmatpush1.xpose.msra.mxu0 0.0
    %2075 = vmatprep.subr.mxu0 0.0
    %2076 = vmatpush1.xpose.msra.mxu0 0.0
    %2077 = vmatprep.subr.mxu0 0.0
    %2078 = vmatpush1.xpose.msra.mxu0 0.0
    %2079 = vmatprep.subr.mxu0 0.0
    %2080 = vmatpush1.xpose.msra.mxu0 0.0
    %2081 = vmatprep.subr.mxu0 0.0
    %2082 = vmatpush1.xpose.msra.mxu0 0.0
    %2083 = vmatprep.subr.mxu0 0.0
    %2084 = vmatpush1.xpose.msra.mxu0 0.0
    %2085 = vmatprep.subr.mxu0 0.0
    %2086 = vmatpush1.xpose.msra.mxu0 0.0
    %2087 = vmatprep.subr.mxu0 0.0
    %2088 = vmatpush1.xpose.msra.mxu0 0.0
    %2089 = vmatprep.subr.mxu0 0.0
    %2090 = vmatpush1.xpose.msra.mxu0 0.0
    %2091 = vmatprep.subr.mxu0 0.0
    %2092 = vmatpush1.xpose.msra.mxu0 0.0
    %2093 = vmatprep.subr.mxu0 0.0
    %2094 = vmatpush1.xpose.msra.mxu0 0.0
    %2095 = vmatprep.subr.mxu0 0.0
    %2096 = vmatpush1.xpose.msra.mxu0 0.0
    %2097 = vmatprep.subr.mxu0 0.0
    %2098 = vmatpush1.xpose.msra.mxu0 0.0
    %2099 = vmatprep.subr.mxu0 0.0
    %2100 = vmatpush1.xpose.msra.mxu0 0.0
    %2101 = vmatprep.subr.mxu0 0.0
    %2102 = vmatpush1.xpose.msra.mxu0 0.0
    %2103 = vmatprep.subr.mxu0 0.0
    %2104 = vmatpush1.xpose.msra.mxu0 0.0
    %2105 = vmatprep.subr.mxu0 0.0
    %2106 = vmatpush1.xpose.msra.mxu0 0.0
    %2107 = vmatprep.subr.mxu0 0.0
    %2108 = vmatpush1.xpose.msra.mxu0 0.0
    %2109 = vmatprep.subr.mxu0 0.0
    %2110 = vmatpush1.xpose.msra.mxu0 0.0
    %2111 = vmatprep.subr.mxu0 0.0
    %2112 = vmatpush1.xpose.msra.mxu0 0.0
    %2113 = vmatprep.subr.mxu0 0.0
    %2114 = vmatpush1.xpose.msra.mxu0 0.0
    %2115 = vmatprep.subr.mxu0 0.0
    %2116 = vmatpush1.xpose.msra.mxu0 0.0
    %2117 = vmatprep.subr.mxu0 0.0
    %2118 = vmatpush1.xpose.msra.mxu0 0.0
    %2119 = vmatprep.mubr.f32.mxu0 %v52
    %2120 = vmatmul.mubr.f32.gmra.mrb[0].mxu0 %v51
    %v2121 = vpop.f32.mrb[0].mxu0
    %v2122 = vadd.f32 %v2052, %v2121
    %v2123 = vpop.f32.mrb[0].mxu0
    %2124 = vdwg.mxu0
    %2125 = vmatprep.subr.mxu0 %v54
    %2126 = vmatpush1.xpose.msra.mxu0 %v53
    %2127 = vmatprep.subr.mxu0 0.0
    %2128 = vmatpush1.xpose.msra.mxu0 0.0
    %2129 = vmatprep.subr.mxu0 0.0
    %2130 = vmatpush1.xpose.msra.mxu0 0.0
    %2131 = vmatprep.subr.mxu0 0.0
    %2132 = vmatpush1.xpose.msra.mxu0 0.0
    %2133 = vmatprep.subr.mxu0 0.0
    %2134 = vmatpush1.xpose.msra.mxu0 0.0
    %2135 = vmatprep.subr.mxu0 0.0
    %2136 = vmatpush1.xpose.msra.mxu0 0.0
    %2137 = vmatprep.subr.mxu0 0.0
    %2138 = vmatpush1.xpose.msra.mxu0 0.0
    %2139 = vmatprep.subr.mxu0 0.0
    %2140 = vmatpush1.xpose.msra.mxu0 0.0
    %2141 = vmatprep.subr.mxu0 0.0
    %2142 = vmatpush1.xpose.msra.mxu0 0.0
    %2143 = vmatprep.subr.mxu0 0.0
    %2144 = vmatpush1.xpose.msra.mxu0 0.0
    %2145 = vmatprep.subr.mxu0 0.0
    %2146 = vmatpush1.xpose.msra.mxu0 0.0
    %2147 = vmatprep.subr.mxu0 0.0
    %2148 = vmatpush1.xpose.msra.mxu0 0.0
    %2149 = vmatprep.subr.mxu0 0.0
    %2150 = vmatpush1.xpose.msra.mxu0 0.0
    %2151 = vmatprep.subr.mxu0 0.0
    %2152 = vmatpush1.xpose.msra.mxu0 0.0
    %2153 = vmatprep.subr.mxu0 0.0
    %2154 = vmatpush1.xpose.msra.mxu0 0.0
    %2155 = vmatprep.subr.mxu0 0.0
    %2156 = vmatpush1.xpose.msra.mxu0 0.0
    %2157 = vmatprep.subr.mxu0 0.0
    %2158 = vmatpush1.xpose.msra.mxu0 0.0
    %2159 = vmatprep.subr.mxu0 0.0
    %2160 = vmatpush1.xpose.msra.mxu0 0.0
    %2161 = vmatprep.subr.mxu0 0.0
    %2162 = vmatpush1.xpose.msra.mxu0 0.0
    %2163 = vmatprep.subr.mxu0 0.0
    %2164 = vmatpush1.xpose.msra.mxu0 0.0
    %2165 = vmatprep.subr.mxu0 0.0
    %2166 = vmatpush1.xpose.msra.mxu0 0.0
    %2167 = vmatprep.subr.mxu0 0.0
    %2168 = vmatpush1.xpose.msra.mxu0 0.0
    %2169 = vmatprep.subr.mxu0 0.0
    %2170 = vmatpush1.xpose.msra.mxu0 0.0
    %2171 = vmatprep.subr.mxu0 0.0
    %2172 = vmatpush1.xpose.msra.mxu0 0.0
    %2173 = vmatprep.subr.mxu0 0.0
    %2174 = vmatpush1.xpose.msra.mxu0 0.0
    %2175 = vmatprep.subr.mxu0 0.0
    %2176 = vmatpush1.xpose.msra.mxu0 0.0
    %2177 = vmatprep.subr.mxu0 0.0
    %2178 = vmatpush1.xpose.msra.mxu0 0.0
    %2179 = vmatprep.subr.mxu0 0.0
    %2180 = vmatpush1.xpose.msra.mxu0 0.0
    %2181 = vmatprep.subr.mxu0 0.0
    %2182 = vmatpush1.xpose.msra.mxu0 0.0
    %2183 = vmatprep.subr.mxu0 0.0
    %2184 = vmatpush1.xpose.msra.mxu0 0.0
    %2185 = vmatprep.subr.mxu0 0.0
    %2186 = vmatpush1.xpose.msra.mxu0 0.0
    %2187 = vmatprep.subr.mxu0 0.0
    %2188 = vmatpush1.xpose.msra.mxu0 0.0
    %2189 = vmatprep.mubr.f32.mxu0 %v54
    %2190 = vmatmul.mubr.f32.gmra.mrb[0].mxu0 %v53
    %v2191 = vpop.f32.mrb[0].mxu0
    %v2192 = vadd.f32 0.0, %v2191
    %v2193 = vpop.f32.mrb[0].mxu0
    %2194 = vdwg.mxu0
    %2195 = vmatprep.subr.mxu0 %v56
    %2196 = vmatpush1.xpose.msra.mxu0 %v55
    %2197 = vmatprep.subr.mxu0 0.0
    %2198 = vmatpush1.xpose.msra.mxu0 0.0
    %2199 = vmatprep.subr.mxu0 0.0
    %2200 = vmatpush1.xpose.msra.mxu0 0.0
    %2201 = vmatprep.subr.mxu0 0.0
    %2202 = vmatpush1.xpose.msra.mxu0 0.0
    %2203 = vmatprep.subr.mxu0 0.0
    %2204 = vmatpush1.xpose.msra.mxu0 0.0
    %2205 = vmatprep.subr.mxu0 0.0
    %2206 = vmatpush1.xpose.msra.mxu0 0.0
    %2207 = vmatprep.subr.mxu0 0.0
    %2208 = vmatpush1.xpose.msra.mxu0 0.0
    %2209 = vmatprep.subr.mxu0 0.0
    %2210 = vmatpush1.xpose.msra.mxu0 0.0
    %2211 = vmatprep.subr.mxu0 0.0
    %2212 = vmatpush1.xpose.msra.mxu0 0.0
    %2213 = vmatprep.subr.mxu0 0.0
    %2214 = vmatpush1.xpose.msra.mxu0 0.0
    %2215 = vmatprep.subr.mxu0 0.0
    %2216 = vmatpush1.xpose.msra.mxu0 0.0
    %2217 = vmatprep.subr.mxu0 0.0
    %2218 = vmatpush1.xpose.msra.mxu0 0.0
    %2219 = vmatprep.subr.mxu0 0.0
    %2220 = vmatpush1.xpose.msra.mxu0 0.0
    %2221 = vmatprep.subr.mxu0 0.0
    %2222 = vmatpush1.xpose.msra.mxu0 0.0
    %2223 = vmatprep.subr.mxu0 0.0
    %2224 = vmatpush1.xpose.msra.mxu0 0.0
    %2225 = vmatprep.subr.mxu0 0.0
    %2226 = vmatpush1.xpose.msra.mxu0 0.0
    %2227 = vmatprep.subr.mxu0 0.0
    %2228 = vmatpush1.xpose.msra.mxu0 0.0
    %2229 = vmatprep.subr.mxu0 0.0
    %2230 = vmatpush1.xpose.msra.mxu0 0.0
    %2231 = vmatprep.subr.mxu0 0.0
    %2232 = vmatpush1.xpose.msra.mxu0 0.0
    %2233 = vmatprep.subr.mxu0 0.0
    %2234 = vmatpush1.xpose.msra.mxu0 0.0
    %2235 = vmatprep.subr.mxu0 0.0
    %2236 = vmatpush1.xpose.msra.mxu0 0.0
    %2237 = vmatprep.subr.mxu0 0.0
    %2238 = vmatpush1.xpose.msra.mxu0 0.0
    %2239 = vmatprep.subr.mxu0 0.0
    %2240 = vmatpush1.xpose.msra.mxu0 0.0
    %2241 = vmatprep.subr.mxu0 0.0
    %2242 = vmatpush1.xpose.msra.mxu0 0.0
    %2243 = vmatprep.subr.mxu0 0.0
    %2244 = vmatpush1.xpose.msra.mxu0 0.0
    %2245 = vmatprep.subr.mxu0 0.0
    %2246 = vmatpush1.xpose.msra.mxu0 0.0
    %2247 = vmatprep.subr.mxu0 0.0
    %2248 = vmatpush1.xpose.msra.mxu0 0.0
    %2249 = vmatprep.subr.mxu0 0.0
    %2250 = vmatpush1.xpose.msra.mxu0 0.0
    %2251 = vmatprep.subr.mxu0 0.0
    %2252 = vmatpush1.xpose.msra.mxu0 0.0
    %2253 = vmatprep.subr.mxu0 0.0
    %2254 = vmatpush1.xpose.msra.mxu0 0.0
    %2255 = vmatprep.subr.mxu0 0.0
    %2256 = vmatpush1.xpose.msra.mxu0 0.0
    %2257 = vmatprep.subr.mxu0 0.0
    %2258 = vmatpush1.xpose.msra.mxu0 0.0
    %2259 = vmatprep.mubr.f32.mxu0 %v56
    %2260 = vmatmul.mubr.f32.gmra.mrb[0].mxu0 %v55
    %v2261 = vpop.f32.mrb[0].mxu0
    %v2262 = vadd.f32 %v2192, %v2261
    %v2263 = vpop.f32.mrb[0].mxu0
    %2264 = vdwg.mxu0
    %v2267 = vcombine.high %v2122, %v2122
    %v2269 = vunpack.c.l.s4 1966171168
    %v2270 = vunpack.c.0.s8 %v2269
    %v2271 = vlaneseq
    %v2272 = vshrl.u32 %v2271, 7
    %v2273 = vsub.s32 %v2270, %v2272
    %v2274 = vrot.slane %v2122, %v2273
    %v2276 = vunpack.c.l.s4 1966171168
    %v2277 = vunpack.c.0.s8 %v2276
    %v2278 = vlaneseq
    %v2279 = vshrl.u32 %v2278, 7
    %v2280 = vsub.s32 %v2277, %v2279
    %v2281 = vrot.slane %v2267, %v2280
    %v2282 = vcombine.high %v2274, %v2274
    %v2283 = vcombine.high %v2281, %v2281
    %v2285 = vunpack.c.l.s4 1966171168
    %v2286 = vunpack.c.0.s8 %v2285
    %v2287 = vlaneseq
    %v2288 = vshrl.u32 %v2287, 7
    %v2289 = vsub.s32 %v2286, %v2288
    %v2290 = vrot.slane %v2274, %v2289
    %v2292 = vunpack.c.l.s4 1966171168
    %v2293 = vunpack.c.0.s8 %v2292
    %v2294 = vlaneseq
    %v2295 = vshrl.u32 %v2294, 7
    %v2296 = vsub.s32 %v2293, %v2295
    %v2297 = vrot.slane %v2281, %v2296
    %v2299 = vunpack.c.l.s4 1966171168
    %v2300 = vunpack.c.0.s8 %v2299
    %v2301 = vlaneseq
    %v2302 = vshrl.u32 %v2301, 7
    %v2303 = vsub.s32 %v2300, %v2302
    %v2304 = vrot.slane %v2282, %v2303
    %v2306 = vunpack.c.l.s4 1966171168
    %v2307 = vunpack.c.0.s8 %v2306
    %v2308 = vlaneseq
    %v2309 = vshrl.u32 %v2308, 7
    %v2310 = vsub.s32 %v2307, %v2309
    %v2311 = vrot.slane %v2283, %v2310
    %v2312 = vcombine.high %v2290, %v2290
    %v2313 = vcombine.high %v2297, %v2297
    %v2314 = vcombine.high %v2304, %v2304
    %v2315 = vcombine.high %v2311, %v2311
    %v2316 = vcombine.high %v2262, %v2262
    %v2318 = vunpack.c.l.s4 1966171168
    %v2319 = vunpack.c.0.s8 %v2318
    %v2320 = vlaneseq
    %v2321 = vshrl.u32 %v2320, 7
    %v2322 = vsub.s32 %v2319, %v2321
    %v2323 = vrot.slane %v2262, %v2322
    %v2325 = vunpack.c.l.s4 1966171168
    %v2326 = vunpack.c.0.s8 %v2325
    %v2327 = vlaneseq
    %v2328 = vshrl.u32 %v2327, 7
    %v2329 = vsub.s32 %v2326, %v2328
    %v2330 = vrot.slane %v2316, %v2329
    %v2331 = vcombine.high %v2323, %v2323
    %v2332 = vcombine.high %v2330, %v2330
    %v2334 = vunpack.c.l.s4 1966171168
    %v2335 = vunpack.c.0.s8 %v2334
    %v2336 = vlaneseq
    %v2337 = vshrl.u32 %v2336, 7
    %v2338 = vsub.s32 %v2335, %v2337
    %v2339 = vrot.slane %v2323, %v2338
    %v2341 = vunpack.c.l.s4 1966171168
    %v2342 = vunpack.c.0.s8 %v2341
    %v2343 = vlaneseq
    %v2344 = vshrl.u32 %v2343, 7
    %v2345 = vsub.s32 %v2342, %v2344
    %v2346 = vrot.slane %v2330, %v2345
    %v2348 = vunpack.c.l.s4 1966171168
    %v2349 = vunpack.c.0.s8 %v2348
    %v2350 = vlaneseq
    %v2351 = vshrl.u32 %v2350, 7
    %v2352 = vsub.s32 %v2349, %v2351
    %v2353 = vrot.slane %v2331, %v2352
    %v2355 = vunpack.c.l.s4 1966171168
    %v2356 = vunpack.c.0.s8 %v2355
    %v2357 = vlaneseq
    %v2358 = vshrl.u32 %v2357, 7
    %v2359 = vsub.s32 %v2356, %v2358
    %v2360 = vrot.slane %v2332, %v2359
    %v2361 = vcombine.high %v2339, %v2339
    %v2362 = vcombine.high %v2346, %v2346
    %v2363 = vcombine.high %v2353, %v2353
    %v2364 = vcombine.high %v2360, %v2360
    %v2365 = vlaneseq
    %v2366 = vshrl.u32 %v2365, 7
    %v2367 = vsub.s32 0, %v2366
    %v2368 = vrot.slane %v2122, %v2367
    %2370 = vbcast.lane.b32.xlu0 %v2368, 256
    %v2371 = vpop.permute.xlu0 %2370
    %v2372 = vlaneseq
    %v2373 = vshrl.u32 %v2372, 7
    %v2374 = vsub.s32 1, %v2373
    %v2375 = vrot.slane %v2122, %v2374
    %2377 = vbcast.lane.b32.xlu0 %v2375, 256
    %v2378 = vpop.permute.xlu0 %2377
    %v2379 = vlaneseq
    %v2380 = vshrl.u32 %v2379, 7
    %v2381 = vsub.s32 2, %v2380
    %v2382 = vrot.slane %v2122, %v2381
    %2384 = vbcast.lane.b32.xlu0 %v2382, 256
    %v2385 = vpop.permute.xlu0 %2384
    %v2386 = vlaneseq
    %v2387 = vshrl.u32 %v2386, 7
    %v2388 = vsub.s32 3, %v2387
    %v2389 = vrot.slane %v2122, %v2388
    %2391 = vbcast.lane.b32.xlu0 %v2389, 256
    %v2392 = vpop.permute.xlu0 %2391
    %v2393 = vlaneseq
    %v2394 = vshrl.u32 %v2393, 7
    %v2395 = vsub.s32 4, %v2394
    %v2396 = vrot.slane %v2122, %v2395
    %2398 = vbcast.lane.b32.xlu0 %v2396, 256
    %v2399 = vpop.permute.xlu0 %2398
    %v2400 = vlaneseq
    %v2401 = vshrl.u32 %v2400, 7
    %v2402 = vsub.s32 5, %v2401
    %v2403 = vrot.slane %v2122, %v2402
    %2405 = vbcast.lane.b32.xlu0 %v2403, 256
    %v2406 = vpop.permute.xlu0 %2405
    %v2407 = vlaneseq
    %v2408 = vshrl.u32 %v2407, 7
    %v2409 = vsub.s32 6, %v2408
    %v2410 = vrot.slane %v2122, %v2409
    %2412 = vbcast.lane.b32.xlu0 %v2410, 256
    %v2413 = vpop.permute.xlu0 %2412
    %v2414 = vlaneseq
    %v2415 = vshrl.u32 %v2414, 7
    %v2416 = vsub.s32 7, %v2415
    %v2417 = vrot.slane %v2122, %v2416
    %2419 = vbcast.lane.b32.xlu0 %v2417, 256
    %v2420 = vpop.permute.xlu0 %2419
    %v2421 = vlaneseq
    %v2422 = vshrl.u32 %v2421, 7
    %v2423 = vsub.s32 0, %v2422
    %v2424 = vrot.slane %v2262, %v2423
    %2426 = vbcast.lane.b32.xlu0 %v2424, 256
    %v2427 = vpop.permute.xlu0 %2426
    %v2428 = vlaneseq
    %v2429 = vshrl.u32 %v2428, 7
    %v2430 = vsub.s32 1, %v2429
    %v2431 = vrot.slane %v2262, %v2430
    %2433 = vbcast.lane.b32.xlu0 %v2431, 256
    %v2434 = vpop.permute.xlu0 %2433
    %v2435 = vlaneseq
    %v2436 = vshrl.u32 %v2435, 7
    %v2437 = vsub.s32 2, %v2436
    %v2438 = vrot.slane %v2262, %v2437
    %2440 = vbcast.lane.b32.xlu0 %v2438, 256
    %v2441 = vpop.permute.xlu0 %2440
    %v2442 = vlaneseq
    %v2443 = vshrl.u32 %v2442, 7
    %v2444 = vsub.s32 3, %v2443
    %v2445 = vrot.slane %v2262, %v2444
    %2447 = vbcast.lane.b32.xlu0 %v2445, 256
    %v2448 = vpop.permute.xlu0 %2447
    %v2449 = vlaneseq
    %v2450 = vshrl.u32 %v2449, 7
    %v2451 = vsub.s32 4, %v2450
    %v2452 = vrot.slane %v2262, %v2451
    %2454 = vbcast.lane.b32.xlu0 %v2452, 256
    %v2455 = vpop.permute.xlu0 %2454
    %v2456 = vlaneseq
    %v2457 = vshrl.u32 %v2456, 7
    %v2458 = vsub.s32 5, %v2457
    %v2459 = vrot.slane %v2262, %v2458
    %2461 = vbcast.lane.b32.xlu0 %v2459, 256
    %v2462 = vpop.permute.xlu0 %2461
    %v2463 = vlaneseq
    %v2464 = vshrl.u32 %v2463, 7
    %v2465 = vsub.s32 6, %v2464
    %v2466 = vrot.slane %v2262, %v2465
    %2468 = vbcast.lane.b32.xlu0 %v2466, 256
    %v2469 = vpop.permute.xlu0 %2468
    %v2470 = vlaneseq
    %v2471 = vshrl.u32 %v2470, 7
    %v2472 = vsub.s32 7, %v2471
    %v2473 = vrot.slane %v2262, %v2472
    %2475 = vbcast.lane.b32.xlu0 %v2473, 256
    %v2476 = vpop.permute.xlu0 %2475
    %v2477 = vlaneseq
    %v2478 = vshrl.u32 %v2477, 7
    %v2479 = vsub.s32 0, %v2478
    %v2480 = vrot.slane %v2290, %v2479
    %v2481 = vlaneseq
    %v2482 = vshrl.u32 %v2481, 7
    %v2483 = vsub.s32 0, %v2482
    %v2484 = vrot.slane %v2304, %v2483
    %v2485 = vlaneseq
    %v2486 = vshrl.u32 %v2485, 7
    %v2487 = vsub.s32 0, %v2486
    %v2488 = vrot.slane %v2312, %v2487
    %v2489 = vlaneseq
    %v2490 = vshrl.u32 %v2489, 7
    %v2491 = vsub.s32 0, %v2490
    %v2492 = vrot.slane %v2314, %v2491
    %v2493 = vlaneseq
    %v2494 = vshrl.u32 %v2493, 7
    %v2495 = vsub.s32 0, %v2494
    %v2496 = vrot.slane %v2297, %v2495
    %v2497 = vlaneseq
    %v2498 = vshrl.u32 %v2497, 7
    %v2499 = vsub.s32 0, %v2498
    %v2500 = vrot.slane %v2311, %v2499
    %v2501 = vlaneseq
    %v2502 = vshrl.u32 %v2501, 7
    %v2503 = vsub.s32 0, %v2502
    %v2504 = vrot.slane %v2313, %v2503
    %v2505 = vlaneseq
    %v2506 = vshrl.u32 %v2505, 7
    %v2507 = vsub.s32 0, %v2506
    %v2508 = vrot.slane %v2315, %v2507
    %v2509 = vlaneseq
    %v2510 = vshrl.u32 %v2509, 7
    %v2511 = vsub.s32 0, %v2510
    %v2512 = vrot.slane %v2339, %v2511
    %v2513 = vlaneseq
    %v2514 = vshrl.u32 %v2513, 7
    %v2515 = vsub.s32 0, %v2514
    %v2516 = vrot.slane %v2353, %v2515
    %v2517 = vlaneseq
    %v2518 = vshrl.u32 %v2517, 7
    %v2519 = vsub.s32 0, %v2518
    %v2520 = vrot.slane %v2361, %v2519
    %v2521 = vlaneseq
    %v2522 = vshrl.u32 %v2521, 7
    %v2523 = vsub.s32 0, %v2522
    %v2524 = vrot.slane %v2363, %v2523
    %v2525 = vlaneseq
    %v2526 = vshrl.u32 %v2525, 7
    %v2527 = vsub.s32 0, %v2526
    %v2528 = vrot.slane %v2346, %v2527
    %v2529 = vlaneseq
    %v2530 = vshrl.u32 %v2529, 7
    %v2531 = vsub.s32 0, %v2530
    %v2532 = vrot.slane %v2360, %v2531
    %v2533 = vlaneseq
    %v2534 = vshrl.u32 %v2533, 7
    %v2535 = vsub.s32 0, %v2534
    %v2536 = vrot.slane %v2362, %v2535
    %v2537 = vlaneseq
    %v2538 = vshrl.u32 %v2537, 7
    %v2539 = vsub.s32 0, %v2538
    %v2540 = vrot.slane %v2364, %v2539
    %vm2557 = vcmp.ge.f32.partialorder %v2480, %v2371
    %vm2558 = vcmp.ge.f32.partialorder %v2484, %v2378
    %vm2559 = vcmp.ge.f32.partialorder %v2488, %v2385
    %vm2560 = vcmp.ge.f32.partialorder %v2492, %v2392
    %vm2561 = vcmp.ge.f32.partialorder %v2496, %v2399
    %vm2562 = vcmp.ge.f32.partialorder %v2500, %v2406
    %vm2563 = vcmp.ge.f32.partialorder %v2504, %v2413
    %vm2564 = vcmp.ge.f32.partialorder %v2508, %v2420
    %vm2565 = vcmp.ge.f32.partialorder %v2512, %v2427
    %vm2566 = vcmp.ge.f32.partialorder %v2516, %v2434
    %vm2567 = vcmp.ge.f32.partialorder %v2520, %v2441
    %vm2568 = vcmp.ge.f32.partialorder %v2524, %v2448
    %vm2569 = vcmp.ge.f32.partialorder %v2528, %v2455
    %vm2570 = vcmp.ge.f32.partialorder %v2532, %v2462
    %vm2571 = vcmp.ge.f32.partialorder %v2536, %v2469
    %vm2572 = vcmp.ge.f32.partialorder %v2540, %v2476
    %v2573 = vsel %vm2557, 1, 0
    %v2574 = vsel %vm2558, 1, 0
    %v2575 = vsel %vm2559, 1, 0
    %v2576 = vsel %vm2560, 1, 0
    %v2577 = vsel %vm2561, 1, 0
    %v2578 = vsel %vm2562, 1, 0
    %v2579 = vsel %vm2563, 1, 0
    %v2580 = vsel %vm2564, 1, 0
    %v2581 = vsel %vm2565, 1, 0
    %v2582 = vsel %vm2566, 1, 0
    %v2583 = vsel %vm2567, 1, 0
    %v2584 = vsel %vm2568, 1, 0
    %v2585 = vsel %vm2569, 1, 0
    %v2586 = vsel %vm2570, 1, 0
    %v2587 = vsel %vm2571, 1, 0
    %v2588 = vsel %vm2572, 1, 0
    %v2589 = vcvt.s32.f32 %v2573
    %v2590 = vcvt.s32.f32 %v2574
    %v2591 = vcvt.s32.f32 %v2575
    %v2592 = vcvt.s32.f32 %v2576
    %v2593 = vcvt.s32.f32 %v2577
    %v2594 = vcvt.s32.f32 %v2578
    %v2595 = vcvt.s32.f32 %v2579
    %v2596 = vcvt.s32.f32 %v2580
    %v2597 = vcvt.s32.f32 %v2581
    %v2598 = vcvt.s32.f32 %v2582
    %v2599 = vcvt.s32.f32 %v2583
    %v2600 = vcvt.s32.f32 %v2584
    %v2601 = vcvt.s32.f32 %v2585
    %v2602 = vcvt.s32.f32 %v2586
    %v2603 = vcvt.s32.f32 %v2587
    %v2604 = vcvt.s32.f32 %v2588
    %vm2605 = vcmask 64512
    %v2606 = vsel %vm2605, %v2589, 0.0
    %2607 = vadd.xlane.f32.xlu0 %v2606
    %v2608 = vpop.xlane.xlu0 %2607
    %v2609 = vsel %vm2605, %v2590, 0.0
    %2610 = vadd.xlane.f32.xlu0 %v2609
    %v2611 = vpop.xlane.xlu0 %2610
    %v2612 = vsel %vm2605, %v2591, 0.0
    %2613 = vadd.xlane.f32.xlu0 %v2612
    %v2614 = vpop.xlane.xlu0 %2613
    %v2615 = vsel %vm2605, %v2592, 0.0
    %2616 = vadd.xlane.f32.xlu0 %v2615
    %v2617 = vpop.xlane.xlu0 %2616
    %v2618 = vsel %vm2605, %v2593, 0.0
    %2619 = vadd.xlane.f32.xlu0 %v2618
    %v2620 = vpop.xlane.xlu0 %2619
    %v2621 = vsel %vm2605, %v2594, 0.0
    %2622 = vadd.xlane.f32.xlu0 %v2621
    %v2623 = vpop.xlane.xlu0 %2622
    %v2624 = vsel %vm2605, %v2595, 0.0
    %2625 = vadd.xlane.f32.xlu0 %v2624
    %v2626 = vpop.xlane.xlu0 %2625
    %v2627 = vsel %vm2605, %v2596, 0.0
    %2628 = vadd.xlane.f32.xlu0 %v2627
    %v2629 = vpop.xlane.xlu0 %2628
    %v2630 = vsel %vm2605, %v2597, 0.0
    %2631 = vadd.xlane.f32.xlu0 %v2630
    %v2632 = vpop.xlane.xlu0 %2631
    %v2633 = vsel %vm2605, %v2598, 0.0
    %2634 = vadd.xlane.f32.xlu0 %v2633
    %v2635 = vpop.xlane.xlu0 %2634
    %v2636 = vsel %vm2605, %v2599, 0.0
    %2637 = vadd.xlane.f32.xlu0 %v2636
    %v2638 = vpop.xlane.xlu0 %2637
    %v2639 = vsel %vm2605, %v2600, 0.0
    %2640 = vadd.xlane.f32.xlu0 %v2639
    %v2641 = vpop.xlane.xlu0 %2640
    %v2642 = vsel %vm2605, %v2601, 0.0
    %2643 = vadd.xlane.f32.xlu0 %v2642
    %v2644 = vpop.xlane.xlu0 %2643
    %v2645 = vsel %vm2605, %v2602, 0.0
    %2646 = vadd.xlane.f32.xlu0 %v2645
    %v2647 = vpop.xlane.xlu0 %2646
    %v2648 = vsel %vm2605, %v2603, 0.0
    %2649 = vadd.xlane.f32.xlu0 %v2648
    %v2650 = vpop.xlane.xlu0 %2649
    %v2651 = vsel %vm2605, %v2604, 0.0
    %2652 = vadd.xlane.f32.xlu0 %v2651
    %v2653 = vpop.xlane.xlu0 %2652
    %vm2654 = vcmp.ge.f32.partialorder %v2608, 5.0
    %vm2655 = vcmp.ge.f32.partialorder %v2611, 5.0
    %vm2656 = vcmp.ge.f32.partialorder %v2614, 5.0
    %vm2657 = vcmp.ge.f32.partialorder %v2617, 5.0
    %vm2658 = vcmp.ge.f32.partialorder %v2620, 5.0
    %vm2659 = vcmp.ge.f32.partialorder %v2623, 5.0
    %vm2660 = vcmp.ge.f32.partialorder %v2626, 5.0
    %vm2661 = vcmp.ge.f32.partialorder %v2629, 5.0
    %vm2662 = vcmp.ge.f32.partialorder %v2632, 5.0
    %vm2663 = vcmp.ge.f32.partialorder %v2635, 5.0
    %vm2664 = vcmp.ge.f32.partialorder %v2638, 5.0
    %vm2665 = vcmp.ge.f32.partialorder %v2641, 5.0
    %vm2666 = vcmp.ge.f32.partialorder %v2644, 5.0
    %vm2667 = vcmp.ge.f32.partialorder %v2647, 5.0
    %vm2668 = vcmp.ge.f32.partialorder %v2650, 5.0
    %vm2669 = vcmp.ge.f32.partialorder %v2653, 5.0
    %v2670 = vlaneseq
    %v2671 = vshrl.u32 %v2670, 7
    %v2672 = vsub.s32 0, %v2671
    %v2673 = vrot.slane %v2122, %v2672
    %2675 = vbcast.lane.b32.xlu0 %v2673, 256
    %v2676 = vpop.permute.xlu0 %2675
    %v2677 = vlaneseq
    %v2678 = vshrl.u32 %v2677, 7
    %v2679 = vsub.s32 1, %v2678
    %v2680 = vrot.slane %v2122, %v2679
    %2682 = vbcast.lane.b32.xlu0 %v2680, 256
    %v2683 = vpop.permute.xlu0 %2682
    %v2684 = vlaneseq
    %v2685 = vshrl.u32 %v2684, 7
    %v2686 = vsub.s32 2, %v2685
    %v2687 = vrot.slane %v2122, %v2686
    %2689 = vbcast.lane.b32.xlu0 %v2687, 256
    %v2690 = vpop.permute.xlu0 %2689
    %v2691 = vlaneseq
    %v2692 = vshrl.u32 %v2691, 7
    %v2693 = vsub.s32 3, %v2692
    %v2694 = vrot.slane %v2122, %v2693
    %2696 = vbcast.lane.b32.xlu0 %v2694, 256
    %v2697 = vpop.permute.xlu0 %2696
    %v2698 = vlaneseq
    %v2699 = vshrl.u32 %v2698, 7
    %v2700 = vsub.s32 4, %v2699
    %v2701 = vrot.slane %v2122, %v2700
    %2703 = vbcast.lane.b32.xlu0 %v2701, 256
    %v2704 = vpop.permute.xlu0 %2703
    %v2705 = vlaneseq
    %v2706 = vshrl.u32 %v2705, 7
    %v2707 = vsub.s32 5, %v2706
    %v2708 = vrot.slane %v2122, %v2707
    %2710 = vbcast.lane.b32.xlu0 %v2708, 256
    %v2711 = vpop.permute.xlu0 %2710
    %v2712 = vlaneseq
    %v2713 = vshrl.u32 %v2712, 7
    %v2714 = vsub.s32 6, %v2713
    %v2715 = vrot.slane %v2122, %v2714
    %2717 = vbcast.lane.b32.xlu0 %v2715, 256
    %v2718 = vpop.permute.xlu0 %2717
    %v2719 = vlaneseq
    %v2720 = vshrl.u32 %v2719, 7
    %v2721 = vsub.s32 7, %v2720
    %v2722 = vrot.slane %v2122, %v2721
    %2724 = vbcast.lane.b32.xlu0 %v2722, 256
    %v2725 = vpop.permute.xlu0 %2724
    %v2726 = vlaneseq
    %v2727 = vshrl.u32 %v2726, 7
    %v2728 = vsub.s32 0, %v2727
    %v2729 = vrot.slane %v2262, %v2728
    %2731 = vbcast.lane.b32.xlu0 %v2729, 256
    %v2732 = vpop.permute.xlu0 %2731
    %v2733 = vlaneseq
    %v2734 = vshrl.u32 %v2733, 7
    %v2735 = vsub.s32 1, %v2734
    %v2736 = vrot.slane %v2262, %v2735
    %2738 = vbcast.lane.b32.xlu0 %v2736, 256
    %v2739 = vpop.permute.xlu0 %2738
    %v2740 = vlaneseq
    %v2741 = vshrl.u32 %v2740, 7
    %v2742 = vsub.s32 2, %v2741
    %v2743 = vrot.slane %v2262, %v2742
    %2745 = vbcast.lane.b32.xlu0 %v2743, 256
    %v2746 = vpop.permute.xlu0 %2745
    %v2747 = vlaneseq
    %v2748 = vshrl.u32 %v2747, 7
    %v2749 = vsub.s32 3, %v2748
    %v2750 = vrot.slane %v2262, %v2749
    %2752 = vbcast.lane.b32.xlu0 %v2750, 256
    %v2753 = vpop.permute.xlu0 %2752
    %v2754 = vlaneseq
    %v2755 = vshrl.u32 %v2754, 7
    %v2756 = vsub.s32 4, %v2755
    %v2757 = vrot.slane %v2262, %v2756
    %2759 = vbcast.lane.b32.xlu0 %v2757, 256
    %v2760 = vpop.permute.xlu0 %2759
    %v2761 = vlaneseq
    %v2762 = vshrl.u32 %v2761, 7
    %v2763 = vsub.s32 5, %v2762
    %v2764 = vrot.slane %v2262, %v2763
    %2766 = vbcast.lane.b32.xlu0 %v2764, 256
    %v2767 = vpop.permute.xlu0 %2766
    %v2768 = vlaneseq
    %v2769 = vshrl.u32 %v2768, 7
    %v2770 = vsub.s32 6, %v2769
    %v2771 = vrot.slane %v2262, %v2770
    %2773 = vbcast.lane.b32.xlu0 %v2771, 256
    %v2774 = vpop.permute.xlu0 %2773
    %v2775 = vlaneseq
    %v2776 = vshrl.u32 %v2775, 7
    %v2777 = vsub.s32 7, %v2776
    %v2778 = vrot.slane %v2262, %v2777
    %2780 = vbcast.lane.b32.xlu0 %v2778, 256
    %v2781 = vpop.permute.xlu0 %2780
    %v2798 = vsel %vm2654, %v2676, -inf
    %v2799 = vsel %vm2655, %v2683, -inf
    %v2800 = vsel %vm2656, %v2690, -inf
    %v2801 = vsel %vm2657, %v2697, -inf
    %v2802 = vsel %vm2658, %v2704, -inf
    %v2803 = vsel %vm2659, %v2711, -inf
    %v2804 = vsel %vm2660, %v2718, -inf
    %v2805 = vsel %vm2661, %v2725, -inf
    %v2806 = vsel %vm2662, %v2732, -inf
    %v2807 = vsel %vm2663, %v2739, -inf
    %v2808 = vsel %vm2664, %v2746, -inf
    %v2809 = vsel %vm2665, %v2753, -inf
    %v2810 = vsel %vm2666, %v2760, -inf
    %v2811 = vsel %vm2667, %v2767, -inf
    %v2812 = vsel %vm2668, %v2774, -inf
    %v2813 = vsel %vm2669, %v2781, -inf
    %2830 = vset.pattern.permute.xlu0 0
    %2831 = vperm.xlu0 %2830, %v2798
    %v2832 = vpop.permute.xlu0 %2831
    %2833 = vset.pattern.permute.xlu0 0
    %2834 = vperm.xlu0 %2833, %v2799
    %v2835 = vpop.permute.xlu0 %2834
    %2836 = vset.pattern.permute.xlu0 0
    %2837 = vperm.xlu0 %2836, %v2800
    %v2838 = vpop.permute.xlu0 %2837
    %2839 = vset.pattern.permute.xlu0 0
    %2840 = vperm.xlu0 %2839, %v2801
    %v2841 = vpop.permute.xlu0 %2840
    %2842 = vset.pattern.permute.xlu0 0
    %2843 = vperm.xlu0 %2842, %v2802
    %v2844 = vpop.permute.xlu0 %2843
    %2845 = vset.pattern.permute.xlu0 0
    %2846 = vperm.xlu0 %2845, %v2803
    %v2847 = vpop.permute.xlu0 %2846
    %2848 = vset.pattern.permute.xlu0 0
    %2849 = vperm.xlu0 %2848, %v2804
    %v2850 = vpop.permute.xlu0 %2849
    %2851 = vset.pattern.permute.xlu0 0
    %2852 = vperm.xlu0 %2851, %v2805
    %v2853 = vpop.permute.xlu0 %2852
    %2854 = vset.pattern.permute.xlu0 0
    %2855 = vperm.xlu0 %2854, %v2806
    %v2856 = vpop.permute.xlu0 %2855
    %2857 = vset.pattern.permute.xlu0 0
    %2858 = vperm.xlu0 %2857, %v2807
    %v2859 = vpop.permute.xlu0 %2858
    %2860 = vset.pattern.permute.xlu0 0
    %2861 = vperm.xlu0 %2860, %v2808
    %v2862 = vpop.permute.xlu0 %2861
    %2863 = vset.pattern.permute.xlu0 0
    %2864 = vperm.xlu0 %2863, %v2809
    %v2865 = vpop.permute.xlu0 %2864
    %2866 = vset.pattern.permute.xlu0 0
    %2867 = vperm.xlu0 %2866, %v2810
    %v2868 = vpop.permute.xlu0 %2867
    %2869 = vset.pattern.permute.xlu0 0
    %2870 = vperm.xlu0 %2869, %v2811
    %v2871 = vpop.permute.xlu0 %2870
    %2872 = vset.pattern.permute.xlu0 0
    %2873 = vperm.xlu0 %2872, %v2812
    %v2874 = vpop.permute.xlu0 %2873
    %2875 = vset.pattern.permute.xlu0 0
    %2876 = vperm.xlu0 %2875, %v2813
    %v2877 = vpop.permute.xlu0 %2876
    %v2878 = vlaneseq
    %v2879 = vand.u32 %v2878, 127
    %v2880 = vlaneseq
    %v2881 = vshrl.u32 %v2880, 7
    %v2882 = vsub.s32 %v2879, %v2881
    %v2883 = vrot.slane %v2832, %v2882
    %v2884 = vlaneseq
    %v2885 = vshrl.u32 %v2884, 7
    %v2886 = vsub.s32 %v2879, %v2885
    %v2887 = vrot.slane %v2835, %v2886
    %v2888 = vlaneseq
    %v2889 = vshrl.u32 %v2888, 7
    %v2890 = vsub.s32 %v2879, %v2889
    %v2891 = vrot.slane %v2838, %v2890
    %v2892 = vlaneseq
    %v2893 = vshrl.u32 %v2892, 7
    %v2894 = vsub.s32 %v2879, %v2893
    %v2895 = vrot.slane %v2841, %v2894
    %v2896 = vlaneseq
    %v2897 = vshrl.u32 %v2896, 7
    %v2898 = vsub.s32 %v2879, %v2897
    %v2899 = vrot.slane %v2844, %v2898
    %v2900 = vlaneseq
    %v2901 = vshrl.u32 %v2900, 7
    %v2902 = vsub.s32 %v2879, %v2901
    %v2903 = vrot.slane %v2847, %v2902
    %v2904 = vlaneseq
    %v2905 = vshrl.u32 %v2904, 7
    %v2906 = vsub.s32 %v2879, %v2905
    %v2907 = vrot.slane %v2850, %v2906
    %v2908 = vlaneseq
    %v2909 = vshrl.u32 %v2908, 7
    %v2910 = vsub.s32 %v2879, %v2909
    %v2911 = vrot.slane %v2853, %v2910
    %v2912 = vlaneseq
    %v2913 = vshrl.u32 %v2912, 7
    %v2914 = vsub.s32 %v2879, %v2913
    %v2915 = vrot.slane %v2856, %v2914
    %v2916 = vlaneseq
    %v2917 = vshrl.u32 %v2916, 7
    %v2918 = vsub.s32 %v2879, %v2917
    %v2919 = vrot.slane %v2859, %v2918
    %v2920 = vlaneseq
    %v2921 = vshrl.u32 %v2920, 7
    %v2922 = vsub.s32 %v2879, %v2921
    %v2923 = vrot.slane %v2862, %v2922
    %v2924 = vlaneseq
    %v2925 = vshrl.u32 %v2924, 7
    %v2926 = vsub.s32 %v2879, %v2925
    %v2927 = vrot.slane %v2865, %v2926
    %v2928 = vlaneseq
    %v2929 = vshrl.u32 %v2928, 7
    %v2930 = vsub.s32 %v2879, %v2929
    %v2931 = vrot.slane %v2868, %v2930
    %v2932 = vlaneseq
    %v2933 = vshrl.u32 %v2932, 7
    %v2934 = vsub.s32 %v2879, %v2933
    %v2935 = vrot.slane %v2871, %v2934
    %v2936 = vlaneseq
    %v2937 = vshrl.u32 %v2936, 7
    %v2938 = vsub.s32 %v2879, %v2937
    %v2939 = vrot.slane %v2874, %v2938
    %v2940 = vlaneseq
    %v2941 = vshrl.u32 %v2940, 7
    %v2942 = vsub.s32 %v2879, %v2941
    %v2943 = vrot.slane %v2877, %v2942
    %vm2944 = vcmask 1041409
    %v2945 = vsel %vm2944, %v2887, %v2883
    %vm2946 = vcmask 1042434
    %v2947 = vsel %vm2946, %v2891, %v2945
    %vm2948 = vcmask 1043459
    %v2949 = vsel %vm2948, %v2895, %v2947
    %vm2950 = vcmask 1044484
    %v2951 = vsel %vm2950, %v2899, %v2949
    %vm2952 = vcmask 1045509
    %v2953 = vsel %vm2952, %v2903, %v2951
    %vm2954 = vcmask 1046534
    %v2955 = vsel %vm2954, %v2907, %v2953
    %vm2956 = vcmask 1047559
    %v2957 = vsel %vm2956, %v2911, %v2955
    %v2958 = vsel %vm2944, %v2919, %v2915
    %v2959 = vsel %vm2946, %v2923, %v2958
    %v2960 = vsel %vm2948, %v2927, %v2959
    %v2961 = vsel %vm2950, %v2931, %v2960
    %v2962 = vsel %vm2952, %v2935, %v2961
    %v2963 = vsel %vm2954, %v2939, %v2962
    %v2964 = vsel %vm2956, %v2943, %v2963
    %v2967 = vsel %vm2605, %v2957, -inf
    %2968 = vmax.xlane.f32.xlu0 %v2967
    %v2969 = vpop.xlane.xlu0 %2968
    %v2970 = vsel %vm2605, %v2964, -inf
    %2971 = vmax.xlane.f32.xlu0 %v2970
    %v2972 = vpop.xlane.xlu0 %2971
    %vm2973 = vcmp.ge.f32.partialorder %v2122, %v2969
    %vm2974 = vcmp.ge.f32.partialorder %v2262, %v2972
    %v2975 = vsel %vm2973, 1, 0
    %v2976 = vsel %vm2974, 1, 0
    %v2977 = vcvt.s32.f32 %v2975
    %v2978 = vcvt.s32.f32 %v2976
    %v2979 = vsel %vm2605, %v2977, 0.0
    %2980 = vadd.xlane.f32.xlu0 %v2979
    %v2981 = vpop.xlane.xlu0 %2980
    %v2982 = vsel %vm2605, %v2978, 0.0
    %2983 = vadd.xlane.f32.xlu0 %v2982
    %v2984 = vpop.xlane.xlu0 %2983
    %v2985 = vrsqrt.pop %v2981
    %v2986 = vrsqrt.pop %v2984
    %v2987 = vmul.f32 %v2985, %v2977
    %v2988 = vmul.f32 %v2986, %v2978
    %v2991 = vlaneseq
    %v2992 = vshrl.u32 %v2991, 7
    %v2993 = vsub.s32 %v2879, %v2992
    %v2994 = vrot.slane %v2985, %v2993
    %v2995 = vlaneseq
    %v2996 = vshrl.u32 %v2995, 7
    %v2997 = vsub.s32 %v2879, %v2996
    %v2998 = vrot.slane %v2986, %v2997
    %v2999 = vsel %vm2946, %v2994, %v2994
    %v3000 = vsel %vm2948, %v2994, %v2999
    %v3001 = vsel %vm2950, %v2994, %v3000
    %v3002 = vsel %vm2952, %v2994, %v3001
    %v3003 = vsel %vm2954, %v2994, %v3002
    %v3004 = vsel %vm2956, %v2994, %v3003
    %v3005 = vsel %vm2946, %v2998, %v2998
    %v3006 = vsel %vm2948, %v2998, %v3005
    %v3007 = vsel %vm2950, %v2998, %v3006
    %v3008 = vsel %vm2952, %v2998, %v3007
    %v3009 = vsel %vm2954, %v2998, %v3008
    %v3010 = vsel %vm2956, %v2998, %v3009
    %v3013 = vmul.f32 %v2987, %v3004
    %v3014 = vmul.f32 %v2988, %v3010
    %v3015 = vlaneseq
    %v3016 = vshrl.u32 %v3015, 7
    %v3017 = vsub.s32 0, %v3016
    %v3018 = vrot.slane %v3013, %v3017
    %3020 = vbcast.lane.b32.xlu0 %v3018, 256
    %v3021 = vpop.permute.xlu0 %3020
    %v3022 = vlaneseq
    %v3023 = vshrl.u32 %v3022, 7
    %v3024 = vsub.s32 1, %v3023
    %v3025 = vrot.slane %v3013, %v3024
    %3027 = vbcast.lane.b32.xlu0 %v3025, 256
    %v3028 = vpop.permute.xlu0 %3027
    %v3029 = vlaneseq
    %v3030 = vshrl.u32 %v3029, 7
    %v3031 = vsub.s32 2, %v3030
    %v3032 = vrot.slane %v3013, %v3031
    %3034 = vbcast.lane.b32.xlu0 %v3032, 256
    %v3035 = vpop.permute.xlu0 %3034
    %v3036 = vlaneseq
    %v3037 = vshrl.u32 %v3036, 7
    %v3038 = vsub.s32 3, %v3037
    %v3039 = vrot.slane %v3013, %v3038
    %3041 = vbcast.lane.b32.xlu0 %v3039, 256
    %v3042 = vpop.permute.xlu0 %3041
    %v3043 = vlaneseq
    %v3044 = vshrl.u32 %v3043, 7
    %v3045 = vsub.s32 4, %v3044
    %v3046 = vrot.slane %v3013, %v3045
    %3048 = vbcast.lane.b32.xlu0 %v3046, 256
    %v3049 = vpop.permute.xlu0 %3048
    %v3050 = vlaneseq
    %v3051 = vshrl.u32 %v3050, 7
    %v3052 = vsub.s32 5, %v3051
    %v3053 = vrot.slane %v3013, %v3052
    %3055 = vbcast.lane.b32.xlu0 %v3053, 256
    %v3056 = vpop.permute.xlu0 %3055
    %v3057 = vlaneseq
    %v3058 = vshrl.u32 %v3057, 7
    %v3059 = vsub.s32 6, %v3058
    %v3060 = vrot.slane %v3013, %v3059
    %3062 = vbcast.lane.b32.xlu0 %v3060, 256
    %v3063 = vpop.permute.xlu0 %3062
    %v3064 = vlaneseq
    %v3065 = vshrl.u32 %v3064, 7
    %v3066 = vsub.s32 7, %v3065
    %v3067 = vrot.slane %v3013, %v3066
    %3069 = vbcast.lane.b32.xlu0 %v3067, 256
    %v3070 = vpop.permute.xlu0 %3069
    %v3071 = vlaneseq
    %v3072 = vshrl.u32 %v3071, 7
    %v3073 = vsub.s32 0, %v3072
    %v3074 = vrot.slane %v3014, %v3073
    %3076 = vbcast.lane.b32.xlu0 %v3074, 256
    %v3077 = vpop.permute.xlu0 %3076
    %v3078 = vlaneseq
    %v3079 = vshrl.u32 %v3078, 7
    %v3080 = vsub.s32 1, %v3079
    %v3081 = vrot.slane %v3014, %v3080
    %3083 = vbcast.lane.b32.xlu0 %v3081, 256
    %v3084 = vpop.permute.xlu0 %3083
    %v3085 = vlaneseq
    %v3086 = vshrl.u32 %v3085, 7
    %v3087 = vsub.s32 2, %v3086
    %v3088 = vrot.slane %v3014, %v3087
    %3090 = vbcast.lane.b32.xlu0 %v3088, 256
    %v3091 = vpop.permute.xlu0 %3090
    %v3092 = vlaneseq
    %v3093 = vshrl.u32 %v3092, 7
    %v3094 = vsub.s32 3, %v3093
    %v3095 = vrot.slane %v3014, %v3094
    %3097 = vbcast.lane.b32.xlu0 %v3095, 256
    %v3098 = vpop.permute.xlu0 %3097
    %v3099 = vlaneseq
    %v3100 = vshrl.u32 %v3099, 7
    %v3101 = vsub.s32 4, %v3100
    %v3102 = vrot.slane %v3014, %v3101
    %3104 = vbcast.lane.b32.xlu0 %v3102, 256
    %v3105 = vpop.permute.xlu0 %3104
    %v3106 = vlaneseq
    %v3107 = vshrl.u32 %v3106, 7
    %v3108 = vsub.s32 5, %v3107
    %v3109 = vrot.slane %v3014, %v3108
    %3111 = vbcast.lane.b32.xlu0 %v3109, 256
    %v3112 = vpop.permute.xlu0 %3111
    %v3113 = vlaneseq
    %v3114 = vshrl.u32 %v3113, 7
    %v3115 = vsub.s32 6, %v3114
    %v3116 = vrot.slane %v3014, %v3115
    %3118 = vbcast.lane.b32.xlu0 %v3116, 256
    %v3119 = vpop.permute.xlu0 %3118
    %v3120 = vlaneseq
    %v3121 = vshrl.u32 %v3120, 7
    %v3122 = vsub.s32 7, %v3121
    %v3123 = vrot.slane %v3014, %v3122
    %3125 = vbcast.lane.b32.xlu0 %v3123, 256
    %v3126 = vpop.permute.xlu0 %3125
    %v3127 = vmul.f32 %v3021, %v1889
    %v3128 = vmul.f32 %v3021, %v1891
    %v3129 = vmul.f32 %v3021, %v1975
    %v3130 = vmul.f32 %v3021, %v1977
    %v3131 = vmul.f32 %v3028, %v1889
    %v3132 = vmul.f32 %v3028, %v1891
    %v3133 = vmul.f32 %v3028, %v1975
    %v3134 = vmul.f32 %v3028, %v1977
    %v3135 = vmul.f32 %v3035, %v1889
    %v3136 = vmul.f32 %v3035, %v1891
    %v3137 = vmul.f32 %v3035, %v1975
    %v3138 = vmul.f32 %v3035, %v1977
    %v3139 = vmul.f32 %v3042, %v1889
    %v3140 = vmul.f32 %v3042, %v1891
    %v3141 = vmul.f32 %v3042, %v1975
    %v3142 = vmul.f32 %v3042, %v1977
    %v3143 = vmul.f32 %v3049, %v1889
    %v3144 = vmul.f32 %v3049, %v1891
    %v3145 = vmul.f32 %v3049, %v1975
    %v3146 = vmul.f32 %v3049, %v1977
    %v3147 = vmul.f32 %v3056, %v1889
    %v3148 = vmul.f32 %v3056, %v1891
    %v3149 = vmul.f32 %v3056, %v1975
    %v3150 = vmul.f32 %v3056, %v1977
    %v3151 = vmul.f32 %v3063, %v1889
    %v3152 = vmul.f32 %v3063, %v1891
    %v3153 = vmul.f32 %v3063, %v1975
    %v3154 = vmul.f32 %v3063, %v1977
    %v3155 = vmul.f32 %v3070, %v1889
    %v3156 = vmul.f32 %v3070, %v1891
    %v3157 = vmul.f32 %v3070, %v1975
    %v3158 = vmul.f32 %v3070, %v1977
    %v3159 = vmul.f32 %v3077, %v1893
    %v3160 = vmul.f32 %v3077, %v1895
    %v3161 = vmul.f32 %v3077, %v1979
    %v3162 = vmul.f32 %v3077, %v1981
    %v3163 = vmul.f32 %v3084, %v1893
    %v3164 = vmul.f32 %v3084, %v1895
    %v3165 = vmul.f32 %v3084, %v1979
    %v3166 = vmul.f32 %v3084, %v1981
    %v3167 = vmul.f32 %v3091, %v1893
    %v3168 = vmul.f32 %v3091, %v1895
    %v3169 = vmul.f32 %v3091, %v1979
    %v3170 = vmul.f32 %v3091, %v1981
    %v3171 = vmul.f32 %v3098, %v1893
    %v3172 = vmul.f32 %v3098, %v1895
    %v3173 = vmul.f32 %v3098, %v1979
    %v3174 = vmul.f32 %v3098, %v1981
    %v3175 = vmul.f32 %v3105, %v1893
    %v3176 = vmul.f32 %v3105, %v1895
    %v3177 = vmul.f32 %v3105, %v1979
    %v3178 = vmul.f32 %v3105, %v1981
    %v3179 = vmul.f32 %v3112, %v1893
    %v3180 = vmul.f32 %v3112, %v1895
    %v3181 = vmul.f32 %v3112, %v1979
    %v3182 = vmul.f32 %v3112, %v1981
    %v3183 = vmul.f32 %v3119, %v1893
    %v3184 = vmul.f32 %v3119, %v1895
    %v3185 = vmul.f32 %v3119, %v1979
    %v3186 = vmul.f32 %v3119, %v1981
    %v3187 = vmul.f32 %v3126, %v1893
    %v3188 = vmul.f32 %v3126, %v1895
    %v3189 = vmul.f32 %v3126, %v1979
    %v3190 = vmul.f32 %v3126, %v1981
    %v3191 = vrot.slane %v3127, 4
    %v3192 = vadd.f32 %v3127, %v3191
    %v3193 = vrot.slane %v3192, 2
    %v3194 = vadd.f32 %v3192, %v3193
    %v3195 = vrot.slane %v3194, 1
    %v3196 = vadd.f32 %v3194, %v3195
    %v3197 = vrot.slane %v3128, 4
    %v3198 = vadd.f32 %v3128, %v3197
    %v3199 = vrot.slane %v3198, 2
    %v3200 = vadd.f32 %v3198, %v3199
    %v3201 = vrot.slane %v3200, 1
    %v3202 = vadd.f32 %v3200, %v3201
    %v3203 = vrot.slane %v3129, 4
    %v3204 = vadd.f32 %v3129, %v3203
    %v3205 = vrot.slane %v3204, 2
    %v3206 = vadd.f32 %v3204, %v3205
    %v3207 = vrot.slane %v3206, 1
    %v3208 = vadd.f32 %v3206, %v3207
    %v3209 = vrot.slane %v3130, 4
    %v3210 = vadd.f32 %v3130, %v3209
    %v3211 = vrot.slane %v3210, 2
    %v3212 = vadd.f32 %v3210, %v3211
    %v3213 = vrot.slane %v3212, 1
    %v3214 = vadd.f32 %v3212, %v3213
    %v3215 = vrot.slane %v3131, 4
    %v3216 = vadd.f32 %v3131, %v3215
    %v3217 = vrot.slane %v3216, 2
    %v3218 = vadd.f32 %v3216, %v3217
    %v3219 = vrot.slane %v3218, 1
    %v3220 = vadd.f32 %v3218, %v3219
    %v3221 = vrot.slane %v3132, 4
    %v3222 = vadd.f32 %v3132, %v3221
    %v3223 = vrot.slane %v3222, 2
    %v3224 = vadd.f32 %v3222, %v3223
    %v3225 = vrot.slane %v3224, 1
    %v3226 = vadd.f32 %v3224, %v3225
    %v3227 = vrot.slane %v3133, 4
    %v3228 = vadd.f32 %v3133, %v3227
    %v3229 = vrot.slane %v3228, 2
    %v3230 = vadd.f32 %v3228, %v3229
    %v3231 = vrot.slane %v3230, 1
    %v3232 = vadd.f32 %v3230, %v3231
    %v3233 = vrot.slane %v3134, 4
    %v3234 = vadd.f32 %v3134, %v3233
    %v3235 = vrot.slane %v3234, 2
    %v3236 = vadd.f32 %v3234, %v3235
    %v3237 = vrot.slane %v3236, 1
    %v3238 = vadd.f32 %v3236, %v3237
    %v3239 = vrot.slane %v3135, 4
    %v3240 = vadd.f32 %v3135, %v3239
    %v3241 = vrot.slane %v3240, 2
    %v3242 = vadd.f32 %v3240, %v3241
    %v3243 = vrot.slane %v3242, 1
    %v3244 = vadd.f32 %v3242, %v3243
    %v3245 = vrot.slane %v3136, 4
    %v3246 = vadd.f32 %v3136, %v3245
    %v3247 = vrot.slane %v3246, 2
    %v3248 = vadd.f32 %v3246, %v3247
    %v3249 = vrot.slane %v3248, 1
    %v3250 = vadd.f32 %v3248, %v3249
    %v3251 = vrot.slane %v3137, 4
    %v3252 = vadd.f32 %v3137, %v3251
    %v3253 = vrot.slane %v3252, 2
    %v3254 = vadd.f32 %v3252, %v3253
    %v3255 = vrot.slane %v3254, 1
    %v3256 = vadd.f32 %v3254, %v3255
    %v3257 = vrot.slane %v3138, 4
    %v3258 = vadd.f32 %v3138, %v3257
    %v3259 = vrot.slane %v3258, 2
    %v3260 = vadd.f32 %v3258, %v3259
    %v3261 = vrot.slane %v3260, 1
    %v3262 = vadd.f32 %v3260, %v3261
    %v3263 = vrot.slane %v3139, 4
    %v3264 = vadd.f32 %v3139, %v3263
    %v3265 = vrot.slane %v3264, 2
    %v3266 = vadd.f32 %v3264, %v3265
    %v3267 = vrot.slane %v3266, 1
    %v3268 = vadd.f32 %v3266, %v3267
    %v3269 = vrot.slane %v3140, 4
    %v3270 = vadd.f32 %v3140, %v3269
    %v3271 = vrot.slane %v3270, 2
    %v3272 = vadd.f32 %v3270, %v3271
    %v3273 = vrot.slane %v3272, 1
    %v3274 = vadd.f32 %v3272, %v3273
    %v3275 = vrot.slane %v3141, 4
    %v3276 = vadd.f32 %v3141, %v3275
    %v3277 = vrot.slane %v3276, 2
    %v3278 = vadd.f32 %v3276, %v3277
    %v3279 = vrot.slane %v3278, 1
    %v3280 = vadd.f32 %v3278, %v3279
    %v3281 = vrot.slane %v3142, 4
    %v3282 = vadd.f32 %v3142, %v3281
    %v3283 = vrot.slane %v3282, 2
    %v3284 = vadd.f32 %v3282, %v3283
    %v3285 = vrot.slane %v3284, 1
    %v3286 = vadd.f32 %v3284, %v3285
    %v3287 = vrot.slane %v3143, 4
    %v3288 = vadd.f32 %v3143, %v3287
    %v3289 = vrot.slane %v3288, 2
    %v3290 = vadd.f32 %v3288, %v3289
    %v3291 = vrot.slane %v3290, 1
    %v3292 = vadd.f32 %v3290, %v3291
    %v3293 = vrot.slane %v3144, 4
    %v3294 = vadd.f32 %v3144, %v3293
    %v3295 = vrot.slane %v3294, 2
    %v3296 = vadd.f32 %v3294, %v3295
    %v3297 = vrot.slane %v3296, 1
    %v3298 = vadd.f32 %v3296, %v3297
    %v3299 = vrot.slane %v3145, 4
    %v3300 = vadd.f32 %v3145, %v3299
    %v3301 = vrot.slane %v3300, 2
    %v3302 = vadd.f32 %v3300, %v3301
    %v3303 = vrot.slane %v3302, 1
    %v3304 = vadd.f32 %v3302, %v3303
    %v3305 = vrot.slane %v3146, 4
    %v3306 = vadd.f32 %v3146, %v3305
    %v3307 = vrot.slane %v3306, 2
    %v3308 = vadd.f32 %v3306, %v3307
    %v3309 = vrot.slane %v3308, 1
    %v3310 = vadd.f32 %v3308, %v3309
    %v3311 = vrot.slane %v3147, 4
    %v3312 = vadd.f32 %v3147, %v3311
    %v3313 = vrot.slane %v3312, 2
    %v3314 = vadd.f32 %v3312, %v3313
    %v3315 = vrot.slane %v3314, 1
    %v3316 = vadd.f32 %v3314, %v3315
    %v3317 = vrot.slane %v3148, 4
    %v3318 = vadd.f32 %v3148, %v3317
    %v3319 = vrot.slane %v3318, 2
    %v3320 = vadd.f32 %v3318, %v3319
    %v3321 = vrot.slane %v3320, 1
    %v3322 = vadd.f32 %v3320, %v3321
    %v3323 = vrot.slane %v3149, 4
    %v3324 = vadd.f32 %v3149, %v3323
    %v3325 = vrot.slane %v3324, 2
    %v3326 = vadd.f32 %v3324, %v3325
    %v3327 = vrot.slane %v3326, 1
    %v3328 = vadd.f32 %v3326, %v3327
    %v3329 = vrot.slane %v3150, 4
    %v3330 = vadd.f32 %v3150, %v3329
    %v3331 = vrot.slane %v3330, 2
    %v3332 = vadd.f32 %v3330, %v3331
    %v3333 = vrot.slane %v3332, 1
    %v3334 = vadd.f32 %v3332, %v3333
    %v3335 = vrot.slane %v3151, 4
    %v3336 = vadd.f32 %v3151, %v3335
    %v3337 = vrot.slane %v3336, 2
    %v3338 = vadd.f32 %v3336, %v3337
    %v3339 = vrot.slane %v3338, 1
    %v3340 = vadd.f32 %v3338, %v3339
    %v3341 = vrot.slane %v3152, 4
    %v3342 = vadd.f32 %v3152, %v3341
    %v3343 = vrot.slane %v3342, 2
    %v3344 = vadd.f32 %v3342, %v3343
    %v3345 = vrot.slane %v3344, 1
    %v3346 = vadd.f32 %v3344, %v3345
    %v3347 = vrot.slane %v3153, 4
    %v3348 = vadd.f32 %v3153, %v3347
    %v3349 = vrot.slane %v3348, 2
    %v3350 = vadd.f32 %v3348, %v3349
    %v3351 = vrot.slane %v3350, 1
    %v3352 = vadd.f32 %v3350, %v3351
    %v3353 = vrot.slane %v3154, 4
    %v3354 = vadd.f32 %v3154, %v3353
    %v3355 = vrot.slane %v3354, 2
    %v3356 = vadd.f32 %v3354, %v3355
    %v3357 = vrot.slane %v3356, 1
    %v3358 = vadd.f32 %v3356, %v3357
    %v3359 = vrot.slane %v3155, 4
    %v3360 = vadd.f32 %v3155, %v3359
    %v3361 = vrot.slane %v3360, 2
    %v3362 = vadd.f32 %v3360, %v3361
    %v3363 = vrot.slane %v3362, 1
    %v3364 = vadd.f32 %v3362, %v3363
    %v3365 = vrot.slane %v3156, 4
    %v3366 = vadd.f32 %v3156, %v3365
    %v3367 = vrot.slane %v3366, 2
    %v3368 = vadd.f32 %v3366, %v3367
    %v3369 = vrot.slane %v3368, 1
    %v3370 = vadd.f32 %v3368, %v3369
    %v3371 = vrot.slane %v3157, 4
    %v3372 = vadd.f32 %v3157, %v3371
    %v3373 = vrot.slane %v3372, 2
    %v3374 = vadd.f32 %v3372, %v3373
    %v3375 = vrot.slane %v3374, 1
    %v3376 = vadd.f32 %v3374, %v3375
    %v3377 = vrot.slane %v3158, 4
    %v3378 = vadd.f32 %v3158, %v3377
    %v3379 = vrot.slane %v3378, 2
    %v3380 = vadd.f32 %v3378, %v3379
    %v3381 = vrot.slane %v3380, 1
    %v3382 = vadd.f32 %v3380, %v3381
    %v3383 = vrot.slane %v3159, 4
    %v3384 = vadd.f32 %v3159, %v3383
    %v3385 = vrot.slane %v3384, 2
    %v3386 = vadd.f32 %v3384, %v3385
    %v3387 = vrot.slane %v3386, 1
    %v3388 = vadd.f32 %v3386, %v3387
    %v3389 = vrot.slane %v3160, 4
    %v3390 = vadd.f32 %v3160, %v3389
    %v3391 = vrot.slane %v3390, 2
    %v3392 = vadd.f32 %v3390, %v3391
    %v3393 = vrot.slane %v3392, 1
    %v3394 = vadd.f32 %v3392, %v3393
    %v3395 = vrot.slane %v3161, 4
    %v3396 = vadd.f32 %v3161, %v3395
    %v3397 = vrot.slane %v3396, 2
    %v3398 = vadd.f32 %v3396, %v3397
    %v3399 = vrot.slane %v3398, 1
    %v3400 = vadd.f32 %v3398, %v3399
    %v3401 = vrot.slane %v3162, 4
    %v3402 = vadd.f32 %v3162, %v3401
    %v3403 = vrot.slane %v3402, 2
    %v3404 = vadd.f32 %v3402, %v3403
    %v3405 = vrot.slane %v3404, 1
    %v3406 = vadd.f32 %v3404, %v3405
    %v3407 = vrot.slane %v3163, 4
    %v3408 = vadd.f32 %v3163, %v3407
    %v3409 = vrot.slane %v3408, 2
    %v3410 = vadd.f32 %v3408, %v3409
    %v3411 = vrot.slane %v3410, 1
    %v3412 = vadd.f32 %v3410, %v3411
    %v3413 = vrot.slane %v3164, 4
    %v3414 = vadd.f32 %v3164, %v3413
    %v3415 = vrot.slane %v3414, 2
    %v3416 = vadd.f32 %v3414, %v3415
    %v3417 = vrot.slane %v3416, 1
    %v3418 = vadd.f32 %v3416, %v3417
    %v3419 = vrot.slane %v3165, 4
    %v3420 = vadd.f32 %v3165, %v3419
    %v3421 = vrot.slane %v3420, 2
    %v3422 = vadd.f32 %v3420, %v3421
    %v3423 = vrot.slane %v3422, 1
    %v3424 = vadd.f32 %v3422, %v3423
    %v3425 = vrot.slane %v3166, 4
    %v3426 = vadd.f32 %v3166, %v3425
    %v3427 = vrot.slane %v3426, 2
    %v3428 = vadd.f32 %v3426, %v3427
    %v3429 = vrot.slane %v3428, 1
    %v3430 = vadd.f32 %v3428, %v3429
    %v3431 = vrot.slane %v3167, 4
    %v3432 = vadd.f32 %v3167, %v3431
    %v3433 = vrot.slane %v3432, 2
    %v3434 = vadd.f32 %v3432, %v3433
    %v3435 = vrot.slane %v3434, 1
    %v3436 = vadd.f32 %v3434, %v3435
    %v3437 = vrot.slane %v3168, 4
    %v3438 = vadd.f32 %v3168, %v3437
    %v3439 = vrot.slane %v3438, 2
    %v3440 = vadd.f32 %v3438, %v3439
    %v3441 = vrot.slane %v3440, 1
    %v3442 = vadd.f32 %v3440, %v3441
    %v3443 = vrot.slane %v3169, 4
    %v3444 = vadd.f32 %v3169, %v3443
    %v3445 = vrot.slane %v3444, 2
    %v3446 = vadd.f32 %v3444, %v3445
    %v3447 = vrot.slane %v3446, 1
    %v3448 = vadd.f32 %v3446, %v3447
    %v3449 = vrot.slane %v3170, 4
    %v3450 = vadd.f32 %v3170, %v3449
    %v3451 = vrot.slane %v3450, 2
    %v3452 = vadd.f32 %v3450, %v3451
    %v3453 = vrot.slane %v3452, 1
    %v3454 = vadd.f32 %v3452, %v3453
    %v3455 = vrot.slane %v3171, 4
    %v3456 = vadd.f32 %v3171, %v3455
    %v3457 = vrot.slane %v3456, 2
    %v3458 = vadd.f32 %v3456, %v3457
    %v3459 = vrot.slane %v3458, 1
    %v3460 = vadd.f32 %v3458, %v3459
    %v3461 = vrot.slane %v3172, 4
    %v3462 = vadd.f32 %v3172, %v3461
    %v3463 = vrot.slane %v3462, 2
    %v3464 = vadd.f32 %v3462, %v3463
    %v3465 = vrot.slane %v3464, 1
    %v3466 = vadd.f32 %v3464, %v3465
    %v3467 = vrot.slane %v3173, 4
    %v3468 = vadd.f32 %v3173, %v3467
    %v3469 = vrot.slane %v3468, 2
    %v3470 = vadd.f32 %v3468, %v3469
    %v3471 = vrot.slane %v3470, 1
    %v3472 = vadd.f32 %v3470, %v3471
    %v3473 = vrot.slane %v3174, 4
    %v3474 = vadd.f32 %v3174, %v3473
    %v3475 = vrot.slane %v3474, 2
    %v3476 = vadd.f32 %v3474, %v3475
    %v3477 = vrot.slane %v3476, 1
    %v3478 = vadd.f32 %v3476, %v3477
    %v3479 = vrot.slane %v3175, 4
    %v3480 = vadd.f32 %v3175, %v3479
    %v3481 = vrot.slane %v3480, 2
    %v3482 = vadd.f32 %v3480, %v3481
    %v3483 = vrot.slane %v3482, 1
    %v3484 = vadd.f32 %v3482, %v3483
    %v3485 = vrot.slane %v3176, 4
    %v3486 = vadd.f32 %v3176, %v3485
    %v3487 = vrot.slane %v3486, 2
    %v3488 = vadd.f32 %v3486, %v3487
    %v3489 = vrot.slane %v3488, 1
    %v3490 = vadd.f32 %v3488, %v3489
    %v3491 = vrot.slane %v3177, 4
    %v3492 = vadd.f32 %v3177, %v3491
    %v3493 = vrot.slane %v3492, 2
    %v3494 = vadd.f32 %v3492, %v3493
    %v3495 = vrot.slane %v3494, 1
    %v3496 = vadd.f32 %v3494, %v3495
    %v3497 = vrot.slane %v3178, 4
    %v3498 = vadd.f32 %v3178, %v3497
    %v3499 = vrot.slane %v3498, 2
    %v3500 = vadd.f32 %v3498, %v3499
    %v3501 = vrot.slane %v3500, 1
    %v3502 = vadd.f32 %v3500, %v3501
    %v3503 = vrot.slane %v3179, 4
    %v3504 = vadd.f32 %v3179, %v3503
    %v3505 = vrot.slane %v3504, 2
    %v3506 = vadd.f32 %v3504, %v3505
    %v3507 = vrot.slane %v3506, 1
    %v3508 = vadd.f32 %v3506, %v3507
    %v3509 = vrot.slane %v3180, 4
    %v3510 = vadd.f32 %v3180, %v3509
    %v3511 = vrot.slane %v3510, 2
    %v3512 = vadd.f32 %v3510, %v3511
    %v3513 = vrot.slane %v3512, 1
    %v3514 = vadd.f32 %v3512, %v3513
    %v3515 = vrot.slane %v3181, 4
    %v3516 = vadd.f32 %v3181, %v3515
    %v3517 = vrot.slane %v3516, 2
    %v3518 = vadd.f32 %v3516, %v3517
    %v3519 = vrot.slane %v3518, 1
    %v3520 = vadd.f32 %v3518, %v3519
    %v3521 = vrot.slane %v3182, 4
    %v3522 = vadd.f32 %v3182, %v3521
    %v3523 = vrot.slane %v3522, 2
    %v3524 = vadd.f32 %v3522, %v3523
    %v3525 = vrot.slane %v3524, 1
    %v3526 = vadd.f32 %v3524, %v3525
    %v3527 = vrot.slane %v3183, 4
    %v3528 = vadd.f32 %v3183, %v3527
    %v3529 = vrot.slane %v3528, 2
    %v3530 = vadd.f32 %v3528, %v3529
    %v3531 = vrot.slane %v3530, 1
    %v3532 = vadd.f32 %v3530, %v3531
    %v3533 = vrot.slane %v3184, 4
    %v3534 = vadd.f32 %v3184, %v3533
    %v3535 = vrot.slane %v3534, 2
    %v3536 = vadd.f32 %v3534, %v3535
    %v3537 = vrot.slane %v3536, 1
    %v3538 = vadd.f32 %v3536, %v3537
    %v3539 = vrot.slane %v3185, 4
    %v3540 = vadd.f32 %v3185, %v3539
    %v3541 = vrot.slane %v3540, 2
    %v3542 = vadd.f32 %v3540, %v3541
    %v3543 = vrot.slane %v3542, 1
    %v3544 = vadd.f32 %v3542, %v3543
    %v3545 = vrot.slane %v3186, 4
    %v3546 = vadd.f32 %v3186, %v3545
    %v3547 = vrot.slane %v3546, 2
    %v3548 = vadd.f32 %v3546, %v3547
    %v3549 = vrot.slane %v3548, 1
    %v3550 = vadd.f32 %v3548, %v3549
    %v3551 = vrot.slane %v3187, 4
    %v3552 = vadd.f32 %v3187, %v3551
    %v3553 = vrot.slane %v3552, 2
    %v3554 = vadd.f32 %v3552, %v3553
    %v3555 = vrot.slane %v3554, 1
    %v3556 = vadd.f32 %v3554, %v3555
    %v3557 = vrot.slane %v3188, 4
    %v3558 = vadd.f32 %v3188, %v3557
    %v3559 = vrot.slane %v3558, 2
    %v3560 = vadd.f32 %v3558, %v3559
    %v3561 = vrot.slane %v3560, 1
    %v3562 = vadd.f32 %v3560, %v3561
    %v3563 = vrot.slane %v3189, 4
    %v3564 = vadd.f32 %v3189, %v3563
    %v3565 = vrot.slane %v3564, 2
    %v3566 = vadd.f32 %v3564, %v3565
    %v3567 = vrot.slane %v3566, 1
    %v3568 = vadd.f32 %v3566, %v3567
    %v3569 = vrot.slane %v3190, 4
    %v3570 = vadd.f32 %v3190, %v3569
    %v3571 = vrot.slane %v3570, 2
    %v3572 = vadd.f32 %v3570, %v3571
    %v3573 = vrot.slane %v3572, 1
    %v3574 = vadd.f32 %v3572, %v3573
    %v3583 = vrot.slane %v1717, 1
    %v3584 = vrot.slane %v1719, 1
    %v3585 = vrot.slane %v1803, 1
    %v3586 = vrot.slane %v1805, 1
    %v3587 = vrot.slane %v1717, 2
    %v3588 = vrot.slane %v1719, 2
    %v3589 = vrot.slane %v1803, 2
    %v3590 = vrot.slane %v1805, 2
    %v3591 = vrot.slane %v1717, 3
    %v3592 = vrot.slane %v1719, 3
    %v3593 = vrot.slane %v1803, 3
    %v3594 = vrot.slane %v1805, 3
    %v3595 = vrot.slane %v1717, 4
    %v3596 = vrot.slane %v1719, 4
    %v3597 = vrot.slane %v1803, 4
    %v3598 = vrot.slane %v1805, 4
    %v3599 = vrot.slane %v1717, 5
    %v3600 = vrot.slane %v1719, 5
    %v3601 = vrot.slane %v1803, 5
    %v3602 = vrot.slane %v1805, 5
    %v3603 = vrot.slane %v1717, 6
    %v3604 = vrot.slane %v1719, 6
    %v3605 = vrot.slane %v1803, 6
    %v3606 = vrot.slane %v1805, 6
    %v3607 = vrot.slane %v1717, 7
    %v3608 = vrot.slane %v1719, 7
    %v3609 = vrot.slane %v1803, 7
    %v3610 = vrot.slane %v1805, 7
    %v3611 = vrot.slane %v1721, 1
    %v3612 = vrot.slane %v1723, 1
    %v3613 = vrot.slane %v1807, 1
    %v3614 = vrot.slane %v1809, 1
    %v3615 = vrot.slane %v1721, 2
    %v3616 = vrot.slane %v1723, 2
    %v3617 = vrot.slane %v1807, 2
    %v3618 = vrot.slane %v1809, 2
    %v3619 = vrot.slane %v1721, 3
    %v3620 = vrot.slane %v1723, 3
    %v3621 = vrot.slane %v1807, 3
    %v3622 = vrot.slane %v1809, 3
    %v3623 = vrot.slane %v1721, 4
    %v3624 = vrot.slane %v1723, 4
    %v3625 = vrot.slane %v1807, 4
    %v3626 = vrot.slane %v1809, 4
    %v3627 = vrot.slane %v1721, 5
    %v3628 = vrot.slane %v1723, 5
    %v3629 = vrot.slane %v1807, 5
    %v3630 = vrot.slane %v1809, 5
    %v3631 = vrot.slane %v1721, 6
    %v3632 = vrot.slane %v1723, 6
    %v3633 = vrot.slane %v1807, 6
    %v3634 = vrot.slane %v1809, 6
    %v3635 = vrot.slane %v1721, 7
    %v3636 = vrot.slane %v1723, 7
    %v3637 = vrot.slane %v1807, 7
    %v3638 = vrot.slane %v1809, 7
    %v3703 = vadd.f32 %v3196, %v1717
    %v3704 = vadd.f32 %v3202, %v1719
    %v3705 = vadd.f32 %v3208, %v1803
    %v3706 = vadd.f32 %v3214, %v1805
    %v3707 = vadd.f32 %v3220, %v3583
    %v3708 = vadd.f32 %v3226, %v3584
    %v3709 = vadd.f32 %v3232, %v3585
    %v3710 = vadd.f32 %v3238, %v3586
    %v3711 = vadd.f32 %v3244, %v3587
    %v3712 = vadd.f32 %v3250, %v3588
    %v3713 = vadd.f32 %v3256, %v3589
    %v3714 = vadd.f32 %v3262, %v3590
    %v3715 = vadd.f32 %v3268, %v3591
    %v3716 = vadd.f32 %v3274, %v3592
    %v3717 = vadd.f32 %v3280, %v3593
    %v3718 = vadd.f32 %v3286, %v3594
    %v3719 = vadd.f32 %v3292, %v3595
    %v3720 = vadd.f32 %v3298, %v3596
    %v3721 = vadd.f32 %v3304, %v3597
    %v3722 = vadd.f32 %v3310, %v3598
    %v3723 = vadd.f32 %v3316, %v3599
    %v3724 = vadd.f32 %v3322, %v3600
    %v3725 = vadd.f32 %v3328, %v3601
    %v3726 = vadd.f32 %v3334, %v3602
    %v3727 = vadd.f32 %v3340, %v3603
    %v3728 = vadd.f32 %v3346, %v3604
    %v3729 = vadd.f32 %v3352, %v3605
    %v3730 = vadd.f32 %v3358, %v3606
    %v3731 = vadd.f32 %v3364, %v3607
    %v3732 = vadd.f32 %v3370, %v3608
    %v3733 = vadd.f32 %v3376, %v3609
    %v3734 = vadd.f32 %v3382, %v3610
    %v3735 = vadd.f32 %v3388, %v1721
    %v3736 = vadd.f32 %v3394, %v1723
    %v3737 = vadd.f32 %v3400, %v1807
    %v3738 = vadd.f32 %v3406, %v1809
    %v3739 = vadd.f32 %v3412, %v3611
    %v3740 = vadd.f32 %v3418, %v3612
    %v3741 = vadd.f32 %v3424, %v3613
    %v3742 = vadd.f32 %v3430, %v3614
    %v3743 = vadd.f32 %v3436, %v3615
    %v3744 = vadd.f32 %v3442, %v3616
    %v3745 = vadd.f32 %v3448, %v3617
    %v3746 = vadd.f32 %v3454, %v3618
    %v3747 = vadd.f32 %v3460, %v3619
    %v3748 = vadd.f32 %v3466, %v3620
    %v3749 = vadd.f32 %v3472, %v3621
    %v3750 = vadd.f32 %v3478, %v3622
    %v3751 = vadd.f32 %v3484, %v3623
    %v3752 = vadd.f32 %v3490, %v3624
    %v3753 = vadd.f32 %v3496, %v3625
    %v3754 = vadd.f32 %v3502, %v3626
    %v3755 = vadd.f32 %v3508, %v3627
    %v3756 = vadd.f32 %v3514, %v3628
    %v3757 = vadd.f32 %v3520, %v3629
    %v3758 = vadd.f32 %v3526, %v3630
    %v3759 = vadd.f32 %v3532, %v3631
    %v3760 = vadd.f32 %v3538, %v3632
    %v3761 = vadd.f32 %v3544, %v3633
    %v3762 = vadd.f32 %v3550, %v3634
    %v3763 = vadd.f32 %v3556, %v3635
    %v3764 = vadd.f32 %v3562, %v3636
    %v3765 = vadd.f32 %v3568, %v3637
    %v3766 = vadd.f32 %v3574, %v3638
    %v3831 = vrot.slane %v3707, 7
    %v3832 = vsel %vm2944, %v3831, %v3703
    %v3833 = vrot.slane %v3711, 6
    %v3834 = vsel %vm2946, %v3833, %v3832
    %v3835 = vrot.slane %v3715, 5
    %v3836 = vsel %vm2948, %v3835, %v3834
    %v3837 = vrot.slane %v3719, 4
    %v3838 = vsel %vm2950, %v3837, %v3836
    %v3839 = vrot.slane %v3723, 3
    %v3840 = vsel %vm2952, %v3839, %v3838
    %v3841 = vrot.slane %v3727, 2
    %v3842 = vsel %vm2954, %v3841, %v3840
    %v3843 = vrot.slane %v3731, 1
    %v3844 = vsel %vm2956, %v3843, %v3842
    %v3845 = vrot.slane %v3708, 7
    %v3846 = vsel %vm2944, %v3845, %v3704
    %v3847 = vrot.slane %v3712, 6
    %v3848 = vsel %vm2946, %v3847, %v3846
    %v3849 = vrot.slane %v3716, 5
    %v3850 = vsel %vm2948, %v3849, %v3848
    %v3851 = vrot.slane %v3720, 4
    %v3852 = vsel %vm2950, %v3851, %v3850
    %v3853 = vrot.slane %v3724, 3
    %v3854 = vsel %vm2952, %v3853, %v3852
    %v3855 = vrot.slane %v3728, 2
    %v3856 = vsel %vm2954, %v3855, %v3854
    %v3857 = vrot.slane %v3732, 1
    %v3858 = vsel %vm2956, %v3857, %v3856
    %v3859 = vrot.slane %v3709, 7
    %v3860 = vsel %vm2944, %v3859, %v3705
    %v3861 = vrot.slane %v3713, 6
    %v3862 = vsel %vm2946, %v3861, %v3860
    %v3863 = vrot.slane %v3717, 5
    %v3864 = vsel %vm2948, %v3863, %v3862
    %v3865 = vrot.slane %v3721, 4
    %v3866 = vsel %vm2950, %v3865, %v3864
    %v3867 = vrot.slane %v3725, 3
    %v3868 = vsel %vm2952, %v3867, %v3866
    %v3869 = vrot.slane %v3729, 2
    %v3870 = vsel %vm2954, %v3869, %v3868
    %v3871 = vrot.slane %v3733, 1
    %v3872 = vsel %vm2956, %v3871, %v3870
    %v3873 = vrot.slane %v3710, 7
    %v3874 = vsel %vm2944, %v3873, %v3706
    %v3875 = vrot.slane %v3714, 6
    %v3876 = vsel %vm2946, %v3875, %v3874
    %v3877 = vrot.slane %v3718, 5
    %v3878 = vsel %vm2948, %v3877, %v3876
    %v3879 = vrot.slane %v3722, 4
    %v3880 = vsel %vm2950, %v3879, %v3878
    %v3881 = vrot.slane %v3726, 3
    %v3882 = vsel %vm2952, %v3881, %v3880
    %v3883 = vrot.slane %v3730, 2
    %v3884 = vsel %vm2954, %v3883, %v3882
    %v3885 = vrot.slane %v3734, 1
    %v3886 = vsel %vm2956, %v3885, %v3884
    %v3887 = vrot.slane %v3739, 7
    %v3888 = vsel %vm2944, %v3887, %v3735
    %v3889 = vrot.slane %v3743, 6
    %v3890 = vsel %vm2946, %v3889, %v3888
    %v3891 = vrot.slane %v3747, 5
    %v3892 = vsel %vm2948, %v3891, %v3890
    %v3893 = vrot.slane %v3751, 4
    %v3894 = vsel %vm2950, %v3893, %v3892
    %v3895 = vrot.slane %v3755, 3
    %v3896 = vsel %vm2952, %v3895, %v3894
    %v3897 = vrot.slane %v3759, 2
    %v3898 = vsel %vm2954, %v3897, %v3896
    %v3899 = vrot.slane %v3763, 1
    %v3900 = vsel %vm2956, %v3899, %v3898
    %v3901 = vrot.slane %v3740, 7
    %v3902 = vsel %vm2944, %v3901, %v3736
    %v3903 = vrot.slane %v3744, 6
    %v3904 = vsel %vm2946, %v3903, %v3902
    %v3905 = vrot.slane %v3748, 5
    %v3906 = vsel %vm2948, %v3905, %v3904
    %v3907 = vrot.slane %v3752, 4
    %v3908 = vsel %vm2950, %v3907, %v3906
    %v3909 = vrot.slane %v3756, 3
    %v3910 = vsel %vm2952, %v3909, %v3908
    %v3911 = vrot.slane %v3760, 2
    %v3912 = vsel %vm2954, %v3911, %v3910
    %v3913 = vrot.slane %v3764, 1
    %v3914 = vsel %vm2956, %v3913, %v3912
    %v3915 = vrot.slane %v3741, 7
    %v3916 = vsel %vm2944, %v3915, %v3737
    %v3917 = vrot.slane %v3745, 6
    %v3918 = vsel %vm2946, %v3917, %v3916
    %v3919 = vrot.slane %v3749, 5
    %v3920 = vsel %vm2948, %v3919, %v3918
    %v3921 = vrot.slane %v3753, 4
    %v3922 = vsel %vm2950, %v3921, %v3920
    %v3923 = vrot.slane %v3757, 3
    %v3924 = vsel %vm2952, %v3923, %v3922
    %v3925 = vrot.slane %v3761, 2
    %v3926 = vsel %vm2954, %v3925, %v3924
    %v3927 = vrot.slane %v3765, 1
    %v3928 = vsel %vm2956, %v3927, %v3926
    %v3929 = vrot.slane %v3742, 7
    %v3930 = vsel %vm2944, %v3929, %v3738
    %v3931 = vrot.slane %v3746, 6
    %v3932 = vsel %vm2946, %v3931, %v3930
    %v3933 = vrot.slane %v3750, 5
    %v3934 = vsel %vm2948, %v3933, %v3932
    %v3935 = vrot.slane %v3754, 4
    %v3936 = vsel %vm2950, %v3935, %v3934
    %v3937 = vrot.slane %v3758, 3
    %v3938 = vsel %vm2952, %v3937, %v3936
    %v3939 = vrot.slane %v3762, 2
    %v3940 = vsel %vm2954, %v3939, %v3938
    %v3941 = vrot.slane %v3766, 1
    %v3942 = vsel %vm2956, %v3941, %v3940
    %v3951 = vadd.f32 %v3844, %v3858
    %v3952 = vadd.f32 %v3951, %v3872
    %v3953 = vadd.f32 %v3952, %v3886
    %v3954 = vadd.f32 %v3953, %v3900
    %v3955 = vadd.f32 %v3954, %v3914
    %v3956 = vadd.f32 %v3955, %v3928
    %v3957 = vadd.f32 %v3956, %v3942
    %3958 = vadd.xlane.f32.xlu0 %v3957
    %v3959 = vpop.xlane.xlu0 %3958
    %v3960 = vrcp.pop 1024.0
    %v3961 = vmul.f32 %v3959, %v3960
    %v3963 = vrot.slane %v3961, 1
    %v3964 = vrot.slane %v3961, 2
    %v3965 = vrot.slane %v3961, 3
    %v3966 = vrot.slane %v3961, 4
    %v3967 = vrot.slane %v3961, 5
    %v3968 = vrot.slane %v3961, 6
    %v3969 = vrot.slane %v3961, 7
    %v3978 = vsub.f32 %v3703, %v3961
    %v3979 = vsub.f32 %v3704, %v3961
    %v3980 = vsub.f32 %v3705, %v3961
    %v3981 = vsub.f32 %v3706, %v3961
    %v3982 = vsub.f32 %v3707, %v3963
    %v3983 = vsub.f32 %v3708, %v3963
    %v3984 = vsub.f32 %v3709, %v3963
    %v3985 = vsub.f32 %v3710, %v3963
    %v3986 = vsub.f32 %v3711, %v3964
    %v3987 = vsub.f32 %v3712, %v3964
    %v3988 = vsub.f32 %v3713, %v3964
    %v3989 = vsub.f32 %v3714, %v3964
    %v3990 = vsub.f32 %v3715, %v3965
    %v3991 = vsub.f32 %v3716, %v3965
    %v3992 = vsub.f32 %v3717, %v3965
    %v3993 = vsub.f32 %v3718, %v3965
    %v3994 = vsub.f32 %v3719, %v3966
    %v3995 = vsub.f32 %v3720, %v3966
    %v3996 = vsub.f32 %v3721, %v3966
    %v3997 = vsub.f32 %v3722, %v3966
    %v3998 = vsub.f32 %v3723, %v3967
    %v3999 = vsub.f32 %v3724, %v3967
    %v4000 = vsub.f32 %v3725, %v3967
    %v4001 = vsub.f32 %v3726, %v3967
    %v4002 = vsub.f32 %v3727, %v3968
    %v4003 = vsub.f32 %v3728, %v3968
    %v4004 = vsub.f32 %v3729, %v3968
    %v4005 = vsub.f32 %v3730, %v3968
    %v4006 = vsub.f32 %v3731, %v3969
    %v4007 = vsub.f32 %v3732, %v3969
    %v4008 = vsub.f32 %v3733, %v3969
    %v4009 = vsub.f32 %v3734, %v3969
    %v4010 = vsub.f32 %v3735, %v3961
    %v4011 = vsub.f32 %v3736, %v3961
    %v4012 = vsub.f32 %v3737, %v3961
    %v4013 = vsub.f32 %v3738, %v3961
    %v4014 = vsub.f32 %v3739, %v3963
    %v4015 = vsub.f32 %v3740, %v3963
    %v4016 = vsub.f32 %v3741, %v3963
    %v4017 = vsub.f32 %v3742, %v3963
    %v4018 = vsub.f32 %v3743, %v3964
    %v4019 = vsub.f32 %v3744, %v3964
    %v4020 = vsub.f32 %v3745, %v3964
    %v4021 = vsub.f32 %v3746, %v3964
    %v4022 = vsub.f32 %v3747, %v3965
    %v4023 = vsub.f32 %v3748, %v3965
    %v4024 = vsub.f32 %v3749, %v3965
    %v4025 = vsub.f32 %v3750, %v3965
    %v4026 = vsub.f32 %v3751, %v3966
    %v4027 = vsub.f32 %v3752, %v3966
    %v4028 = vsub.f32 %v3753, %v3966
    %v4029 = vsub.f32 %v3754, %v3966
    %v4030 = vsub.f32 %v3755, %v3967
    %v4031 = vsub.f32 %v3756, %v3967
    %v4032 = vsub.f32 %v3757, %v3967
    %v4033 = vsub.f32 %v3758, %v3967
    %v4034 = vsub.f32 %v3759, %v3968
    %v4035 = vsub.f32 %v3760, %v3968
    %v4036 = vsub.f32 %v3761, %v3968
    %v4037 = vsub.f32 %v3762, %v3968
    %v4038 = vsub.f32 %v3763, %v3969
    %v4039 = vsub.f32 %v3764, %v3969
    %v4040 = vsub.f32 %v3765, %v3969
    %v4041 = vsub.f32 %v3766, %v3969
    %v4042 = vmul.f32 %v3978, %v3978
    %v4043 = vmul.f32 %v3979, %v3979
    %v4044 = vmul.f32 %v3980, %v3980
    %v4045 = vmul.f32 %v3981, %v3981
    %v4046 = vmul.f32 %v3982, %v3982
    %v4047 = vmul.f32 %v3983, %v3983
    %v4048 = vmul.f32 %v3984, %v3984
    %v4049 = vmul.f32 %v3985, %v3985
    %v4050 = vmul.f32 %v3986, %v3986
    %v4051 = vmul.f32 %v3987, %v3987
    %v4052 = vmul.f32 %v3988, %v3988
    %v4053 = vmul.f32 %v3989, %v3989
    %v4054 = vmul.f32 %v3990, %v3990
    %v4055 = vmul.f32 %v3991, %v3991
    %v4056 = vmul.f32 %v3992, %v3992
    %v4057 = vmul.f32 %v3993, %v3993
    %v4058 = vmul.f32 %v3994, %v3994
    %v4059 = vmul.f32 %v3995, %v3995
    %v4060 = vmul.f32 %v3996, %v3996
    %v4061 = vmul.f32 %v3997, %v3997
    %v4062 = vmul.f32 %v3998, %v3998
    %v4063 = vmul.f32 %v3999, %v3999
    %v4064 = vmul.f32 %v4000, %v4000
    %v4065 = vmul.f32 %v4001, %v4001
    %v4066 = vmul.f32 %v4002, %v4002
    %v4067 = vmul.f32 %v4003, %v4003
    %v4068 = vmul.f32 %v4004, %v4004
    %v4069 = vmul.f32 %v4005, %v4005
    %v4070 = vmul.f32 %v4006, %v4006
    %v4071 = vmul.f32 %v4007, %v4007
    %v4072 = vmul.f32 %v4008, %v4008
    %v4073 = vmul.f32 %v4009, %v4009
    %v4074 = vmul.f32 %v4010, %v4010
    %v4075 = vmul.f32 %v4011, %v4011
    %v4076 = vmul.f32 %v4012, %v4012
    %v4077 = vmul.f32 %v4013, %v4013
    %v4078 = vmul.f32 %v4014, %v4014
    %v4079 = vmul.f32 %v4015, %v4015
    %v4080 = vmul.f32 %v4016, %v4016
    %v4081 = vmul.f32 %v4017, %v4017
    %v4082 = vmul.f32 %v4018, %v4018
    %v4083 = vmul.f32 %v4019, %v4019
    %v4084 = vmul.f32 %v4020, %v4020
    %v4085 = vmul.f32 %v4021, %v4021
    %v4086 = vmul.f32 %v4022, %v4022
    %v4087 = vmul.f32 %v4023, %v4023
    %v4088 = vmul.f32 %v4024, %v4024
    %v4089 = vmul.f32 %v4025, %v4025
    %v4090 = vmul.f32 %v4026, %v4026
    %v4091 = vmul.f32 %v4027, %v4027
    %v4092 = vmul.f32 %v4028, %v4028
    %v4093 = vmul.f32 %v4029, %v4029
    %v4094 = vmul.f32 %v4030, %v4030
    %v4095 = vmul.f32 %v4031, %v4031
    %v4096 = vmul.f32 %v4032, %v4032
    %v4097 = vmul.f32 %v4033, %v4033
    %v4098 = vmul.f32 %v4034, %v4034
    %v4099 = vmul.f32 %v4035, %v4035
    %v4100 = vmul.f32 %v4036, %v4036
    %v4101 = vmul.f32 %v4037, %v4037
    %v4102 = vmul.f32 %v4038, %v4038
    %v4103 = vmul.f32 %v4039, %v4039
    %v4104 = vmul.f32 %v4040, %v4040
    %v4105 = vmul.f32 %v4041, %v4041
    %v4170 = vrot.slane %v4046, 7
    %v4171 = vsel %vm2944, %v4170, %v4042
    %v4172 = vrot.slane %v4050, 6
    %v4173 = vsel %vm2946, %v4172, %v4171
    %v4174 = vrot.slane %v4054, 5
    %v4175 = vsel %vm2948, %v4174, %v4173
    %v4176 = vrot.slane %v4058, 4
    %v4177 = vsel %vm2950, %v4176, %v4175
    %v4178 = vrot.slane %v4062, 3
    %v4179 = vsel %vm2952, %v4178, %v4177
    %v4180 = vrot.slane %v4066, 2
    %v4181 = vsel %vm2954, %v4180, %v4179
    %v4182 = vrot.slane %v4070, 1
    %v4183 = vsel %vm2956, %v4182, %v4181
    %v4184 = vrot.slane %v4047, 7
    %v4185 = vsel %vm2944, %v4184, %v4043
    %v4186 = vrot.slane %v4051, 6
    %v4187 = vsel %vm2946, %v4186, %v4185
    %v4188 = vrot.slane %v4055, 5
    %v4189 = vsel %vm2948, %v4188, %v4187
    %v4190 = vrot.slane %v4059, 4
    %v4191 = vsel %vm2950, %v4190, %v4189
    %v4192 = vrot.slane %v4063, 3
    %v4193 = vsel %vm2952, %v4192, %v4191
    %v4194 = vrot.slane %v4067, 2
    %v4195 = vsel %vm2954, %v4194, %v4193
    %v4196 = vrot.slane %v4071, 1
    %v4197 = vsel %vm2956, %v4196, %v4195
    %v4198 = vrot.slane %v4048, 7
    %v4199 = vsel %vm2944, %v4198, %v4044
    %v4200 = vrot.slane %v4052, 6
    %v4201 = vsel %vm2946, %v4200, %v4199
    %v4202 = vrot.slane %v4056, 5
    %v4203 = vsel %vm2948, %v4202, %v4201
    %v4204 = vrot.slane %v4060, 4
    %v4205 = vsel %vm2950, %v4204, %v4203
    %v4206 = vrot.slane %v4064, 3
    %v4207 = vsel %vm2952, %v4206, %v4205
    %v4208 = vrot.slane %v4068, 2
    %v4209 = vsel %vm2954, %v4208, %v4207
    %v4210 = vrot.slane %v4072, 1
    %v4211 = vsel %vm2956, %v4210, %v4209
    %v4212 = vrot.slane %v4049, 7
    %v4213 = vsel %vm2944, %v4212, %v4045
    %v4214 = vrot.slane %v4053, 6
    %v4215 = vsel %vm2946, %v4214, %v4213
    %v4216 = vrot.slane %v4057, 5
    %v4217 = vsel %vm2948, %v4216, %v4215
    %v4218 = vrot.slane %v4061, 4
    %v4219 = vsel %vm2950, %v4218, %v4217
    %v4220 = vrot.slane %v4065, 3
    %v4221 = vsel %vm2952, %v4220, %v4219
    %v4222 = vrot.slane %v4069, 2
    %v4223 = vsel %vm2954, %v4222, %v4221
    %v4224 = vrot.slane %v4073, 1
    %v4225 = vsel %vm2956, %v4224, %v4223
    %v4226 = vrot.slane %v4078, 7
    %v4227 = vsel %vm2944, %v4226, %v4074
    %v4228 = vrot.slane %v4082, 6
    %v4229 = vsel %vm2946, %v4228, %v4227
    %v4230 = vrot.slane %v4086, 5
    %v4231 = vsel %vm2948, %v4230, %v4229
    %v4232 = vrot.slane %v4090, 4
    %v4233 = vsel %vm2950, %v4232, %v4231
    %v4234 = vrot.slane %v4094, 3
    %v4235 = vsel %vm2952, %v4234, %v4233
    %v4236 = vrot.slane %v4098, 2
    %v4237 = vsel %vm2954, %v4236, %v4235
    %v4238 = vrot.slane %v4102, 1
    %v4239 = vsel %vm2956, %v4238, %v4237
    %v4240 = vrot.slane %v4079, 7
    %v4241 = vsel %vm2944, %v4240, %v4075
    %v4242 = vrot.slane %v4083, 6
    %v4243 = vsel %vm2946, %v4242, %v4241
    %v4244 = vrot.slane %v4087, 5
    %v4245 = vsel %vm2948, %v4244, %v4243
    %v4246 = vrot.slane %v4091, 4
    %v4247 = vsel %vm2950, %v4246, %v4245
    %v4248 = vrot.slane %v4095, 3
    %v4249 = vsel %vm2952, %v4248, %v4247
    %v4250 = vrot.slane %v4099, 2
    %v4251 = vsel %vm2954, %v4250, %v4249
    %v4252 = vrot.slane %v4103, 1
    %v4253 = vsel %vm2956, %v4252, %v4251
    %v4254 = vrot.slane %v4080, 7
    %v4255 = vsel %vm2944, %v4254, %v4076
    %v4256 = vrot.slane %v4084, 6
    %v4257 = vsel %vm2946, %v4256, %v4255
    %v4258 = vrot.slane %v4088, 5
    %v4259 = vsel %vm2948, %v4258, %v4257
    %v4260 = vrot.slane %v4092, 4
    %v4261 = vsel %vm2950, %v4260, %v4259
    %v4262 = vrot.slane %v4096, 3
    %v4263 = vsel %vm2952, %v4262, %v4261
    %v4264 = vrot.slane %v4100, 2
    %v4265 = vsel %vm2954, %v4264, %v4263
    %v4266 = vrot.slane %v4104, 1
    %v4267 = vsel %vm2956, %v4266, %v4265
    %v4268 = vrot.slane %v4081, 7
    %v4269 = vsel %vm2944, %v4268, %v4077
    %v4270 = vrot.slane %v4085, 6
    %v4271 = vsel %vm2946, %v4270, %v4269
    %v4272 = vrot.slane %v4089, 5
    %v4273 = vsel %vm2948, %v4272, %v4271
    %v4274 = vrot.slane %v4093, 4
    %v4275 = vsel %vm2950, %v4274, %v4273
    %v4276 = vrot.slane %v4097, 3
    %v4277 = vsel %vm2952, %v4276, %v4275
    %v4278 = vrot.slane %v4101, 2
    %v4279 = vsel %vm2954, %v4278, %v4277
    %v4280 = vrot.slane %v4105, 1
    %v4281 = vsel %vm2956, %v4280, %v4279
    %v4290 = vadd.f32 %v4183, %v4197
    %v4291 = vadd.f32 %v4290, %v4211
    %v4292 = vadd.f32 %v4291, %v4225
    %v4293 = vadd.f32 %v4292, %v4239
    %v4294 = vadd.f32 %v4293, %v4253
    %v4295 = vadd.f32 %v4294, %v4267
    %v4296 = vadd.f32 %v4295, %v4281
    %4297 = vadd.xlane.f32.xlu0 %v4296
    %v4298 = vpop.xlane.xlu0 %4297
    %v4299 = vmul.f32 %v4298, %v3960
    %v4300 = vadd.f32 %v4299, 1e-05
    %v4301 = vrsqrt.pop %v4300
    %v4303 = vrot.slane %v4301, 1
    %v4304 = vrot.slane %v4301, 2
    %v4305 = vrot.slane %v4301, 3
    %v4306 = vrot.slane %v4301, 4
    %v4307 = vrot.slane %v4301, 5
    %v4308 = vrot.slane %v4301, 6
    %v4309 = vrot.slane %v4301, 7
    %v4318 = vmul.f32 %v3978, %v4301
    %v4319 = vmul.f32 %v3979, %v4301
    %v4320 = vmul.f32 %v3980, %v4301
    %v4321 = vmul.f32 %v3981, %v4301
    %v4322 = vmul.f32 %v3982, %v4303
    %v4323 = vmul.f32 %v3983, %v4303
    %v4324 = vmul.f32 %v3984, %v4303
    %v4325 = vmul.f32 %v3985, %v4303
    %v4326 = vmul.f32 %v3986, %v4304
    %v4327 = vmul.f32 %v3987, %v4304
    %v4328 = vmul.f32 %v3988, %v4304
    %v4329 = vmul.f32 %v3989, %v4304
    %v4330 = vmul.f32 %v3990, %v4305
    %v4331 = vmul.f32 %v3991, %v4305
    %v4332 = vmul.f32 %v3992, %v4305
    %v4333 = vmul.f32 %v3993, %v4305
    %v4334 = vmul.f32 %v3994, %v4306
    %v4335 = vmul.f32 %v3995, %v4306
    %v4336 = vmul.f32 %v3996, %v4306
    %v4337 = vmul.f32 %v3997, %v4306
    %v4338 = vmul.f32 %v3998, %v4307
    %v4339 = vmul.f32 %v3999, %v4307
    %v4340 = vmul.f32 %v4000, %v4307
    %v4341 = vmul.f32 %v4001, %v4307
    %v4342 = vmul.f32 %v4002, %v4308
    %v4343 = vmul.f32 %v4003, %v4308
    %v4344 = vmul.f32 %v4004, %v4308
    %v4345 = vmul.f32 %v4005, %v4308
    %v4346 = vmul.f32 %v4006, %v4309
    %v4347 = vmul.f32 %v4007, %v4309
    %v4348 = vmul.f32 %v4008, %v4309
    %v4349 = vmul.f32 %v4009, %v4309
    %v4350 = vmul.f32 %v4010, %v4301
    %v4351 = vmul.f32 %v4011, %v4301
    %v4352 = vmul.f32 %v4012, %v4301
    %v4353 = vmul.f32 %v4013, %v4301
    %v4354 = vmul.f32 %v4014, %v4303
    %v4355 = vmul.f32 %v4015, %v4303
    %v4356 = vmul.f32 %v4016, %v4303
    %v4357 = vmul.f32 %v4017, %v4303
    %v4358 = vmul.f32 %v4018, %v4304
    %v4359 = vmul.f32 %v4019, %v4304
    %v4360 = vmul.f32 %v4020, %v4304
    %v4361 = vmul.f32 %v4021, %v4304
    %v4362 = vmul.f32 %v4022, %v4305
    %v4363 = vmul.f32 %v4023, %v4305
    %v4364 = vmul.f32 %v4024, %v4305
    %v4365 = vmul.f32 %v4025, %v4305
    %v4366 = vmul.f32 %v4026, %v4306
    %v4367 = vmul.f32 %v4027, %v4306
    %v4368 = vmul.f32 %v4028, %v4306
    %v4369 = vmul.f32 %v4029, %v4306
    %v4370 = vmul.f32 %v4030, %v4307
    %v4371 = vmul.f32 %v4031, %v4307
    %v4372 = vmul.f32 %v4032, %v4307
    %v4373 = vmul.f32 %v4033, %v4307
    %v4374 = vmul.f32 %v4034, %v4308
    %v4375 = vmul.f32 %v4035, %v4308
    %v4376 = vmul.f32 %v4036, %v4308
    %v4377 = vmul.f32 %v4037, %v4308
    %v4378 = vmul.f32 %v4038, %v4309
    %v4379 = vmul.f32 %v4039, %v4309
    %v4380 = vmul.f32 %v4040, %v4309
    %v4381 = vmul.f32 %v4041, %v4309
    %4383 = vset.pattern.permute.xlu0 0
    %4384 = vperm.xlu0 %4383, %v1983
    %v4385 = vpop.permute.xlu0 %4384
    %v4386 = vrot.slane %v4385, 1
    %v4387 = vrot.slane %v4385, 2
    %v4388 = vrot.slane %v4385, 3
    %v4389 = vrot.slane %v4385, 4
    %v4390 = vrot.slane %v4385, 5
    %v4391 = vrot.slane %v4385, 6
    %v4392 = vrot.slane %v4385, 7
    %v4401 = vmul.f32 %v4318, %v4385
    %v4402 = vmul.f32 %v4319, %v4385
    %v4403 = vmul.f32 %v4320, %v4385
    %v4404 = vmul.f32 %v4321, %v4385
    %v4405 = vmul.f32 %v4322, %v4386
    %v4406 = vmul.f32 %v4323, %v4386
    %v4407 = vmul.f32 %v4324, %v4386
    %v4408 = vmul.f32 %v4325, %v4386
    %v4409 = vmul.f32 %v4326, %v4387
    %v4410 = vmul.f32 %v4327, %v4387
    %v4411 = vmul.f32 %v4328, %v4387
    %v4412 = vmul.f32 %v4329, %v4387
    %v4413 = vmul.f32 %v4330, %v4388
    %v4414 = vmul.f32 %v4331, %v4388
    %v4415 = vmul.f32 %v4332, %v4388
    %v4416 = vmul.f32 %v4333, %v4388
    %v4417 = vmul.f32 %v4334, %v4389
    %v4418 = vmul.f32 %v4335, %v4389
    %v4419 = vmul.f32 %v4336, %v4389
    %v4420 = vmul.f32 %v4337, %v4389
    %v4421 = vmul.f32 %v4338, %v4390
    %v4422 = vmul.f32 %v4339, %v4390
    %v4423 = vmul.f32 %v4340, %v4390
    %v4424 = vmul.f32 %v4341, %v4390
    %v4425 = vmul.f32 %v4342, %v4391
    %v4426 = vmul.f32 %v4343, %v4391
    %v4427 = vmul.f32 %v4344, %v4391
    %v4428 = vmul.f32 %v4345, %v4391
    %v4429 = vmul.f32 %v4346, %v4392
    %v4430 = vmul.f32 %v4347, %v4392
    %v4431 = vmul.f32 %v4348, %v4392
    %v4432 = vmul.f32 %v4349, %v4392
    %v4433 = vmul.f32 %v4350, %v4385
    %v4434 = vmul.f32 %v4351, %v4385
    %v4435 = vmul.f32 %v4352, %v4385
    %v4436 = vmul.f32 %v4353, %v4385
    %v4437 = vmul.f32 %v4354, %v4386
    %v4438 = vmul.f32 %v4355, %v4386
    %v4439 = vmul.f32 %v4356, %v4386
    %v4440 = vmul.f32 %v4357, %v4386
    %v4441 = vmul.f32 %v4358, %v4387
    %v4442 = vmul.f32 %v4359, %v4387
    %v4443 = vmul.f32 %v4360, %v4387
    %v4444 = vmul.f32 %v4361, %v4387
    %v4445 = vmul.f32 %v4362, %v4388
    %v4446 = vmul.f32 %v4363, %v4388
    %v4447 = vmul.f32 %v4364, %v4388
    %v4448 = vmul.f32 %v4365, %v4388
    %v4449 = vmul.f32 %v4366, %v4389
    %v4450 = vmul.f32 %v4367, %v4389
    %v4451 = vmul.f32 %v4368, %v4389
    %v4452 = vmul.f32 %v4369, %v4389
    %v4453 = vmul.f32 %v4370, %v4390
    %v4454 = vmul.f32 %v4371, %v4390
    %v4455 = vmul.f32 %v4372, %v4390
    %v4456 = vmul.f32 %v4373, %v4390
    %v4457 = vmul.f32 %v4374, %v4391
    %v4458 = vmul.f32 %v4375, %v4391
    %v4459 = vmul.f32 %v4376, %v4391
    %v4460 = vmul.f32 %v4377, %v4391
    %v4461 = vmul.f32 %v4378, %v4392
    %v4462 = vmul.f32 %v4379, %v4392
    %v4463 = vmul.f32 %v4380, %v4392
    %v4464 = vmul.f32 %v4381, %v4392
    %4466 = vset.pattern.permute.xlu0 0
    %4467 = vperm.xlu0 %4466, %v1984
    %v4468 = vpop.permute.xlu0 %4467
    %v4469 = vrot.slane %v4468, 1
    %v4470 = vrot.slane %v4468, 2
    %v4471 = vrot.slane %v4468, 3
    %v4472 = vrot.slane %v4468, 4
    %v4473 = vrot.slane %v4468, 5
    %v4474 = vrot.slane %v4468, 6
    %v4475 = vrot.slane %v4468, 7
    %v4484 = vadd.f32 %v4401, %v4468
    %v4485 = vadd.f32 %v4402, %v4468
    %v4486 = vadd.f32 %v4403, %v4468
    %v4487 = vadd.f32 %v4404, %v4468
    %v4488 = vadd.f32 %v4405, %v4469
    %v4489 = vadd.f32 %v4406, %v4469
    %v4490 = vadd.f32 %v4407, %v4469
    %v4491 = vadd.f32 %v4408, %v4469
    %v4492 = vadd.f32 %v4409, %v4470
    %v4493 = vadd.f32 %v4410, %v4470
    %v4494 = vadd.f32 %v4411, %v4470
    %v4495 = vadd.f32 %v4412, %v4470
    %v4496 = vadd.f32 %v4413, %v4471
    %v4497 = vadd.f32 %v4414, %v4471
    %v4498 = vadd.f32 %v4415, %v4471
    %v4499 = vadd.f32 %v4416, %v4471
    %v4500 = vadd.f32 %v4417, %v4472
    %v4501 = vadd.f32 %v4418, %v4472
    %v4502 = vadd.f32 %v4419, %v4472
    %v4503 = vadd.f32 %v4420, %v4472
    %v4504 = vadd.f32 %v4421, %v4473
    %v4505 = vadd.f32 %v4422, %v4473
    %v4506 = vadd.f32 %v4423, %v4473
    %v4507 = vadd.f32 %v4424, %v4473
    %v4508 = vadd.f32 %v4425, %v4474
    %v4509 = vadd.f32 %v4426, %v4474
    %v4510 = vadd.f32 %v4427, %v4474
    %v4511 = vadd.f32 %v4428, %v4474
    %v4512 = vadd.f32 %v4429, %v4475
    %v4513 = vadd.f32 %v4430, %v4475
    %v4514 = vadd.f32 %v4431, %v4475
    %v4515 = vadd.f32 %v4432, %v4475
    %v4516 = vadd.f32 %v4433, %v4468
    %v4517 = vadd.f32 %v4434, %v4468
    %v4518 = vadd.f32 %v4435, %v4468
    %v4519 = vadd.f32 %v4436, %v4468
    %v4520 = vadd.f32 %v4437, %v4469
    %v4521 = vadd.f32 %v4438, %v4469
    %v4522 = vadd.f32 %v4439, %v4469
    %v4523 = vadd.f32 %v4440, %v4469
    %v4524 = vadd.f32 %v4441, %v4470
    %v4525 = vadd.f32 %v4442, %v4470
    %v4526 = vadd.f32 %v4443, %v4470
    %v4527 = vadd.f32 %v4444, %v4470
    %v4528 = vadd.f32 %v4445, %v4471
    %v4529 = vadd.f32 %v4446, %v4471
    %v4530 = vadd.f32 %v4447, %v4471
    %v4531 = vadd.f32 %v4448, %v4471
    %v4532 = vadd.f32 %v4449, %v4472
    %v4533 = vadd.f32 %v4450, %v4472
    %v4534 = vadd.f32 %v4451, %v4472
    %v4535 = vadd.f32 %v4452, %v4472
    %v4536 = vadd.f32 %v4453, %v4473
    %v4537 = vadd.f32 %v4454, %v4473
    %v4538 = vadd.f32 %v4455, %v4473
    %v4539 = vadd.f32 %v4456, %v4473
    %v4540 = vadd.f32 %v4457, %v4474
    %v4541 = vadd.f32 %v4458, %v4474
    %v4542 = vadd.f32 %v4459, %v4474
    %v4543 = vadd.f32 %v4460, %v4474
    %v4544 = vadd.f32 %v4461, %v4475
    %v4545 = vadd.f32 %v4462, %v4475
    %v4546 = vadd.f32 %v4463, %v4475
    %v4547 = vadd.f32 %v4464, %v4475
    %v4612 = vrot.slane %v4488, 7
    %v4613 = vsel %vm2944, %v4612, %v4484
    %v4614 = vrot.slane %v4492, 6
    %v4615 = vsel %vm2946, %v4614, %v4613
    %v4616 = vrot.slane %v4496, 5
    %v4617 = vsel %vm2948, %v4616, %v4615
    %v4618 = vrot.slane %v4500, 4
    %v4619 = vsel %vm2950, %v4618, %v4617
    %v4620 = vrot.slane %v4504, 3
    %v4621 = vsel %vm2952, %v4620, %v4619
    %v4622 = vrot.slane %v4508, 2
    %v4623 = vsel %vm2954, %v4622, %v4621
    %v4624 = vrot.slane %v4512, 1
    %v4625 = vsel %vm2956, %v4624, %v4623
    %v4626 = vrot.slane %v4489, 7
    %v4627 = vsel %vm2944, %v4626, %v4485
    %v4628 = vrot.slane %v4493, 6
    %v4629 = vsel %vm2946, %v4628, %v4627
    %v4630 = vrot.slane %v4497, 5
    %v4631 = vsel %vm2948, %v4630, %v4629
    %v4632 = vrot.slane %v4501, 4
    %v4633 = vsel %vm2950, %v4632, %v4631
    %v4634 = vrot.slane %v4505, 3
    %v4635 = vsel %vm2952, %v4634, %v4633
    %v4636 = vrot.slane %v4509, 2
    %v4637 = vsel %vm2954, %v4636, %v4635
    %v4638 = vrot.slane %v4513, 1
    %v4639 = vsel %vm2956, %v4638, %v4637
    %v4640 = vrot.slane %v4490, 7
    %v4641 = vsel %vm2944, %v4640, %v4486
    %v4642 = vrot.slane %v4494, 6
    %v4643 = vsel %vm2946, %v4642, %v4641
    %v4644 = vrot.slane %v4498, 5
    %v4645 = vsel %vm2948, %v4644, %v4643
    %v4646 = vrot.slane %v4502, 4
    %v4647 = vsel %vm2950, %v4646, %v4645
    %v4648 = vrot.slane %v4506, 3
    %v4649 = vsel %vm2952, %v4648, %v4647
    %v4650 = vrot.slane %v4510, 2
    %v4651 = vsel %vm2954, %v4650, %v4649
    %v4652 = vrot.slane %v4514, 1
    %v4653 = vsel %vm2956, %v4652, %v4651
    %v4654 = vrot.slane %v4491, 7
    %v4655 = vsel %vm2944, %v4654, %v4487
    %v4656 = vrot.slane %v4495, 6
    %v4657 = vsel %vm2946, %v4656, %v4655
    %v4658 = vrot.slane %v4499, 5
    %v4659 = vsel %vm2948, %v4658, %v4657
    %v4660 = vrot.slane %v4503, 4
    %v4661 = vsel %vm2950, %v4660, %v4659
    %v4662 = vrot.slane %v4507, 3
    %v4663 = vsel %vm2952, %v4662, %v4661
    %v4664 = vrot.slane %v4511, 2
    %v4665 = vsel %vm2954, %v4664, %v4663
    %v4666 = vrot.slane %v4515, 1
    %v4667 = vsel %vm2956, %v4666, %v4665
    %v4668 = vrot.slane %v4520, 7
    %v4669 = vsel %vm2944, %v4668, %v4516
    %v4670 = vrot.slane %v4524, 6
    %v4671 = vsel %vm2946, %v4670, %v4669
    %v4672 = vrot.slane %v4528, 5
    %v4673 = vsel %vm2948, %v4672, %v4671
    %v4674 = vrot.slane %v4532, 4
    %v4675 = vsel %vm2950, %v4674, %v4673
    %v4676 = vrot.slane %v4536, 3
    %v4677 = vsel %vm2952, %v4676, %v4675
    %v4678 = vrot.slane %v4540, 2
    %v4679 = vsel %vm2954, %v4678, %v4677
    %v4680 = vrot.slane %v4544, 1
    %v4681 = vsel %vm2956, %v4680, %v4679
    %v4682 = vrot.slane %v4521, 7
    %v4683 = vsel %vm2944, %v4682, %v4517
    %v4684 = vrot.slane %v4525, 6
    %v4685 = vsel %vm2946, %v4684, %v4683
    %v4686 = vrot.slane %v4529, 5
    %v4687 = vsel %vm2948, %v4686, %v4685
    %v4688 = vrot.slane %v4533, 4
    %v4689 = vsel %vm2950, %v4688, %v4687
    %v4690 = vrot.slane %v4537, 3
    %v4691 = vsel %vm2952, %v4690, %v4689
    %v4692 = vrot.slane %v4541, 2
    %v4693 = vsel %vm2954, %v4692, %v4691
    %v4694 = vrot.slane %v4545, 1
    %v4695 = vsel %vm2956, %v4694, %v4693
    %v4696 = vrot.slane %v4522, 7
    %v4697 = vsel %vm2944, %v4696, %v4518
    %v4698 = vrot.slane %v4526, 6
    %v4699 = vsel %vm2946, %v4698, %v4697
    %v4700 = vrot.slane %v4530, 5
    %v4701 = vsel %vm2948, %v4700, %v4699
    %v4702 = vrot.slane %v4534, 4
    %v4703 = vsel %vm2950, %v4702, %v4701
    %v4704 = vrot.slane %v4538, 3
    %v4705 = vsel %vm2952, %v4704, %v4703
    %v4706 = vrot.slane %v4542, 2
    %v4707 = vsel %vm2954, %v4706, %v4705
    %v4708 = vrot.slane %v4546, 1
    %v4709 = vsel %vm2956, %v4708, %v4707
    %v4710 = vrot.slane %v4523, 7
    %v4711 = vsel %vm2944, %v4710, %v4519
    %v4712 = vrot.slane %v4527, 6
    %v4713 = vsel %vm2946, %v4712, %v4711
    %v4714 = vrot.slane %v4531, 5
    %v4715 = vsel %vm2948, %v4714, %v4713
    %v4716 = vrot.slane %v4535, 4
    %v4717 = vsel %vm2950, %v4716, %v4715
    %v4718 = vrot.slane %v4539, 3
    %v4719 = vsel %vm2952, %v4718, %v4717
    %v4720 = vrot.slane %v4543, 2
    %v4721 = vsel %vm2954, %v4720, %v4719
    %v4722 = vrot.slane %v4547, 1
    %v4723 = vsel %vm2956, %v4722, %v4721
    %v4732 = vadd.f32 %v49, %v4625
    %v4733 = vadd.f32 %v50, %v4639
    %v4734 = vadd.f32 %v51, %v4653
    %v4735 = vadd.f32 %v52, %v4667
    %v4736 = vadd.f32 %v53, %v4681
    %v4737 = vadd.f32 %v54, %v4695
    %v4738 = vadd.f32 %v55, %v4709
    %v4739 = vadd.f32 %v56, %v4723
    %v4740 = vmax.f32 %v4732, 0.0
    %v4741 = vmax.f32 %v4733, 0.0
    %v4742 = vmax.f32 %v4734, 0.0
    %v4743 = vmax.f32 %v4735, 0.0
    %v4744 = vmax.f32 %v4736, 0.0
    %v4745 = vmax.f32 %v4737, 0.0
    %v4746 = vmax.f32 %v4738, 0.0
    %v4747 = vmax.f32 %v4739, 0.0
    %4748 = vst [vmem:[#allocation7] sm:$0xff] %v4740
    %4749 = vst [vmem:[#allocation7 + $0x8] sm:$0xff] %v4741
    %4750 = vst [vmem:[#allocation7 + $0x10] sm:$0xff] %v4742
    %4751 = vst [vmem:[#allocation7 + $0x18] sm:$0xff] %v4743
    %4752 = vst [vmem:[#allocation7 + $0x20] sm:$0xff] %v4744
    %4753 = vst [vmem:[#allocation7 + $0x28] sm:$0xff] %v4745
    %4754 = vst [vmem:[#allocation7 + $0x30] sm:$0xff] %v4746
    %4755 = vst [vmem:[#allocation7 + $0x38] sm:$0xff] %v4747
    // Predicated region
    $region30: #{tpu_custom_call.1} parent=1 // pred_check
      _
    $region31: #{tpu_custom_call.1} parent=1 // pred_check_branch
      %4757 = sbr.rel (0) target = $region33
    $region32: #{tpu_custom_call.1} parent=1 // pred_region
      %s4759 = ssub.s32 1024, 1024
      %4760 = vsyncadd [#allocation4], %s4759
      %s4761 = sshll.u32 [#allocation7], 4
      %s4762 = int_to_ptr.vmem [resolvable:$true] %s4761
      %4767 = dma.vmem_to_hbm [thread:$0]  %s4762, 1024, %s5, [#allocation4], 512, 512, 32
    $region33: #{tpu_custom_call.1} parent=1 // pred_fallthru
      _
    // Predicated region
    $region34: #{tpu_custom_call.1} parent=1 // pred_check
      _
    $region35: #{tpu_custom_call.1} parent=1 // pred_check_branch
      %4769 = sbr.rel (0) target = $region37
    $region36: #{tpu_custom_call.1} parent=1 // pred_region
      %4770 = dma.done [#allocation4], 1024
    $region37: #{tpu_custom_call.1} parent=1 // pred_fallthru
      _
    %4771 = vsyncpa [#allocation3], 1
    %4772 = vsyncpa [#allocation6], 1
    %4773 = vsyncpa [#allocation4], 1

</llo_original>
